<compile_context>
chip_gen: v5e
topology: v5e:2x2
jax: 0.10.0
libtpu: 0.0.40
codegen_flags: <defaults>
</compile_context>

<pallas_src>
import functools

import jax
import jax.numpy as jnp
from jax.experimental import pallas as pl
from jax.experimental.pallas import tpu as pltpu

LN_EPS = 1e-5  # PyTorch nn.LayerNorm default


def _layernorm_relu(h):
    # LayerNorm over last dim, elementwise_affine=False, then ReLU.
    mean = jnp.mean(h, axis=-1, keepdims=True)
    centered = h - mean
    var = jnp.mean(centered * centered, axis=-1, keepdims=True)  # biased, like torch
    hn = centered * jax.lax.rsqrt(var + LN_EPS)
    return jnp.maximum(hn, 0.0)


def _eencoder_kernel(
    x_ref, w1_ref, b1_ref, wseq_ref, bseq_ref, whead_ref, bhead_ref,
    out_ref,
    acc_ref,
    *, num_seq_layers,
):
    k = pl.program_id(0)

    @pl.when(k == 0)
    def _():
        acc_ref[...] = jnp.zeros_like(acc_ref)

    # Partial x2h matmul for this K tile: bf16 x bf16 operands, f32 MXU accumulate.
    acc_ref[...] += jnp.dot(
        x_ref[...], w1_ref[...], preferred_element_type=jnp.float32
    )

    @pl.when(k == pl.num_programs(0) - 1)
    def _():
        # x2h: bias + LayerNorm(no affine) + ReLU
        h = _layernorm_relu(acc_ref[...] + b1_ref[...])

        # SeqNN: (num_h_layers - 1) x [Linear -> LayerNorm -> ReLU]
        for i in range(num_seq_layers):  # static unrolled loop (tiny 128x128 dots)
            w = wseq_ref[i].astype(jnp.float32)
            h = _layernorm_relu(
                jnp.dot(h, w, preferred_element_type=jnp.float32) + bseq_ref[i]
            )

        # Fused mu / logvar head: one (h, 2*z) matmul, one lane-denser output store.
        head = jnp.dot(
            h, whead_ref[...].astype(jnp.float32), preferred_element_type=jnp.float32
        ) + bhead_ref[...]
        out_ref[...] = head.astype(out_ref.dtype)


def eencoder_forward(x, params, *, tk=8192):
    """x: (B, H_img, W_img) or (B, x_dim); returns (mu, logvar) in f32."""
    b = x.shape[0]
    x = x.reshape(b, -1)
    x_dim = x.shape[1]

    # Pad batch up to the native 8-sublane tile; padded rows are sliced off below.
    b_pad = max(8, -(-b // 8) * 8)
    if b_pad != b:
        x = jnp.concatenate([x, jnp.zeros((b_pad - b, x_dim), x.dtype)], axis=0)
    x = x.astype(jnp.bfloat16)

    # Stream weights as bf16 (halves the dominant HBM traffic); biases stay f32.
    w1 = params["w1"].astype(jnp.bfloat16)                                   # (x_dim, H)
    b1 = params["b1"].astype(jnp.float32)                                    # (1, H)
    wseq = params["wseq"].astype(jnp.bfloat16)                               # (L, H, H)
    bseq = params["bseq"].astype(jnp.float32)                                # (L, 1, H)
    whead = jnp.concatenate([params["wmu"], params["wlv"]], axis=1).astype(jnp.bfloat16)
    bhead = jnp.concatenate([params["bmu"], params["blv"]], axis=1).astype(jnp.float32)

    h_dim = w1.shape[1]
    z_dim = params["wmu"].shape[1]
    n_seq = params["wseq"].shape[0]
    if n_seq == 0:  # keep block shapes non-degenerate; kernel loop is skipped anyway
        wseq = jnp.zeros((1, h_dim, h_dim), jnp.bfloat16)
        bseq = jnp.zeros((1, 1, h_dim), jnp.float32)
    l_blk = max(n_seq, 1)

    tk = min(tk, x_dim)
    assert x_dim % tk == 0
    kt = x_dim // tk

    kernel = functools.partial(_eencoder_kernel, num_seq_layers=n_seq)

    cost = pl.CostEstimate(
        flops=2 * b_pad * (x_dim * h_dim + n_seq * h_dim * h_dim + h_dim * 2 * z_dim),
        transcendentals=b_pad * (1 + n_seq),
        bytes_accessed=(x.size * 2 + w1.size * 2 + wseq.size * 2 + whead.size * 2
                        + b1.size * 4 + bseq.size * 4 + bhead.size * 4
                        + b_pad * 2 * z_dim * 4),
    )

    out = pl.pallas_call(
        kernel,
        out_shape=jax.ShapeDtypeStruct((b_pad, 2 * z_dim), jnp.float32),
        grid_spec=pltpu.PrefetchScalarGridSpec(
            num_scalar_prefetch=0,
            grid=(kt,),
            in_specs=[
                pl.BlockSpec((b_pad, tk), lambda k: (0, k)),               # x tile
                pl.BlockSpec((tk, h_dim), lambda k: (k, 0)),               # W1 tile
                pl.BlockSpec((1, h_dim), lambda k: (0, 0)),                # b1
                pl.BlockSpec((l_blk, h_dim, h_dim), lambda k: (0, 0, 0)),  # SeqNN Ws
                pl.BlockSpec((l_blk, 1, h_dim), lambda k: (0, 0, 0)),      # SeqNN bs
                pl.BlockSpec((h_dim, 2 * z_dim), lambda k: (0, 0)),        # fused head W
                pl.BlockSpec((1, 2 * z_dim), lambda k: (0, 0)),            # fused head b
            ],
            out_specs=pl.BlockSpec((b_pad, 2 * z_dim), lambda k: (0, 0)),
            scratch_shapes=[pltpu.VMEM((b_pad, h_dim), jnp.float32)],
        ),
        compiler_params=pltpu.CompilerParams(
            dimension_semantics=("arbitrary",),   # K is a reduction axis
            vmem_limit_bytes=32 * 1024 * 1024,    # explicit; v5e default is only 16 MiB
        ),
        cost_estimate=cost,
    )(x, w1, b1, wseq, bseq, whead, bhead)

    out = out[:b]
    return out[:, :z_dim], out[:, z_dim:]


def init_params(key, num_h_layers, x_dim, h_dim, z_dim):
    """Deterministic, PyTorch-Linear-style uniform init (weights as (in, out))."""
    def linear(k, fan_in, fan_out):
        kw, kb = jax.random.split(k)
        bound = 1.0 / jnp.sqrt(fan_in)
        w = jax.random.uniform(kw, (fan_in, fan_out), jnp.float32, -bound, bound)
        b = jax.random.uniform(kb, (1, fan_out), jnp.float32, -bound, bound)
        return w, b

    n_seq = num_h_layers - 1
    keys = jax.random.split(key, 3 + n_seq)
    w1, b1 = linear(keys[0], x_dim, h_dim)
    wseq_l, bseq_l = [], []
    for i in range(n_seq):
        w, bb = linear(keys[1 + i], h_dim, h_dim)
        wseq_l.append(w)
        bseq_l.append(bb)
    wseq = jnp.stack(wseq_l) if n_seq > 0 else jnp.zeros((0, h_dim, h_dim), jnp.float32)
    bseq = (jnp.stack(bseq_l) if n_seq > 0
            else jnp.zeros((0, 1, h_dim), jnp.float32))
    wmu, bmu = linear(keys[1 + n_seq], h_dim, z_dim)
    wlv, blv = linear(keys[2 + n_seq], h_dim, z_dim)
    return dict(w1=w1, b1=b1, wseq=wseq, bseq=bseq,
                wmu=wmu, bmu=bmu, wlv=wlv, blv=blv)


def eencoder_reference(x, params):
    """Pure-JAX f32 reference of the PyTorch forward (HIGHEST matmul precision)."""
    hp = jax.lax.Precision.HIGHEST
    b = x.shape[0]
    h = x.reshape(b, -1).astype(jnp.float32)
    h = _layernorm_relu(jnp.dot(h, params["w1"], precision=hp) + params["b1"])
    for i in range(params["wseq"].shape[0]):
        h = _layernorm_relu(jnp.dot(h, params["wseq"][i], precision=hp)
                            + params["bseq"][i])
    mu = jnp.dot(h, params["wmu"], precision=hp) + params["bmu"]
    logvar = jnp.dot(h, params["wlv"], precision=hp) + params["blv"]
    return mu, logvar


if __name__ == "__main__":
    # The forward hardcodes x.reshape(batch, 128*128), so x_dim = 16384.
    batch = 2
    num_h_layers = 3          # -> SeqNN has 2 LinearReLU layers
    x_dim = 128 * 128
    h_dim = 128
    z_dim = 32

    key = jax.random.PRNGKey(0)
    kx, kp = jax.random.split(key)
    x = jax.random.normal(kx, (batch, 128, 128), jnp.float32)
    params = init_params(kp, num_h_layers, x_dim, h_dim, z_dim)

    mu, logvar = eencoder_forward(x, params)
    jax.block_until_ready((mu, logvar))

    mu_ref, lv_ref = eencoder_reference(x, params)
    assert mu.shape == (batch, z_dim) and logvar.shape == (batch, z_dim)
    # Tolerance loosened vs. the f32 reference because weights/x are streamed as
    # bf16 (the review-approved bandwidth optimization); accumulation stays f32.
    assert jnp.allclose(mu, mu_ref, atol=5e-2, rtol=5e-2)
    assert jnp.allclose(logvar, lv_ref, atol=5e-2, rtol=5e-2)

    print("KERNEL_OK")
</pallas_src>

<mosaic_0001>
module attributes {stable_mosaic.version = 11 : i64} {
  func.func @_eencoder_kernel(%arg0: i32, %arg1: memref<8x8192xbf16, #tpu.memory_space<vmem>>, %arg2: memref<8192x128xbf16, #tpu.memory_space<vmem>>, %arg3: memref<1x128xf32, #tpu.memory_space<vmem>>, %arg4: memref<2x128x128xbf16, #tpu.memory_space<vmem>>, %arg5: memref<2x1x128xf32, #tpu.memory_space<vmem>>, %arg6: memref<128x64xbf16, #tpu.memory_space<vmem>>, %arg7: memref<1x64xf32, #tpu.memory_space<vmem>>, %arg8: memref<8x64xf32, #tpu.memory_space<vmem>>, %arg9: memref<8x128xf32, #tpu.memory_space<vmem>>) attributes {dimension_semantics = [#tpu.dimension_semantics<arbitrary>], iteration_bounds = array<i64: 2>, scalar_prefetch = 0 : i64, scratch_operands = 1 : i64, tpu.core_type = #tpu.core_type<tc>, window_params = [{transform_indices = @transform_0, window_bounds = array<i64: 8, 8192>}, {transform_indices = @transform_1, window_bounds = array<i64: 8192, 128>}, {pipeline_mode = #tpu.pipeline_mode<synchronous>, transform_indices = @transform_2, window_bounds = array<i64: 1, 128>}, {pipeline_mode = #tpu.pipeline_mode<synchronous>, transform_indices = @transform_3, window_bounds = array<i64: 2, 128, 128>}, {pipeline_mode = #tpu.pipeline_mode<synchronous>, transform_indices = @transform_4, window_bounds = array<i64: 2, 1, 128>}, {pipeline_mode = #tpu.pipeline_mode<synchronous>, transform_indices = @transform_5, window_bounds = array<i64: 128, 64>}, {pipeline_mode = #tpu.pipeline_mode<synchronous>, transform_indices = @transform_6, window_bounds = array<i64: 1, 64>}, {pipeline_mode = #tpu.pipeline_mode<synchronous>, transform_indices = @transform_7, window_bounds = array<i64: 8, 64>}]} {
    %c0_i32 = arith.constant 0 : i32
    %0 = arith.cmpi eq, %arg0, %c0_i32 : i32
    %1 = arith.extui %0 : i1 to i32
    %c0_i32_0 = arith.constant 0 : i32
    %2 = arith.cmpi ne, %1, %c0_i32_0 : i32
    scf.if %2 {
      %cst_9 = arith.constant 0.000000e+00 : f32
      %12 = vector.broadcast %cst_9 : f32 to vector<8x128xf32>
      %c0_10 = arith.constant 0 : index
      %c0_11 = arith.constant 0 : index
      %13 = vector.load %arg9[%c0_10, %c0_11] : memref<8x128xf32, #tpu.memory_space<vmem>>, vector<8x128xf32>
      tpu.vector_store %arg9[%c0_10, %c0_11], %12 {strides = array<i32>} : memref<8x128xf32, #tpu.memory_space<vmem>>, vector<8x128xf32>,
    } else {
    }
    %c0 = arith.constant 0 : index
    %c0_1 = arith.constant 0 : index
    %3 = vector.load %arg9[%c0, %c0_1] : memref<8x128xf32, #tpu.memory_space<vmem>>, vector<8x128xf32>
    %c0_2 = arith.constant 0 : index
    %c0_3 = arith.constant 0 : index
    %4 = vector.load %arg1[%c0_2, %c0_3] : memref<8x8192xbf16, #tpu.memory_space<vmem>>, vector<8x8192xbf16>
    %c0_4 = arith.constant 0 : index
    %c0_5 = arith.constant 0 : index
    %5 = vector.load %arg2[%c0_4, %c0_5] : memref<8192x128xbf16, #tpu.memory_space<vmem>>, vector<8192x128xbf16>
    %cst = arith.constant dense<0.000000e+00> : vector<8x128xf32>
    %6 = tpu.matmul %4, %5, %cst {dimension_numbers = #tpu.dot_dimension_numbers<[1], [0], [0], [1], [0, 0, 1, 1], [], []>} : vector<8x8192xbf16>, vector<8192x128xbf16>, vector<8x128xf32> -> vector<8x128xf32>
    %7 = arith.addf %3, %6 : vector<8x128xf32>
    %c0_6 = arith.constant 0 : index
    %c0_7 = arith.constant 0 : index
    %8 = vector.load %arg9[%c0_6, %c0_7] : memref<8x128xf32, #tpu.memory_space<vmem>>, vector<8x128xf32>
    tpu.vector_store %arg9[%c0_6, %c0_7], %7 {strides = array<i32>} : memref<8x128xf32, #tpu.memory_space<vmem>>, vector<8x128xf32>,
    %c1_i32 = arith.constant 1 : i32
    %9 = arith.cmpi eq, %arg0, %c1_i32 : i32
    %10 = arith.extui %9 : i1 to i32
    %c0_i32_8 = arith.constant 0 : i32
    %11 = arith.cmpi ne, %10, %c0_i32_8 : i32
    scf.if %11 {
      %c0_9 = arith.constant 0 : index
      %c0_10 = arith.constant 0 : index
      %12 = vector.load %arg9[%c0_9, %c0_10] : memref<8x128xf32, #tpu.memory_space<vmem>>, vector<8x128xf32>
      %c0_11 = arith.constant 0 : index
      %c0_12 = arith.constant 0 : index
      %13 = vector.load %arg3[%c0_11, %c0_12] : memref<1x128xf32, #tpu.memory_space<vmem>>, vector<1x128xf32>
      %14 = vector.broadcast %13 : vector<1x128xf32> to vector<8x128xf32>
      %15 = arith.addf %12, %14 : vector<8x128xf32>
      %cst_13 = arith.constant dense<0.000000e+00> : vector<8xf32>
      %16 = vector.multi_reduction <add>, %15, %cst_13 [1] : vector<8x128xf32> to vector<8xf32>
      %17 = vector.shape_cast %16 : vector<8xf32> to vector<8x1xf32>
      %cst_14 = arith.constant 1.280000e+02 : f32
      %18 = vector.broadcast %cst_14 : f32 to vector<8x1xf32>
      %19 = arith.divf %17, %18 : vector<8x1xf32>
      %20 = vector.broadcast %19 : vector<8x1xf32> to vector<8x128xf32>
      %21 = arith.subf %15, %20 : vector<8x128xf32>
      %22 = arith.mulf %21, %21 : vector<8x128xf32>
      %cst_15 = arith.constant dense<0.000000e+00> : vector<8xf32>
      %23 = vector.multi_reduction <add>, %22, %cst_15 [1] : vector<8x128xf32> to vector<8xf32>
      %24 = vector.shape_cast %23 : vector<8xf32> to vector<8x1xf32>
      %cst_16 = arith.constant 1.280000e+02 : f32
      %25 = vector.broadcast %cst_16 : f32 to vector<8x1xf32>
      %26 = arith.divf %24, %25 : vector<8x1xf32>
      %cst_17 = arith.constant 9.99999974E-6 : f32
      %27 = vector.broadcast %cst_17 : f32 to vector<8x1xf32>
      %28 = arith.addf %26, %27 : vector<8x1xf32>
      %29 = math.rsqrt %28 : vector<8x1xf32>
      %30 = vector.broadcast %29 : vector<8x1xf32> to vector<8x128xf32>
      %31 = arith.mulf %21, %30 : vector<8x128xf32>
      %cst_18 = arith.constant 0.000000e+00 : f32
      %32 = vector.broadcast %cst_18 : f32 to vector<8x128xf32>
      %33 = arith.maximumf %31, %32 : vector<8x128xf32>
      %c0_19 = arith.constant 0 : index
      %c0_20 = arith.constant 0 : index
      %c0_21 = arith.constant 0 : index
      %34 = vector.load %arg4[%c0_19, %c0_20, %c0_21] : memref<2x128x128xbf16, #tpu.memory_space<vmem>>, vector<1x128x128xbf16>
      %35 = vector.shape_cast %34 : vector<1x128x128xbf16> to vector<128x128xbf16>
      %36 = arith.extf %35 : vector<128x128xbf16> to vector<128x128xf32>
      %cst_22 = arith.constant dense<0.000000e+00> : vector<8x128xf32>
      %37 = tpu.matmul %33, %36, %cst_22 {dimension_numbers = #tpu.dot_dimension_numbers<[1], [0], [0], [1], [0, 0, 1, 1], [], []>} : vector<8x128xf32>, vector<128x128xf32>, vector<8x128xf32> -> vector<8x128xf32>
      %c0_23 = arith.constant 0 : index
      %c0_24 = arith.constant 0 : index
      %c0_25 = arith.constant 0 : index
      %38 = vector.load %arg5[%c0_23, %c0_24, %c0_25] : memref<2x1x128xf32, #tpu.memory_space<vmem>>, vector<1x1x128xf32>
      %39 = vector.shape_cast %38 : vector<1x1x128xf32> to vector<1x128xf32>
      %40 = vector.broadcast %39 : vector<1x128xf32> to vector<8x128xf32>
      %41 = arith.addf %37, %40 : vector<8x128xf32>
      %cst_26 = arith.constant dense<0.000000e+00> : vector<8xf32>
      %42 = vector.multi_reduction <add>, %41, %cst_26 [1] : vector<8x128xf32> to vector<8xf32>
      %43 = vector.shape_cast %42 : vector<8xf32> to vector<8x1xf32>
      %cst_27 = arith.constant 1.280000e+02 : f32
      %44 = vector.broadcast %cst_27 : f32 to vector<8x1xf32>
      %45 = arith.divf %43, %44 : vector<8x1xf32>
      %46 = vector.broadcast %45 : vector<8x1xf32> to vector<8x128xf32>
      %47 = arith.subf %41, %46 : vector<8x128xf32>
      %48 = arith.mulf %47, %47 : vector<8x128xf32>
      %cst_28 = arith.constant dense<0.000000e+00> : vector<8xf32>
      %49 = vector.multi_reduction <add>, %48, %cst_28 [1] : vector<8x128xf32> to vector<8xf32>
      %50 = vector.shape_cast %49 : vector<8xf32> to vector<8x1xf32>
      %cst_29 = arith.constant 1.280000e+02 : f32
      %51 = vector.broadcast %cst_29 : f32 to vector<8x1xf32>
      %52 = arith.divf %50, %51 : vector<8x1xf32>
      %cst_30 = arith.constant 9.99999974E-6 : f32
      %53 = vector.broadcast %cst_30 : f32 to vector<8x1xf32>
      %54 = arith.addf %52, %53 : vector<8x1xf32>
      %55 = math.rsqrt %54 : vector<8x1xf32>
      %56 = vector.broadcast %55 : vector<8x1xf32> to vector<8x128xf32>
      %57 = arith.mulf %47, %56 : vector<8x128xf32>
      %cst_31 = arith.constant 0.000000e+00 : f32
      %58 = vector.broadcast %cst_31 : f32 to vector<8x128xf32>
      %59 = arith.maximumf %57, %58 : vector<8x128xf32>
      %c1 = arith.constant 1 : index
      %c0_32 = arith.constant 0 : index
      %c0_33 = arith.constant 0 : index
      %60 = vector.load %arg4[%c1, %c0_32, %c0_33] : memref<2x128x128xbf16, #tpu.memory_space<vmem>>, vector<1x128x128xbf16>
      %61 = vector.shape_cast %60 : vector<1x128x128xbf16> to vector<128x128xbf16>
      %62 = arith.extf %61 : vector<128x128xbf16> to vector<128x128xf32>
      %cst_34 = arith.constant dense<0.000000e+00> : vector<8x128xf32>
      %63 = tpu.matmul %59, %62, %cst_34 {dimension_numbers = #tpu.dot_dimension_numbers<[1], [0], [0], [1], [0, 0, 1, 1], [], []>} : vector<8x128xf32>, vector<128x128xf32>, vector<8x128xf32> -> vector<8x128xf32>
      %c1_35 = arith.constant 1 : index
      %c0_36 = arith.constant 0 : index
      %c0_37 = arith.constant 0 : index
      %64 = vector.load %arg5[%c1_35, %c0_36, %c0_37] : memref<2x1x128xf32, #tpu.memory_space<vmem>>, vector<1x1x128xf32>
      %65 = vector.shape_cast %64 : vector<1x1x128xf32> to vector<1x128xf32>
      %66 = vector.broadcast %65 : vector<1x128xf32> to vector<8x128xf32>
      %67 = arith.addf %63, %66 : vector<8x128xf32>
      %cst_38 = arith.constant dense<0.000000e+00> : vector<8xf32>
      %68 = vector.multi_reduction <add>, %67, %cst_38 [1] : vector<8x128xf32> to vector<8xf32>
      %69 = vector.shape_cast %68 : vector<8xf32> to vector<8x1xf32>
      %cst_39 = arith.constant 1.280000e+02 : f32
      %70 = vector.broadcast %cst_39 : f32 to vector<8x1xf32>
      %71 = arith.divf %69, %70 : vector<8x1xf32>
      %72 = vector.broadcast %71 : vector<8x1xf32> to vector<8x128xf32>
      %73 = arith.subf %67, %72 : vector<8x128xf32>
      %74 = arith.mulf %73, %73 : vector<8x128xf32>
      %cst_40 = arith.constant dense<0.000000e+00> : vector<8xf32>
      %75 = vector.multi_reduction <add>, %74, %cst_40 [1] : vector<8x128xf32> to vector<8xf32>
      %76 = vector.shape_cast %75 : vector<8xf32> to vector<8x1xf32>
      %cst_41 = arith.constant 1.280000e+02 : f32
      %77 = vector.broadcast %cst_41 : f32 to vector<8x1xf32>
      %78 = arith.divf %76, %77 : vector<8x1xf32>
      %cst_42 = arith.constant 9.99999974E-6 : f32
      %79 = vector.broadcast %cst_42 : f32 to vector<8x1xf32>
      %80 = arith.addf %78, %79 : vector<8x1xf32>
      %81 = math.rsqrt %80 : vector<8x1xf32>
      %82 = vector.broadcast %81 : vector<8x1xf32> to vector<8x128xf32>
      %83 = arith.mulf %73, %82 : vector<8x128xf32>
      %cst_43 = arith.constant 0.000000e+00 : f32
      %84 = vector.broadcast %cst_43 : f32 to vector<8x128xf32>
      %85 = arith.maximumf %83, %84 : vector<8x128xf32>
      %c0_44 = arith.constant 0 : index
      %c0_45 = arith.constant 0 : index
      %86 = vector.load %arg6[%c0_44, %c0_45] : memref<128x64xbf16, #tpu.memory_space<vmem>>, vector<128x64xbf16>
      %87 = arith.extf %86 : vector<128x64xbf16> to vector<128x64xf32>
      %cst_46 = arith.constant dense<0.000000e+00> : vector<8x64xf32>
      %88 = tpu.matmul %85, %87, %cst_46 {dimension_numbers = #tpu.dot_dimension_numbers<[1], [0], [0], [1], [0, 0, 1, 1], [], []>} : vector<8x128xf32>, vector<128x64xf32>, vector<8x64xf32> -> vector<8x64xf32>
      %c0_47 = arith.constant 0 : index
      %c0_48 = arith.constant 0 : index
      %89 = vector.load %arg7[%c0_47, %c0_48] : memref<1x64xf32, #tpu.memory_space<vmem>>, vector<1x64xf32>
      %90 = vector.broadcast %89 : vector<1x64xf32> to vector<8x64xf32>
      %91 = arith.addf %88, %90 : vector<8x64xf32>
      %c0_49 = arith.constant 0 : index
      %c0_50 = arith.constant 0 : index
      %92 = vector.load %arg8[%c0_49, %c0_50] : memref<8x64xf32, #tpu.memory_space<vmem>>, vector<8x64xf32>
      tpu.vector_store %arg8[%c0_49, %c0_50], %91 {strides = array<i32>} : memref<8x64xf32, #tpu.memory_space<vmem>>, vector<8x64xf32>,
    } else {
    }
    return
  }
  func.func @transform_0(%arg0: i32) -> (i32, i32) {
    %c0_i32 = arith.constant 0 : i32
    %c0_i32_0 = arith.constant 0 : i32
    return %c0_i32, %arg0 : i32, i32
  }
  func.func @transform_1(%arg0: i32) -> (i32, i32) {
    %c0_i32 = arith.constant 0 : i32
    %c0_i32_0 = arith.constant 0 : i32
    return %arg0, %c0_i32 : i32, i32
  }
  func.func @transform_2(%arg0: i32) -> (i32, i32) {
    %c0_i32 = arith.constant 0 : i32
    %c0_i32_0 = arith.constant 0 : i32
    %c0_i32_1 = arith.constant 0 : i32
    return %c0_i32, %c0_i32_0 : i32, i32
  }
  func.func @transform_3(%arg0: i32) -> (i32, i32, i32) {
    %c0_i32 = arith.constant 0 : i32
    %c0_i32_0 = arith.constant 0 : i32
    %c0_i32_1 = arith.constant 0 : i32
    %c0_i32_2 = arith.constant 0 : i32
    return %c0_i32, %c0_i32_0, %c0_i32_1 : i32, i32, i32
  }
  func.func @transform_4(%arg0: i32) -> (i32, i32, i32) {
    %c0_i32 = arith.constant 0 : i32
    %c0_i32_0 = arith.constant 0 : i32
    %c0_i32_1 = arith.constant 0 : i32
    %c0_i32_2 = arith.constant 0 : i32
    return %c0_i32, %c0_i32_0, %c0_i32_1 : i32, i32, i32
  }
  func.func @transform_5(%arg0: i32) -> (i32, i32) {
    %c0_i32 = arith.constant 0 : i32
    %c0_i32_0 = arith.constant 0 : i32
    %c0_i32_1 = arith.constant 0 : i32
    return %c0_i32, %c0_i32_0 : i32, i32
  }
  func.func @transform_6(%arg0: i32) -> (i32, i32) {
    %c0_i32 = arith.constant 0 : i32
    %c0_i32_0 = arith.constant 0 : i32
    %c0_i32_1 = arith.constant 0 : i32
    return %c0_i32, %c0_i32_0 : i32, i32
  }
  func.func @transform_7(%arg0: i32) -> (i32, i32) {
    %c0_i32 = arith.constant 0 : i32
    %c0_i32_0 = arith.constant 0 : i32
    %c0_i32_1 = arith.constant 0 : i32
    return %c0_i32, %c0_i32_0 : i32, i32
  }
}

</mosaic_0001>

<llo_original>
// kernel: tpu_custom_call.1
$region0: #{tpu_custom_call.1}
  #allocation0 [shape = 'u32[]', space=smem, size = 0x4, offset = 0x4, fixed_abs, tag = 'smem constant byte address 0x4 - core index']
  #allocation1 [shape = 'u32[72,128]{1,0:T(1,128)}', space=vmem, size = 0x9000, scoped, tag = 'internal scratch']
  #allocation2 [shape = 'f32[8,128]{1,0:T(8,128)}', space=vmem, size = 0x1000, scoped, tag = 'scratch operand']
  %s0 = inlined_call_operand.hbm [shape: bf16[8,16384], index: 0, kind: input, shape index: {}]
  %s1 = inlined_call_operand.hbm [shape: bf16[16384,128], index: 1, kind: input, shape index: {}]
  %s2 = inlined_call_operand.hbm [shape: f32[1,128], index: 2, kind: input, shape index: {}]
  %s3 = inlined_call_operand.hbm [shape: bf16[2,128,128], index: 3, kind: input, shape index: {}]
  %s4 = inlined_call_operand.hbm [shape: f32[2,1,128], index: 4, kind: input, shape index: {}]
  %s5 = inlined_call_operand.vmem [shape: bf16[128,64], index: 5, kind: input, shape index: {}]
  %s6 = inlined_call_operand.hbm [shape: f32[1,64], index: 6, kind: input, shape index: {}]
  %s7 = inlined_call_operand.hbm [shape: f32[8,64], index: 7, kind: output, shape index: {}]
  %s8 = sld [smem:[#allocation0]]
  $region93: #{tpu_custom_call.1} parent=0
    _
  %s10 = ssub.s32 1, %s8
  %s11 = scalar_select 0, %s10, %s8
  $region1: #{tpu_custom_call.1} parent=0
    #allocation3 [shape = 'u8[262144]{0}', space=vmem, size = 0x40000, scoped, tag = 'input window, operand 0']
    #allocation4 [shape = 's32[2]{0}', space=sflag, size = 0x8, scoped, tag = 'scoped memory for tpu_custom_call.1']
    #allocation5 [shape = 's32[2]{0}', space=sflag, size = 0x8, scoped, tag = 'scoped memory for tpu_custom_call.1']
    #allocation6 [shape = 'u8[4194304]{0}', space=vmem, size = 0x400000, scoped, tag = 'input window, operand 1']
    #allocation7 [shape = 's32[2]{0}', space=sflag, size = 0x8, scoped, tag = 'scoped memory for tpu_custom_call.1']
    #allocation8 [shape = 'u8[512]{0}', space=vmem, size = 0x400, scoped, tag = 'input window, operand 2, single buffered']
    #allocation9 [shape = 'u8[65536]{0}', space=vmem, size = 0x10000, scoped, tag = 'input window, operand 3, single buffered']
    #allocation10 [shape = 's32[1]{0}', space=sflag, size = 0x4, scoped, tag = 'scoped memory for tpu_custom_call.1']
    #allocation11 [shape = 'u8[1024]{0}', space=vmem, size = 0x400, scoped, tag = 'input window, operand 4, single buffered']
    #allocation12 [shape = 'u8[512]{0}', space=vmem, size = 0x400, scoped, tag = 'input window, operand 6, single buffered']
    #allocation13 [shape = 's32[1]{0}', space=sflag, size = 0x4, scoped, tag = 'scoped memory for tpu_custom_call.1']
    #allocation14 [shape = 'u8[4096]{0}', space=vmem, size = 0x1000, scoped, tag = 'output window, operand 0, single buffered']
    %12 = vsyncpa [#allocation4], 0
    %s13 = scalar_lea.sflag [#allocation4], 1
    %14 = vsyncpa %s13, 0
    %15 = vsyncpa [#allocation7], 0
    %s16 = scalar_lea.sflag [#allocation7], 1
    %17 = vsyncpa %s16, 0
    %18 = vsyncpa [#allocation10], 0
    %19 = vsyncpa [#allocation13], 0
    %20 = vsyncpa [#allocation5], 0
    loop: start=0, step=1, limit=4
    $region2: #{tpu_custom_call.1} parent=1 // loop_pre_header
      _
    $region3: #{tpu_custom_call.1} parent=1 // loop_header
      %s22 = sphi 0, %s26
      %p23 = scmp.ge.s32.totalorder %s22, 4
      %s32 = sphi 0, %s34
      %s35 = sphi 0, %s32
      %s36 = sphi 0, %s35
      %s52 = sphi 0, %s36
      %s58 = sphi 0, %s60
      %s61 = sphi 0, %s58
      %s62 = sphi 0, %s61
      %s78 = sphi 0, %s62
      %s82 = sphi 0, %s82
      %s84 = sphi 0, %s82
      %s85 = sphi 0, %s84
      %s99 = sphi 0, %s85
      %s103 = sphi 0, %s103
      %s105 = sphi 0, %s103
      %s106 = sphi 0, %s105
      %s120 = sphi 0, %s106
      %s124 = sphi 0, %s124
      %s126 = sphi 0, %s124
      %s127 = sphi 0, %s126
      %s141 = sphi 0, %s127
      %s145 = sphi 0, %s145
      %s147 = sphi 0, %s145
      %s148 = sphi 0, %s147
      %s162 = sphi 0, %s148
      %s166 = sphi 0, %s166
      %s168 = sphi 0, %s166
      %s169 = sphi 0, %s168
      %s183 = sphi 0, %s169
      %s187 = sphi 0, %s187
      %s189 = sphi 0, %s187
      %s190 = sphi 0, %s189
      %s204 = sphi 0, %s190
    $region4: #{tpu_custom_call.1} parent=1 // loop_header_branch
      %25 = sbr.rel (%p23) target = $region8
    $region5: #{tpu_custom_call.1} parent=1 // loop_body
      %s27 = ssub.s32 %s22, 1
      %s28 = ssub.s32 %s22, 2
      %s29 = sadd.s32 %s22, 1
      %s30 = ssub.s32 %s22, %s29
      %p31 = scmp.eq.s32.totalorder %s30, 0
      %s33 = sadd.s32 %s32, 1
      %s34 = scalar_select %p31, %s32, %s33
      %p37 = pneg %p31
      %p38 = scmp.eq.s32.totalorder %s22, 1
      %p39 = por %p37, %p38
      %p40 = scmp.ne.s32.totalorder %s32, %s35
      %p41 = scmp.eq.s32.totalorder %s22, 0
      %p42 = por %p40, %p41
      %p43 = scmp.ne.s32.totalorder %s32, %s35
      %p44 = scmp.eq.s32.totalorder %s27, 1
      %p45 = por %p43, %p44
      %p46 = scmp.ne.s32.totalorder %s35, %s36
      %p47 = scmp.eq.s32.totalorder %s27, 0
      %p48 = por %p46, %p47
      %p49 = scmp.ne.s32.totalorder %s35, %s36
      %p50 = scmp.eq.s32.totalorder %s28, 1
      %p51 = por %p49, %p50
      %p53 = scmp.ne.s32.totalorder %s36, %s52
      %p54 = scmp.eq.s32.totalorder %s28, 0
      %p55 = por %p53, %p54
      %s56 = ssub.s32 %s22, %s29
      %p57 = scmp.eq.s32.totalorder %s56, 0
      %s59 = sadd.s32 %s58, 1
      %s60 = scalar_select %p57, %s58, %s59
      %p63 = pneg %p57
      %p64 = scmp.eq.s32.totalorder %s22, 1
      %p65 = por %p63, %p64
      %p66 = scmp.ne.s32.totalorder %s58, %s61
      %p67 = scmp.eq.s32.totalorder %s22, 0
      %p68 = por %p66, %p67
      %p69 = scmp.ne.s32.totalorder %s58, %s61
      %p70 = scmp.eq.s32.totalorder %s27, 1
      %p71 = por %p69, %p70
      %p72 = scmp.ne.s32.totalorder %s61, %s62
      %p73 = scmp.eq.s32.totalorder %s27, 0
      %p74 = por %p72, %p73
      %p75 = scmp.ne.s32.totalorder %s61, %s62
      %p76 = scmp.eq.s32.totalorder %s28, 1
      %p77 = por %p75, %p76
      %p79 = scmp.ne.s32.totalorder %s62, %s78
      %p80 = scmp.eq.s32.totalorder %s28, 0
      %p81 = por %p79, %p80
      %s83 = sadd.s32 %s82, 1
      %p86 = scmp.eq.s32.totalorder %s22, 1
      %p87 = scmp.ne.s32.totalorder %s82, %s84
      %p88 = scmp.eq.s32.totalorder %s22, 0
      %p89 = por %p87, %p88
      %p90 = scmp.ne.s32.totalorder %s82, %s84
      %p91 = scmp.eq.s32.totalorder %s27, 1
      %p92 = por %p90, %p91
      %p93 = scmp.ne.s32.totalorder %s84, %s85
      %p94 = scmp.eq.s32.totalorder %s27, 0
      %p95 = por %p93, %p94
      %p96 = scmp.ne.s32.totalorder %s84, %s85
      %p97 = scmp.eq.s32.totalorder %s28, 1
      %p98 = por %p96, %p97
      %p100 = scmp.ne.s32.totalorder %s85, %s99
      %p101 = scmp.eq.s32.totalorder %s28, 0
      %p102 = por %p100, %p101
      %s104 = sadd.s32 %s103, 1
      %p107 = scmp.eq.s32.totalorder %s22, 1
      %p108 = scmp.ne.s32.totalorder %s103, %s105
      %p109 = scmp.eq.s32.totalorder %s22, 0
      %p110 = por %p108, %p109
      %p111 = scmp.ne.s32.totalorder %s103, %s105
      %p112 = scmp.eq.s32.totalorder %s27, 1
      %p113 = por %p111, %p112
      %p114 = scmp.ne.s32.totalorder %s105, %s106
      %p115 = scmp.eq.s32.totalorder %s27, 0
      %p116 = por %p114, %p115
      %p117 = scmp.ne.s32.totalorder %s105, %s106
      %p118 = scmp.eq.s32.totalorder %s28, 1
      %p119 = por %p117, %p118
      %p121 = scmp.ne.s32.totalorder %s106, %s120
      %p122 = scmp.eq.s32.totalorder %s28, 0
      %p123 = por %p121, %p122
      %s125 = sadd.s32 %s124, 1
      %p128 = scmp.eq.s32.totalorder %s22, 1
      %p129 = scmp.ne.s32.totalorder %s124, %s126
      %p130 = scmp.eq.s32.totalorder %s22, 0
      %p131 = por %p129, %p130
      %p132 = scmp.ne.s32.totalorder %s124, %s126
      %p133 = scmp.eq.s32.totalorder %s27, 1
      %p134 = por %p132, %p133
      %p135 = scmp.ne.s32.totalorder %s126, %s127
      %p136 = scmp.eq.s32.totalorder %s27, 0
      %p137 = por %p135, %p136
      %p138 = scmp.ne.s32.totalorder %s126, %s127
      %p139 = scmp.eq.s32.totalorder %s28, 1
      %p140 = por %p138, %p139
      %p142 = scmp.ne.s32.totalorder %s127, %s141
      %p143 = scmp.eq.s32.totalorder %s28, 0
      %p144 = por %p142, %p143
      %s146 = sadd.s32 %s145, 1
      %p149 = scmp.eq.s32.totalorder %s22, 1
      %p150 = scmp.ne.s32.totalorder %s145, %s147
      %p151 = scmp.eq.s32.totalorder %s22, 0
      %p152 = por %p150, %p151
      %p153 = scmp.ne.s32.totalorder %s145, %s147
      %p154 = scmp.eq.s32.totalorder %s27, 1
      %p155 = por %p153, %p154
      %p156 = scmp.ne.s32.totalorder %s147, %s148
      %p157 = scmp.eq.s32.totalorder %s27, 0
      %p158 = por %p156, %p157
      %p159 = scmp.ne.s32.totalorder %s147, %s148
      %p160 = scmp.eq.s32.totalorder %s28, 1
      %p161 = por %p159, %p160
      %p163 = scmp.ne.s32.totalorder %s148, %s162
      %p164 = scmp.eq.s32.totalorder %s28, 0
      %p165 = por %p163, %p164
      %s167 = sadd.s32 %s166, 1
      %p170 = scmp.eq.s32.totalorder %s22, 1
      %p171 = scmp.ne.s32.totalorder %s166, %s168
      %p172 = scmp.eq.s32.totalorder %s22, 0
      %p173 = por %p171, %p172
      %p174 = scmp.ne.s32.totalorder %s166, %s168
      %p175 = scmp.eq.s32.totalorder %s27, 1
      %p176 = por %p174, %p175
      %p177 = scmp.ne.s32.totalorder %s168, %s169
      %p178 = scmp.eq.s32.totalorder %s27, 0
      %p179 = por %p177, %p178
      %p180 = scmp.ne.s32.totalorder %s168, %s169
      %p181 = scmp.eq.s32.totalorder %s28, 1
      %p182 = por %p180, %p181
      %p184 = scmp.ne.s32.totalorder %s169, %s183
      %p185 = scmp.eq.s32.totalorder %s28, 0
      %p186 = por %p184, %p185
      %s188 = sadd.s32 %s187, 1
      %p191 = scmp.eq.s32.totalorder %s22, 1
      %p192 = scmp.ne.s32.totalorder %s187, %s189
      %p193 = scmp.eq.s32.totalorder %s22, 0
      %p194 = por %p192, %p193
      %p195 = scmp.ne.s32.totalorder %s187, %s189
      %p196 = scmp.eq.s32.totalorder %s27, 1
      %p197 = por %p195, %p196
      %p198 = scmp.ne.s32.totalorder %s189, %s190
      %p199 = scmp.eq.s32.totalorder %s27, 0
      %p200 = por %p198, %p199
      %p201 = scmp.ne.s32.totalorder %s189, %s190
      %p202 = scmp.eq.s32.totalorder %s28, 1
      %p203 = por %p201, %p202
      %p205 = scmp.ne.s32.totalorder %s190, %s204
      %p206 = scmp.eq.s32.totalorder %s28, 0
      %p207 = por %p205, %p206
      %p208 = scmp.le.s32.totalorder 1, %s22
      %p209 = scmp.lt.s32.totalorder %s22, 3
      %p210 = pnand %p208, %p209
      %p211 = pneg %p210
      // Predicated region
      $region9: #{tpu_custom_call.1} parent=5 // pred_check
        _
      $region10: #{tpu_custom_call.1} parent=5 // pred_check_branch
        %213 = sbr.rel (%p210) target = $region12
      $region11: #{tpu_custom_call.1} parent=5 // pred_region
        %s214 = ssub.s32 %s22, 1
        // Predicated region
        $region13: #{tpu_custom_call.1} parent=11 // pred_check
          %p215 = pneg %p95
        $region14: #{tpu_custom_call.1} parent=11 // pred_check_branch
          %217 = sbr.rel (%p215) target = $region16
        $region15: #{tpu_custom_call.1} parent=11 // pred_region
          %219 = vsyncadd [#allocation7], 0
          %s221 = sshll.u32 %s2, 4
          %s222 = int_to_ptr.hbm [resolvable:$true] %s221
          %s223 = sshll.u32 [#allocation8], 4
          %s224 = int_to_ptr.vmem [resolvable:$true] %s223
          %226 = dma.hbm_to_vmem [thread:$0]  %s222, 16, %s224, [#allocation7]
        $region16: #{tpu_custom_call.1} parent=11 // pred_fallthru
          _
        // Predicated region
        $region17: #{tpu_custom_call.1} parent=11 // pred_check
          %p227 = pneg %p116
        $region18: #{tpu_custom_call.1} parent=11 // pred_check_branch
          %229 = sbr.rel (%p227) target = $region20
        $region19: #{tpu_custom_call.1} parent=11 // pred_region
          %231 = vsyncadd [#allocation10], 0
          %s232 = sshll.u32 %s3, 4
          %s233 = int_to_ptr.hbm [resolvable:$true] %s232
          %s234 = sshll.u32 [#allocation9], 4
          %s235 = int_to_ptr.vmem [resolvable:$true] %s234
          %240 = dma.hbm_to_vmem [thread:$0]  %s233, 2048, %s235, [#allocation10], 64, 64, 4
        $region20: #{tpu_custom_call.1} parent=11 // pred_fallthru
          _
        // Predicated region
        $region21: #{tpu_custom_call.1} parent=11 // pred_check
          %p241 = pneg %p137
        $region22: #{tpu_custom_call.1} parent=11 // pred_check_branch
          %243 = sbr.rel (%p241) target = $region24
        $region23: #{tpu_custom_call.1} parent=11 // pred_region
          %245 = vsyncadd [#allocation10], 0
          %s246 = sshll.u32 %s4, 4
          %s247 = int_to_ptr.hbm [resolvable:$true] %s246
          %s248 = sshll.u32 [#allocation11], 4
          %s249 = int_to_ptr.vmem [resolvable:$true] %s248
          %254 = dma.hbm_to_vmem [thread:$0]  %s247, 32, %s249, [#allocation10], 16, 16, 1
        $region24: #{tpu_custom_call.1} parent=11 // pred_fallthru
          _
        // Predicated region
        $region25: #{tpu_custom_call.1} parent=11 // pred_check
          %p255 = pneg %p158
        $region26: #{tpu_custom_call.1} parent=11 // pred_check_branch
          %257 = sbr.rel (%p255) target = $region28
        $region27: #{tpu_custom_call.1} parent=11 // pred_region
          _
        $region28: #{tpu_custom_call.1} parent=11 // pred_fallthru
          _
        // Predicated region
        $region29: #{tpu_custom_call.1} parent=11 // pred_check
          %p258 = pneg %p179
        $region30: #{tpu_custom_call.1} parent=11 // pred_check_branch
          %260 = sbr.rel (%p258) target = $region32
        $region31: #{tpu_custom_call.1} parent=11 // pred_region
          %262 = vsyncadd [#allocation13], 0
          %s264 = sshll.u32 %s6, 4
          %s265 = int_to_ptr.hbm [resolvable:$true] %s264
          %s266 = sshll.u32 [#allocation12], 4
          %s267 = int_to_ptr.vmem [resolvable:$true] %s266
          %269 = dma.hbm_to_vmem [thread:$0]  %s265, 16, %s267, [#allocation13]
        $region32: #{tpu_custom_call.1} parent=11 // pred_fallthru
          _
      $region12: #{tpu_custom_call.1} parent=5 // pred_fallthru
        _
      %p270 = scmp.lt.s32.totalorder %s22, 2
      // Predicated region
      $region33: #{tpu_custom_call.1} parent=5 // pred_check
        %p271 = pneg %p270
      $region34: #{tpu_custom_call.1} parent=5 // pred_check_branch
        %273 = sbr.rel (%p271) target = $region36
      $region35: #{tpu_custom_call.1} parent=5 // pred_region
        // Predicated region
        $region37: #{tpu_custom_call.1} parent=35 // pred_check
          %p274 = pneg %p42
        $region38: #{tpu_custom_call.1} parent=35 // pred_check_branch
          %276 = sbr.rel (%p274) target = $region40
        $region39: #{tpu_custom_call.1} parent=35 // pred_region
          %s277 = sand.u32 %s32, 1
          %s278 = scalar_lea.sflag [#allocation4], %s277
          %s279 = sand.u32 %s32, 1
          %s280 = smul.addr %s279, 256
          %s281 = scalar_lea.vmem [#allocation3], %s280
          %s282 = smul.u32 64, %s22
          %284 = vsyncadd %s278, 0
          %s285 = smul.addr %s282, 4
          %s286 = scalar_lea.hbm %s0, %s285
          %s288 = sshll.u32 %s286, 4
          %s289 = int_to_ptr.hbm [resolvable:$true] %s288
          %s290 = sshll.u32 %s281, 4
          %s291 = int_to_ptr.vmem [resolvable:$true] %s290
          %293 = dma.hbm_to_vmem [thread:$0]  %s289, 4096, %s291, %s278
        $region40: #{tpu_custom_call.1} parent=35 // pred_fallthru
          _
        // Predicated region
        $region41: #{tpu_custom_call.1} parent=35 // pred_check
          %p294 = pneg %p68
        $region42: #{tpu_custom_call.1} parent=35 // pred_check_branch
          %296 = sbr.rel (%p294) target = $region44
        $region43: #{tpu_custom_call.1} parent=35 // pred_region
          %s297 = sand.u32 %s22, 1
          %s298 = scalar_lea.sflag [#allocation7], %s297
          %s299 = sand.u32 %s58, 1
          %s300 = smul.addr %s299, 4096
          %s301 = scalar_lea.vmem [#allocation6], %s300
          %s302 = smul.u32 1024, %s22
          %304 = vsyncadd %s298, 0
          %s305 = smul.addr %s302, 4
          %s306 = scalar_lea.hbm %s1, %s305
          %s307 = sshll.u32 %s306, 4
          %s308 = int_to_ptr.hbm [resolvable:$true] %s307
          %s309 = sshll.u32 %s301, 4
          %s310 = int_to_ptr.vmem [resolvable:$true] %s309
          %315 = dma.hbm_to_vmem [thread:$0]  %s308, 65536, %s310, %s298, 64, 64, 4
        $region44: #{tpu_custom_call.1} parent=35 // pred_fallthru
          _
      $region36: #{tpu_custom_call.1} parent=5 // pred_fallthru
        _
      %p316 = scmp.le.s32.totalorder 1, %s22
      %p317 = scmp.lt.s32.totalorder %s22, 3
      %p318 = pnand %p316, %p317
      %p319 = pneg %p318
      // Predicated region
      $region45: #{tpu_custom_call.1} parent=5 // pred_check
        _
      $region46: #{tpu_custom_call.1} parent=5 // pred_check_branch
        %321 = sbr.rel (%p318) target = $region48
      $region47: #{tpu_custom_call.1} parent=5 // pred_region
        %s322 = ssub.s32 %s22, 1
        %s323 = sand.u32 %s35, 1
        %s324 = scalar_lea.sflag [#allocation4], %s323
        %s325 = sand.u32 %s35, 1
        %s326 = smul.addr %s325, 256
        %s327 = scalar_lea.vmem [#allocation3], %s326
        // Predicated region
        $region49: #{tpu_custom_call.1} parent=47 // pred_check
          %p328 = pneg %p48
        $region50: #{tpu_custom_call.1} parent=47 // pred_check_branch
          %330 = sbr.rel (%p328) target = $region52
        $region51: #{tpu_custom_call.1} parent=47 // pred_region
          %332 = dma.done %s324, 4096
        $region52: #{tpu_custom_call.1} parent=47 // pred_fallthru
          _
        %s333 = sand.u32 %s27, 1
        %s334 = scalar_lea.sflag [#allocation7], %s333
        %s335 = sand.u32 %s61, 1
        %s336 = smul.addr %s335, 4096
        %s337 = scalar_lea.vmem [#allocation6], %s336
        // Predicated region
        $region53: #{tpu_custom_call.1} parent=47 // pred_check
          %p338 = pneg %p74
        $region54: #{tpu_custom_call.1} parent=47 // pred_check_branch
          %340 = sbr.rel (%p338) target = $region56
        $region55: #{tpu_custom_call.1} parent=47 // pred_region
          %342 = dma.done %s334, 65536
        $region56: #{tpu_custom_call.1} parent=47 // pred_fallthru
          _
        // Predicated region
        $region57: #{tpu_custom_call.1} parent=47 // pred_check
          %p343 = pneg %p95
        $region58: #{tpu_custom_call.1} parent=47 // pred_check_branch
          %345 = sbr.rel (%p343) target = $region60
        $region59: #{tpu_custom_call.1} parent=47 // pred_region
          %347 = dma.done [#allocation7], 16
        $region60: #{tpu_custom_call.1} parent=47 // pred_fallthru
          _
        // Predicated region
        $region61: #{tpu_custom_call.1} parent=47 // pred_check
          %p348 = pneg %p116
        $region62: #{tpu_custom_call.1} parent=47 // pred_check_branch
          %350 = sbr.rel (%p348) target = $region64
        $region63: #{tpu_custom_call.1} parent=47 // pred_region
          %352 = dma.done [#allocation10], 2048
        $region64: #{tpu_custom_call.1} parent=47 // pred_fallthru
          _
        // Predicated region
        $region65: #{tpu_custom_call.1} parent=47 // pred_check
          %p353 = pneg %p137
        $region66: #{tpu_custom_call.1} parent=47 // pred_check_branch
          %355 = sbr.rel (%p353) target = $region68
        $region67: #{tpu_custom_call.1} parent=47 // pred_region
          %357 = dma.done [#allocation10], 32
        $region68: #{tpu_custom_call.1} parent=47 // pred_fallthru
          _
        // Predicated region
        $region69: #{tpu_custom_call.1} parent=47 // pred_check
          %p358 = pneg %p179
        $region70: #{tpu_custom_call.1} parent=47 // pred_check_branch
          %360 = sbr.rel (%p358) target = $region72
        $region71: #{tpu_custom_call.1} parent=47 // pred_region
          %362 = dma.done [#allocation13], 16
        $region72: #{tpu_custom_call.1} parent=47 // pred_fallthru
          _
        %s363 = sand.u32 %s35, 1
        %s364 = scalar_lea.sflag [#allocation4], %s363
        %s365 = sand.u32 %s35, 1
        %s366 = smul.addr %s365, 256
        %s367 = scalar_lea.vmem [#allocation3], %s366
        %p368 = pneg %p48
        %p369 = pneg %p45
        %s370 = sand.u32 %s27, 1
        %s371 = scalar_lea.sflag [#allocation7], %s370
        %s372 = sand.u32 %s61, 1
        %s373 = smul.addr %s372, 4096
        %s374 = scalar_lea.vmem [#allocation6], %s373
        %p375 = pneg %p74
        %p376 = pneg %p71
        %p377 = pneg %p95
        %p378 = pneg %p92
        %p379 = pneg %p116
        %p380 = pneg %p113
        %p381 = pneg %p137
        %p382 = pneg %p134
        %p383 = pneg %p158
        %p384 = pneg %p155
        %p385 = pneg %p179
        %p386 = pneg %p176
        %p387 = pneg %p200
        %p388 = pneg %p197
        %s389 = smul.u32 64, %s27
        %s390 = smul.u32 1024, %s27
        %p391 = scmp.eq.s32.totalorder %s27, 0
        // Predicated region
        $region73: #{tpu_custom_call.1} parent=47 // pred_check
          %p392 = pneg %p391
        $region74: #{tpu_custom_call.1} parent=47 // pred_check_branch
          %394 = sbr.rel (%p392) target = $region76
        $region75: #{tpu_custom_call.1} parent=47 // pred_region
          %395 = vst [vmem:[#allocation2] sm:$0xff] 0.0
        $region76: #{tpu_custom_call.1} parent=47 // pred_fallthru
          _
        %v396 = vld [vmem:[#allocation2] sm:$0xff]
        %v397 = vld [vmem:[%s327] sm:$0xff]
        %v398 = vld [vmem:[%s327 + $0x8] sm:$0xff]
        %v399 = vld [vmem:[%s327 + $0x10] sm:$0xff]
        %v400 = vld [vmem:[%s327 + $0x18] sm:$0xff]
        %v401 = vld [vmem:[%s327 + $0x20] sm:$0xff]
        %v402 = vld [vmem:[%s327 + $0x28] sm:$0xff]
        %v403 = vld [vmem:[%s327 + $0x30] sm:$0xff]
        %v404 = vld [vmem:[%s327 + $0x38] sm:$0xff]
        %v405 = vld [vmem:[%s327 + $0x40] sm:$0xff]
        %v406 = vld [vmem:[%s327 + $0x48] sm:$0xff]
        %v407 = vld [vmem:[%s327 + $0x50] sm:$0xff]
        %v408 = vld [vmem:[%s327 + $0x58] sm:$0xff]
        %v409 = vld [vmem:[%s327 + $0x60] sm:$0xff]
        %v410 = vld [vmem:[%s327 + $0x68] sm:$0xff]
        %v411 = vld [vmem:[%s327 + $0x70] sm:$0xff]
        %v412 = vld [vmem:[%s327 + $0x78] sm:$0xff]
        %v413 = vld [vmem:[%s327 + $0x80] sm:$0xff]
        %v414 = vld [vmem:[%s327 + $0x88] sm:$0xff]
        %v415 = vld [vmem:[%s327 + $0x90] sm:$0xff]
        %v416 = vld [vmem:[%s327 + $0x98] sm:$0xff]
        %v417 = vld [vmem:[%s327 + $0xa0] sm:$0xff]
        %v418 = vld [vmem:[%s327 + $0xa8] sm:$0xff]
        %v419 = vld [vmem:[%s327 + $0xb0] sm:$0xff]
        %v420 = vld [vmem:[%s327 + $0xb8] sm:$0xff]
        %v421 = vld [vmem:[%s327 + $0xc0] sm:$0xff]
        %v422 = vld [vmem:[%s327 + $0xc8] sm:$0xff]
        %v423 = vld [vmem:[%s327 + $0xd0] sm:$0xff]
        %v424 = vld [vmem:[%s327 + $0xd8] sm:$0xff]
        %v425 = vld [vmem:[%s327 + $0xe0] sm:$0xff]
        %v426 = vld [vmem:[%s327 + $0xe8] sm:$0xff]
        %v427 = vld [vmem:[%s327 + $0xf0] sm:$0xff]
        %v428 = vld [vmem:[%s327 + $0xf8] sm:$0xff]
        %v429 = vld [vmem:[%s337] sm:$0xf]
        %v430 = vld [vmem:[%s337 + $0x4] sm:$0xf]
        %v431 = vld [vmem:[%s337 + $0x8] sm:$0xf]
        %v432 = vld [vmem:[%s337 + $0xc] sm:$0xf]
        %v433 = vld [vmem:[%s337 + $0x10] sm:$0xf]
        %v434 = vld [vmem:[%s337 + $0x14] sm:$0xf]
        %v435 = vld [vmem:[%s337 + $0x18] sm:$0xf]
        %v436 = vld [vmem:[%s337 + $0x1c] sm:$0xf]
        %v437 = vld [vmem:[%s337 + $0x20] sm:$0xf]
        %v438 = vld [vmem:[%s337 + $0x24] sm:$0xf]
        %v439 = vld [vmem:[%s337 + $0x28] sm:$0xf]
        %v440 = vld [vmem:[%s337 + $0x2c] sm:$0xf]
        %v441 = vld [vmem:[%s337 + $0x30] sm:$0xf]
        %v442 = vld [vmem:[%s337 + $0x34] sm:$0xf]
        %v443 = vld [vmem:[%s337 + $0x38] sm:$0xf]
        %v444 = vld [vmem:[%s337 + $0x3c] sm:$0xf]
        %v445 = vld [vmem:[%s337 + $0x40] sm:$0xf]
        %v446 = vld [vmem:[%s337 + $0x44] sm:$0xf]
        %v447 = vld [vmem:[%s337 + $0x48] sm:$0xf]
        %v448 = vld [vmem:[%s337 + $0x4c] sm:$0xf]
        %v449 = vld [vmem:[%s337 + $0x50] sm:$0xf]
        %v450 = vld [vmem:[%s337 + $0x54] sm:$0xf]
        %v451 = vld [vmem:[%s337 + $0x58] sm:$0xf]
        %v452 = vld [vmem:[%s337 + $0x5c] sm:$0xf]
        %v453 = vld [vmem:[%s337 + $0x60] sm:$0xf]
        %v454 = vld [vmem:[%s337 + $0x64] sm:$0xf]
        %v455 = vld [vmem:[%s337 + $0x68] sm:$0xf]
        %v456 = vld [vmem:[%s337 + $0x6c] sm:$0xf]
        %v457 = vld [vmem:[%s337 + $0x70] sm:$0xf]
        %v458 = vld [vmem:[%s337 + $0x74] sm:$0xf]
        %v459 = vld [vmem:[%s337 + $0x78] sm:$0xf]
        %v460 = vld [vmem:[%s337 + $0x7c] sm:$0xf]
        %v461 = vld [vmem:[%s337 + $0x80] sm:$0xf]
        %v462 = vld [vmem:[%s337 + $0x84] sm:$0xf]
        %v463 = vld [vmem:[%s337 + $0x88] sm:$0xf]
        %v464 = vld [vmem:[%s337 + $0x8c] sm:$0xf]
        %v465 = vld [vmem:[%s337 + $0x90] sm:$0xf]
        %v466 = vld [vmem:[%s337 + $0x94] sm:$0xf]
        %v467 = vld [vmem:[%s337 + $0x98] sm:$0xf]
        %v468 = vld [vmem:[%s337 + $0x9c] sm:$0xf]
        %v469 = vld [vmem:[%s337 + $0xa0] sm:$0xf]
        %v470 = vld [vmem:[%s337 + $0xa4] sm:$0xf]
        %v471 = vld [vmem:[%s337 + $0xa8] sm:$0xf]
        %v472 = vld [vmem:[%s337 + $0xac] sm:$0xf]
        %v473 = vld [vmem:[%s337 + $0xb0] sm:$0xf]
        %v474 = vld [vmem:[%s337 + $0xb4] sm:$0xf]
        %v475 = vld [vmem:[%s337 + $0xb8] sm:$0xf]
        %v476 = vld [vmem:[%s337 + $0xbc] sm:$0xf]
        %v477 = vld [vmem:[%s337 + $0xc0] sm:$0xf]
        %v478 = vld [vmem:[%s337 + $0xc4] sm:$0xf]
        %v479 = vld [vmem:[%s337 + $0xc8] sm:$0xf]
        %v480 = vld [vmem:[%s337 + $0xcc] sm:$0xf]
        %v481 = vld [vmem:[%s337 + $0xd0] sm:$0xf]
        %v482 = vld [vmem:[%s337 + $0xd4] sm:$0xf]
        %v483 = vld [vmem:[%s337 + $0xd8] sm:$0xf]
        %v484 = vld [vmem:[%s337 + $0xdc] sm:$0xf]
        %v485 = vld [vmem:[%s337 + $0xe0] sm:$0xf]
        %v486 = vld [vmem:[%s337 + $0xe4] sm:$0xf]
        %v487 = vld [vmem:[%s337 + $0xe8] sm:$0xf]
        %v488 = vld [vmem:[%s337 + $0xec] sm:$0xf]
        %v489 = vld [vmem:[%s337 + $0xf0] sm:$0xf]
        %v490 = vld [vmem:[%s337 + $0xf4] sm:$0xf]
        %v491 = vld [vmem:[%s337 + $0xf8] sm:$0xf]
        %v492 = vld [vmem:[%s337 + $0xfc] sm:$0xf]
        %v493 = vld [vmem:[%s337 + $0x100] sm:$0xf]
        %v494 = vld [vmem:[%s337 + $0x104] sm:$0xf]
        %v495 = vld [vmem:[%s337 + $0x108] sm:$0xf]
        %v496 = vld [vmem:[%s337 + $0x10c] sm:$0xf]
        %v497 = vld [vmem:[%s337 + $0x110] sm:$0xf]
        %v498 = vld [vmem:[%s337 + $0x114] sm:$0xf]
        %v499 = vld [vmem:[%s337 + $0x118] sm:$0xf]
        %v500 = vld [vmem:[%s337 + $0x11c] sm:$0xf]
        %v501 = vld [vmem:[%s337 + $0x120] sm:$0xf]
        %v502 = vld [vmem:[%s337 + $0x124] sm:$0xf]
        %v503 = vld [vmem:[%s337 + $0x128] sm:$0xf]
        %v504 = vld [vmem:[%s337 + $0x12c] sm:$0xf]
        %v505 = vld [vmem:[%s337 + $0x130] sm:$0xf]
        %v506 = vld [vmem:[%s337 + $0x134] sm:$0xf]
        %v507 = vld [vmem:[%s337 + $0x138] sm:$0xf]
        %v508 = vld [vmem:[%s337 + $0x13c] sm:$0xf]
        %v509 = vld [vmem:[%s337 + $0x140] sm:$0xf]
        %v510 = vld [vmem:[%s337 + $0x144] sm:$0xf]
        %v511 = vld [vmem:[%s337 + $0x148] sm:$0xf]
        %v512 = vld [vmem:[%s337 + $0x14c] sm:$0xf]
        %v513 = vld [vmem:[%s337 + $0x150] sm:$0xf]
        %v514 = vld [vmem:[%s337 + $0x154] sm:$0xf]
        %v515 = vld [vmem:[%s337 + $0x158] sm:$0xf]
        %v516 = vld [vmem:[%s337 + $0x15c] sm:$0xf]
        %v517 = vld [vmem:[%s337 + $0x160] sm:$0xf]
        %v518 = vld [vmem:[%s337 + $0x164] sm:$0xf]
        %v519 = vld [vmem:[%s337 + $0x168] sm:$0xf]
        %v520 = vld [vmem:[%s337 + $0x16c] sm:$0xf]
        %v521 = vld [vmem:[%s337 + $0x170] sm:$0xf]
        %v522 = vld [vmem:[%s337 + $0x174] sm:$0xf]
        %v523 = vld [vmem:[%s337 + $0x178] sm:$0xf]
        %v524 = vld [vmem:[%s337 + $0x17c] sm:$0xf]
        %v525 = vld [vmem:[%s337 + $0x180] sm:$0xf]
        %v526 = vld [vmem:[%s337 + $0x184] sm:$0xf]
        %v527 = vld [vmem:[%s337 + $0x188] sm:$0xf]
        %v528 = vld [vmem:[%s337 + $0x18c] sm:$0xf]
        %v529 = vld [vmem:[%s337 + $0x190] sm:$0xf]
        %v530 = vld [vmem:[%s337 + $0x194] sm:$0xf]
        %v531 = vld [vmem:[%s337 + $0x198] sm:$0xf]
        %v532 = vld [vmem:[%s337 + $0x19c] sm:$0xf]
        %v533 = vld [vmem:[%s337 + $0x1a0] sm:$0xf]
        %v534 = vld [vmem:[%s337 + $0x1a4] sm:$0xf]
        %v535 = vld [vmem:[%s337 + $0x1a8] sm:$0xf]
        %v536 = vld [vmem:[%s337 + $0x1ac] sm:$0xf]
        %v537 = vld [vmem:[%s337 + $0x1b0] sm:$0xf]
        %v538 = vld [vmem:[%s337 + $0x1b4] sm:$0xf]
        %v539 = vld [vmem:[%s337 + $0x1b8] sm:$0xf]
        %v540 = vld [vmem:[%s337 + $0x1bc] sm:$0xf]
        %v541 = vld [vmem:[%s337 + $0x1c0] sm:$0xf]
        %v542 = vld [vmem:[%s337 + $0x1c4] sm:$0xf]
        %v543 = vld [vmem:[%s337 + $0x1c8] sm:$0xf]
        %v544 = vld [vmem:[%s337 + $0x1cc] sm:$0xf]
        %v545 = vld [vmem:[%s337 + $0x1d0] sm:$0xf]
        %v546 = vld [vmem:[%s337 + $0x1d4] sm:$0xf]
        %v547 = vld [vmem:[%s337 + $0x1d8] sm:$0xf]
        %v548 = vld [vmem:[%s337 + $0x1dc] sm:$0xf]
        %v549 = vld [vmem:[%s337 + $0x1e0] sm:$0xf]
        %v550 = vld [vmem:[%s337 + $0x1e4] sm:$0xf]
        %v551 = vld [vmem:[%s337 + $0x1e8] sm:$0xf]
        %v552 = vld [vmem:[%s337 + $0x1ec] sm:$0xf]
        %v553 = vld [vmem:[%s337 + $0x1f0] sm:$0xf]
        %v554 = vld [vmem:[%s337 + $0x1f4] sm:$0xf]
        %v555 = vld [vmem:[%s337 + $0x1f8] sm:$0xf]
        %v556 = vld [vmem:[%s337 + $0x1fc] sm:$0xf]
        %v557 = vld [vmem:[%s337 + $0x200] sm:$0xf]
        %v558 = vld [vmem:[%s337 + $0x204] sm:$0xf]
        %v559 = vld [vmem:[%s337 + $0x208] sm:$0xf]
        %v560 = vld [vmem:[%s337 + $0x20c] sm:$0xf]
        %v561 = vld [vmem:[%s337 + $0x210] sm:$0xf]
        %v562 = vld [vmem:[%s337 + $0x214] sm:$0xf]
        %v563 = vld [vmem:[%s337 + $0x218] sm:$0xf]
        %v564 = vld [vmem:[%s337 + $0x21c] sm:$0xf]
        %v565 = vld [vmem:[%s337 + $0x220] sm:$0xf]
        %v566 = vld [vmem:[%s337 + $0x224] sm:$0xf]
        %v567 = vld [vmem:[%s337 + $0x228] sm:$0xf]
        %v568 = vld [vmem:[%s337 + $0x22c] sm:$0xf]
        %v569 = vld [vmem:[%s337 + $0x230] sm:$0xf]
        %v570 = vld [vmem:[%s337 + $0x234] sm:$0xf]
        %v571 = vld [vmem:[%s337 + $0x238] sm:$0xf]
        %v572 = vld [vmem:[%s337 + $0x23c] sm:$0xf]
        %v573 = vld [vmem:[%s337 + $0x240] sm:$0xf]
        %v574 = vld [vmem:[%s337 + $0x244] sm:$0xf]
        %v575 = vld [vmem:[%s337 + $0x248] sm:$0xf]
        %v576 = vld [vmem:[%s337 + $0x24c] sm:$0xf]
        %v577 = vld [vmem:[%s337 + $0x250] sm:$0xf]
        %v578 = vld [vmem:[%s337 + $0x254] sm:$0xf]
        %v579 = vld [vmem:[%s337 + $0x258] sm:$0xf]
        %v580 = vld [vmem:[%s337 + $0x25c] sm:$0xf]
        %v581 = vld [vmem:[%s337 + $0x260] sm:$0xf]
        %v582 = vld [vmem:[%s337 + $0x264] sm:$0xf]
        %v583 = vld [vmem:[%s337 + $0x268] sm:$0xf]
        %v584 = vld [vmem:[%s337 + $0x26c] sm:$0xf]
        %v585 = vld [vmem:[%s337 + $0x270] sm:$0xf]
        %v586 = vld [vmem:[%s337 + $0x274] sm:$0xf]
        %v587 = vld [vmem:[%s337 + $0x278] sm:$0xf]
        %v588 = vld [vmem:[%s337 + $0x27c] sm:$0xf]
        %v589 = vld [vmem:[%s337 + $0x280] sm:$0xf]
        %v590 = vld [vmem:[%s337 + $0x284] sm:$0xf]
        %v591 = vld [vmem:[%s337 + $0x288] sm:$0xf]
        %v592 = vld [vmem:[%s337 + $0x28c] sm:$0xf]
        %v593 = vld [vmem:[%s337 + $0x290] sm:$0xf]
        %v594 = vld [vmem:[%s337 + $0x294] sm:$0xf]
        %v595 = vld [vmem:[%s337 + $0x298] sm:$0xf]
        %v596 = vld [vmem:[%s337 + $0x29c] sm:$0xf]
        %v597 = vld [vmem:[%s337 + $0x2a0] sm:$0xf]
        %v598 = vld [vmem:[%s337 + $0x2a4] sm:$0xf]
        %v599 = vld [vmem:[%s337 + $0x2a8] sm:$0xf]
        %v600 = vld [vmem:[%s337 + $0x2ac] sm:$0xf]
        %v601 = vld [vmem:[%s337 + $0x2b0] sm:$0xf]
        %v602 = vld [vmem:[%s337 + $0x2b4] sm:$0xf]
        %v603 = vld [vmem:[%s337 + $0x2b8] sm:$0xf]
        %v604 = vld [vmem:[%s337 + $0x2bc] sm:$0xf]
        %v605 = vld [vmem:[%s337 + $0x2c0] sm:$0xf]
        %v606 = vld [vmem:[%s337 + $0x2c4] sm:$0xf]
        %v607 = vld [vmem:[%s337 + $0x2c8] sm:$0xf]
        %v608 = vld [vmem:[%s337 + $0x2cc] sm:$0xf]
        %v609 = vld [vmem:[%s337 + $0x2d0] sm:$0xf]
        %v610 = vld [vmem:[%s337 + $0x2d4] sm:$0xf]
        %v611 = vld [vmem:[%s337 + $0x2d8] sm:$0xf]
        %v612 = vld [vmem:[%s337 + $0x2dc] sm:$0xf]
        %v613 = vld [vmem:[%s337 + $0x2e0] sm:$0xf]
        %v614 = vld [vmem:[%s337 + $0x2e4] sm:$0xf]
        %v615 = vld [vmem:[%s337 + $0x2e8] sm:$0xf]
        %v616 = vld [vmem:[%s337 + $0x2ec] sm:$0xf]
        %v617 = vld [vmem:[%s337 + $0x2f0] sm:$0xf]
        %v618 = vld [vmem:[%s337 + $0x2f4] sm:$0xf]
        %v619 = vld [vmem:[%s337 + $0x2f8] sm:$0xf]
        %v620 = vld [vmem:[%s337 + $0x2fc] sm:$0xf]
        %v621 = vld [vmem:[%s337 + $0x300] sm:$0xf]
        %v622 = vld [vmem:[%s337 + $0x304] sm:$0xf]
        %v623 = vld [vmem:[%s337 + $0x308] sm:$0xf]
        %v624 = vld [vmem:[%s337 + $0x30c] sm:$0xf]
        %v625 = vld [vmem:[%s337 + $0x310] sm:$0xf]
        %v626 = vld [vmem:[%s337 + $0x314] sm:$0xf]
        %v627 = vld [vmem:[%s337 + $0x318] sm:$0xf]
        %v628 = vld [vmem:[%s337 + $0x31c] sm:$0xf]
        %v629 = vld [vmem:[%s337 + $0x320] sm:$0xf]
        %v630 = vld [vmem:[%s337 + $0x324] sm:$0xf]
        %v631 = vld [vmem:[%s337 + $0x328] sm:$0xf]
        %v632 = vld [vmem:[%s337 + $0x32c] sm:$0xf]
        %v633 = vld [vmem:[%s337 + $0x330] sm:$0xf]
        %v634 = vld [vmem:[%s337 + $0x334] sm:$0xf]
        %v635 = vld [vmem:[%s337 + $0x338] sm:$0xf]
        %v636 = vld [vmem:[%s337 + $0x33c] sm:$0xf]
        %v637 = vld [vmem:[%s337 + $0x340] sm:$0xf]
        %v638 = vld [vmem:[%s337 + $0x344] sm:$0xf]
        %v639 = vld [vmem:[%s337 + $0x348] sm:$0xf]
        %v640 = vld [vmem:[%s337 + $0x34c] sm:$0xf]
        %v641 = vld [vmem:[%s337 + $0x350] sm:$0xf]
        %v642 = vld [vmem:[%s337 + $0x354] sm:$0xf]
        %v643 = vld [vmem:[%s337 + $0x358] sm:$0xf]
        %v644 = vld [vmem:[%s337 + $0x35c] sm:$0xf]
        %v645 = vld [vmem:[%s337 + $0x360] sm:$0xf]
        %v646 = vld [vmem:[%s337 + $0x364] sm:$0xf]
        %v647 = vld [vmem:[%s337 + $0x368] sm:$0xf]
        %v648 = vld [vmem:[%s337 + $0x36c] sm:$0xf]
        %v649 = vld [vmem:[%s337 + $0x370] sm:$0xf]
        %v650 = vld [vmem:[%s337 + $0x374] sm:$0xf]
        %v651 = vld [vmem:[%s337 + $0x378] sm:$0xf]
        %v652 = vld [vmem:[%s337 + $0x37c] sm:$0xf]
        %v653 = vld [vmem:[%s337 + $0x380] sm:$0xf]
        %v654 = vld [vmem:[%s337 + $0x384] sm:$0xf]
        %v655 = vld [vmem:[%s337 + $0x388] sm:$0xf]
        %v656 = vld [vmem:[%s337 + $0x38c] sm:$0xf]
        %v657 = vld [vmem:[%s337 + $0x390] sm:$0xf]
        %v658 = vld [vmem:[%s337 + $0x394] sm:$0xf]
        %v659 = vld [vmem:[%s337 + $0x398] sm:$0xf]
        %v660 = vld [vmem:[%s337 + $0x39c] sm:$0xf]
        %v661 = vld [vmem:[%s337 + $0x3a0] sm:$0xf]
        %v662 = vld [vmem:[%s337 + $0x3a4] sm:$0xf]
        %v663 = vld [vmem:[%s337 + $0x3a8] sm:$0xf]
        %v664 = vld [vmem:[%s337 + $0x3ac] sm:$0xf]
        %v665 = vld [vmem:[%s337 + $0x3b0] sm:$0xf]
        %v666 = vld [vmem:[%s337 + $0x3b4] sm:$0xf]
        %v667 = vld [vmem:[%s337 + $0x3b8] sm:$0xf]
        %v668 = vld [vmem:[%s337 + $0x3bc] sm:$0xf]
        %v669 = vld [vmem:[%s337 + $0x3c0] sm:$0xf]
        %v670 = vld [vmem:[%s337 + $0x3c4] sm:$0xf]
        %v671 = vld [vmem:[%s337 + $0x3c8] sm:$0xf]
        %v672 = vld [vmem:[%s337 + $0x3cc] sm:$0xf]
        %v673 = vld [vmem:[%s337 + $0x3d0] sm:$0xf]
        %v674 = vld [vmem:[%s337 + $0x3d4] sm:$0xf]
        %v675 = vld [vmem:[%s337 + $0x3d8] sm:$0xf]
        %v676 = vld [vmem:[%s337 + $0x3dc] sm:$0xf]
        %v677 = vld [vmem:[%s337 + $0x3e0] sm:$0xf]
        %v678 = vld [vmem:[%s337 + $0x3e4] sm:$0xf]
        %v679 = vld [vmem:[%s337 + $0x3e8] sm:$0xf]
        %v680 = vld [vmem:[%s337 + $0x3ec] sm:$0xf]
        %v681 = vld [vmem:[%s337 + $0x3f0] sm:$0xf]
        %v682 = vld [vmem:[%s337 + $0x3f4] sm:$0xf]
        %v683 = vld [vmem:[%s337 + $0x3f8] sm:$0xf]
        %v684 = vld [vmem:[%s337 + $0x3fc] sm:$0xf]
        %v685 = vld [vmem:[%s337 + $0x400] sm:$0xf]
        %v686 = vld [vmem:[%s337 + $0x404] sm:$0xf]
        %v687 = vld [vmem:[%s337 + $0x408] sm:$0xf]
        %v688 = vld [vmem:[%s337 + $0x40c] sm:$0xf]
        %v689 = vld [vmem:[%s337 + $0x410] sm:$0xf]
        %v690 = vld [vmem:[%s337 + $0x414] sm:$0xf]
        %v691 = vld [vmem:[%s337 + $0x418] sm:$0xf]
        %v692 = vld [vmem:[%s337 + $0x41c] sm:$0xf]
        %v693 = vld [vmem:[%s337 + $0x420] sm:$0xf]
        %v694 = vld [vmem:[%s337 + $0x424] sm:$0xf]
        %v695 = vld [vmem:[%s337 + $0x428] sm:$0xf]
        %v696 = vld [vmem:[%s337 + $0x42c] sm:$0xf]
        %v697 = vld [vmem:[%s337 + $0x430] sm:$0xf]
        %v698 = vld [vmem:[%s337 + $0x434] sm:$0xf]
        %v699 = vld [vmem:[%s337 + $0x438] sm:$0xf]
        %v700 = vld [vmem:[%s337 + $0x43c] sm:$0xf]
        %v701 = vld [vmem:[%s337 + $0x440] sm:$0xf]
        %v702 = vld [vmem:[%s337 + $0x444] sm:$0xf]
        %v703 = vld [vmem:[%s337 + $0x448] sm:$0xf]
        %v704 = vld [vmem:[%s337 + $0x44c] sm:$0xf]
        %v705 = vld [vmem:[%s337 + $0x450] sm:$0xf]
        %v706 = vld [vmem:[%s337 + $0x454] sm:$0xf]
        %v707 = vld [vmem:[%s337 + $0x458] sm:$0xf]
        %v708 = vld [vmem:[%s337 + $0x45c] sm:$0xf]
        %v709 = vld [vmem:[%s337 + $0x460] sm:$0xf]
        %v710 = vld [vmem:[%s337 + $0x464] sm:$0xf]
        %v711 = vld [vmem:[%s337 + $0x468] sm:$0xf]
        %v712 = vld [vmem:[%s337 + $0x46c] sm:$0xf]
        %v713 = vld [vmem:[%s337 + $0x470] sm:$0xf]
        %v714 = vld [vmem:[%s337 + $0x474] sm:$0xf]
        %v715 = vld [vmem:[%s337 + $0x478] sm:$0xf]
        %v716 = vld [vmem:[%s337 + $0x47c] sm:$0xf]
        %v717 = vld [vmem:[%s337 + $0x480] sm:$0xf]
        %v718 = vld [vmem:[%s337 + $0x484] sm:$0xf]
        %v719 = vld [vmem:[%s337 + $0x488] sm:$0xf]
        %v720 = vld [vmem:[%s337 + $0x48c] sm:$0xf]
        %v721 = vld [vmem:[%s337 + $0x490] sm:$0xf]
        %v722 = vld [vmem:[%s337 + $0x494] sm:$0xf]
        %v723 = vld [vmem:[%s337 + $0x498] sm:$0xf]
        %v724 = vld [vmem:[%s337 + $0x49c] sm:$0xf]
        %v725 = vld [vmem:[%s337 + $0x4a0] sm:$0xf]
        %v726 = vld [vmem:[%s337 + $0x4a4] sm:$0xf]
        %v727 = vld [vmem:[%s337 + $0x4a8] sm:$0xf]
        %v728 = vld [vmem:[%s337 + $0x4ac] sm:$0xf]
        %v729 = vld [vmem:[%s337 + $0x4b0] sm:$0xf]
        %v730 = vld [vmem:[%s337 + $0x4b4] sm:$0xf]
        %v731 = vld [vmem:[%s337 + $0x4b8] sm:$0xf]
        %v732 = vld [vmem:[%s337 + $0x4bc] sm:$0xf]
        %v733 = vld [vmem:[%s337 + $0x4c0] sm:$0xf]
        %v734 = vld [vmem:[%s337 + $0x4c4] sm:$0xf]
        %v735 = vld [vmem:[%s337 + $0x4c8] sm:$0xf]
        %v736 = vld [vmem:[%s337 + $0x4cc] sm:$0xf]
        %v737 = vld [vmem:[%s337 + $0x4d0] sm:$0xf]
        %v738 = vld [vmem:[%s337 + $0x4d4] sm:$0xf]
        %v739 = vld [vmem:[%s337 + $0x4d8] sm:$0xf]
        %v740 = vld [vmem:[%s337 + $0x4dc] sm:$0xf]
        %v741 = vld [vmem:[%s337 + $0x4e0] sm:$0xf]
        %v742 = vld [vmem:[%s337 + $0x4e4] sm:$0xf]
        %v743 = vld [vmem:[%s337 + $0x4e8] sm:$0xf]
        %v744 = vld [vmem:[%s337 + $0x4ec] sm:$0xf]
        %v745 = vld [vmem:[%s337 + $0x4f0] sm:$0xf]
        %v746 = vld [vmem:[%s337 + $0x4f4] sm:$0xf]
        %v747 = vld [vmem:[%s337 + $0x4f8] sm:$0xf]
        %v748 = vld [vmem:[%s337 + $0x4fc] sm:$0xf]
        %v749 = vld [vmem:[%s337 + $0x500] sm:$0xf]
        %v750 = vld [vmem:[%s337 + $0x504] sm:$0xf]
        %v751 = vld [vmem:[%s337 + $0x508] sm:$0xf]
        %v752 = vld [vmem:[%s337 + $0x50c] sm:$0xf]
        %v753 = vld [vmem:[%s337 + $0x510] sm:$0xf]
        %v754 = vld [vmem:[%s337 + $0x514] sm:$0xf]
        %v755 = vld [vmem:[%s337 + $0x518] sm:$0xf]
        %v756 = vld [vmem:[%s337 + $0x51c] sm:$0xf]
        %v757 = vld [vmem:[%s337 + $0x520] sm:$0xf]
        %v758 = vld [vmem:[%s337 + $0x524] sm:$0xf]
        %v759 = vld [vmem:[%s337 + $0x528] sm:$0xf]
        %v760 = vld [vmem:[%s337 + $0x52c] sm:$0xf]
        %v761 = vld [vmem:[%s337 + $0x530] sm:$0xf]
        %v762 = vld [vmem:[%s337 + $0x534] sm:$0xf]
        %v763 = vld [vmem:[%s337 + $0x538] sm:$0xf]
        %v764 = vld [vmem:[%s337 + $0x53c] sm:$0xf]
        %v765 = vld [vmem:[%s337 + $0x540] sm:$0xf]
        %v766 = vld [vmem:[%s337 + $0x544] sm:$0xf]
        %v767 = vld [vmem:[%s337 + $0x548] sm:$0xf]
        %v768 = vld [vmem:[%s337 + $0x54c] sm:$0xf]
        %v769 = vld [vmem:[%s337 + $0x550] sm:$0xf]
        %v770 = vld [vmem:[%s337 + $0x554] sm:$0xf]
        %v771 = vld [vmem:[%s337 + $0x558] sm:$0xf]
        %v772 = vld [vmem:[%s337 + $0x55c] sm:$0xf]
        %v773 = vld [vmem:[%s337 + $0x560] sm:$0xf]
        %v774 = vld [vmem:[%s337 + $0x564] sm:$0xf]
        %v775 = vld [vmem:[%s337 + $0x568] sm:$0xf]
        %v776 = vld [vmem:[%s337 + $0x56c] sm:$0xf]
        %v777 = vld [vmem:[%s337 + $0x570] sm:$0xf]
        %v778 = vld [vmem:[%s337 + $0x574] sm:$0xf]
        %v779 = vld [vmem:[%s337 + $0x578] sm:$0xf]
        %v780 = vld [vmem:[%s337 + $0x57c] sm:$0xf]
        %v781 = vld [vmem:[%s337 + $0x580] sm:$0xf]
        %v782 = vld [vmem:[%s337 + $0x584] sm:$0xf]
        %v783 = vld [vmem:[%s337 + $0x588] sm:$0xf]
        %v784 = vld [vmem:[%s337 + $0x58c] sm:$0xf]
        %v785 = vld [vmem:[%s337 + $0x590] sm:$0xf]
        %v786 = vld [vmem:[%s337 + $0x594] sm:$0xf]
        %v787 = vld [vmem:[%s337 + $0x598] sm:$0xf]
        %v788 = vld [vmem:[%s337 + $0x59c] sm:$0xf]
        %v789 = vld [vmem:[%s337 + $0x5a0] sm:$0xf]
        %v790 = vld [vmem:[%s337 + $0x5a4] sm:$0xf]
        %v791 = vld [vmem:[%s337 + $0x5a8] sm:$0xf]
        %v792 = vld [vmem:[%s337 + $0x5ac] sm:$0xf]
        %v793 = vld [vmem:[%s337 + $0x5b0] sm:$0xf]
        %v794 = vld [vmem:[%s337 + $0x5b4] sm:$0xf]
        %v795 = vld [vmem:[%s337 + $0x5b8] sm:$0xf]
        %v796 = vld [vmem:[%s337 + $0x5bc] sm:$0xf]
        %v797 = vld [vmem:[%s337 + $0x5c0] sm:$0xf]
        %v798 = vld [vmem:[%s337 + $0x5c4] sm:$0xf]
        %v799 = vld [vmem:[%s337 + $0x5c8] sm:$0xf]
        %v800 = vld [vmem:[%s337 + $0x5cc] sm:$0xf]
        %v801 = vld [vmem:[%s337 + $0x5d0] sm:$0xf]
        %v802 = vld [vmem:[%s337 + $0x5d4] sm:$0xf]
        %v803 = vld [vmem:[%s337 + $0x5d8] sm:$0xf]
        %v804 = vld [vmem:[%s337 + $0x5dc] sm:$0xf]
        %v805 = vld [vmem:[%s337 + $0x5e0] sm:$0xf]
        %v806 = vld [vmem:[%s337 + $0x5e4] sm:$0xf]
        %v807 = vld [vmem:[%s337 + $0x5e8] sm:$0xf]
        %v808 = vld [vmem:[%s337 + $0x5ec] sm:$0xf]
        %v809 = vld [vmem:[%s337 + $0x5f0] sm:$0xf]
        %v810 = vld [vmem:[%s337 + $0x5f4] sm:$0xf]
        %v811 = vld [vmem:[%s337 + $0x5f8] sm:$0xf]
        %v812 = vld [vmem:[%s337 + $0x5fc] sm:$0xf]
        %v813 = vld [vmem:[%s337 + $0x600] sm:$0xf]
        %v814 = vld [vmem:[%s337 + $0x604] sm:$0xf]
        %v815 = vld [vmem:[%s337 + $0x608] sm:$0xf]
        %v816 = vld [vmem:[%s337 + $0x60c] sm:$0xf]
        %v817 = vld [vmem:[%s337 + $0x610] sm:$0xf]
        %v818 = vld [vmem:[%s337 + $0x614] sm:$0xf]
        %v819 = vld [vmem:[%s337 + $0x618] sm:$0xf]
        %v820 = vld [vmem:[%s337 + $0x61c] sm:$0xf]
        %v821 = vld [vmem:[%s337 + $0x620] sm:$0xf]
        %v822 = vld [vmem:[%s337 + $0x624] sm:$0xf]
        %v823 = vld [vmem:[%s337 + $0x628] sm:$0xf]
        %v824 = vld [vmem:[%s337 + $0x62c] sm:$0xf]
        %v825 = vld [vmem:[%s337 + $0x630] sm:$0xf]
        %v826 = vld [vmem:[%s337 + $0x634] sm:$0xf]
        %v827 = vld [vmem:[%s337 + $0x638] sm:$0xf]
        %v828 = vld [vmem:[%s337 + $0x63c] sm:$0xf]
        %v829 = vld [vmem:[%s337 + $0x640] sm:$0xf]
        %v830 = vld [vmem:[%s337 + $0x644] sm:$0xf]
        %v831 = vld [vmem:[%s337 + $0x648] sm:$0xf]
        %v832 = vld [vmem:[%s337 + $0x64c] sm:$0xf]
        %v833 = vld [vmem:[%s337 + $0x650] sm:$0xf]
        %v834 = vld [vmem:[%s337 + $0x654] sm:$0xf]
        %v835 = vld [vmem:[%s337 + $0x658] sm:$0xf]
        %v836 = vld [vmem:[%s337 + $0x65c] sm:$0xf]
        %v837 = vld [vmem:[%s337 + $0x660] sm:$0xf]
        %v838 = vld [vmem:[%s337 + $0x664] sm:$0xf]
        %v839 = vld [vmem:[%s337 + $0x668] sm:$0xf]
        %v840 = vld [vmem:[%s337 + $0x66c] sm:$0xf]
        %v841 = vld [vmem:[%s337 + $0x670] sm:$0xf]
        %v842 = vld [vmem:[%s337 + $0x674] sm:$0xf]
        %v843 = vld [vmem:[%s337 + $0x678] sm:$0xf]
        %v844 = vld [vmem:[%s337 + $0x67c] sm:$0xf]
        %v845 = vld [vmem:[%s337 + $0x680] sm:$0xf]
        %v846 = vld [vmem:[%s337 + $0x684] sm:$0xf]
        %v847 = vld [vmem:[%s337 + $0x688] sm:$0xf]
        %v848 = vld [vmem:[%s337 + $0x68c] sm:$0xf]
        %v849 = vld [vmem:[%s337 + $0x690] sm:$0xf]
        %v850 = vld [vmem:[%s337 + $0x694] sm:$0xf]
        %v851 = vld [vmem:[%s337 + $0x698] sm:$0xf]
        %v852 = vld [vmem:[%s337 + $0x69c] sm:$0xf]
        %v853 = vld [vmem:[%s337 + $0x6a0] sm:$0xf]
        %v854 = vld [vmem:[%s337 + $0x6a4] sm:$0xf]
        %v855 = vld [vmem:[%s337 + $0x6a8] sm:$0xf]
        %v856 = vld [vmem:[%s337 + $0x6ac] sm:$0xf]
        %v857 = vld [vmem:[%s337 + $0x6b0] sm:$0xf]
        %v858 = vld [vmem:[%s337 + $0x6b4] sm:$0xf]
        %v859 = vld [vmem:[%s337 + $0x6b8] sm:$0xf]
        %v860 = vld [vmem:[%s337 + $0x6bc] sm:$0xf]
        %v861 = vld [vmem:[%s337 + $0x6c0] sm:$0xf]
        %v862 = vld [vmem:[%s337 + $0x6c4] sm:$0xf]
        %v863 = vld [vmem:[%s337 + $0x6c8] sm:$0xf]
        %v864 = vld [vmem:[%s337 + $0x6cc] sm:$0xf]
        %v865 = vld [vmem:[%s337 + $0x6d0] sm:$0xf]
        %v866 = vld [vmem:[%s337 + $0x6d4] sm:$0xf]
        %v867 = vld [vmem:[%s337 + $0x6d8] sm:$0xf]
        %v868 = vld [vmem:[%s337 + $0x6dc] sm:$0xf]
        %v869 = vld [vmem:[%s337 + $0x6e0] sm:$0xf]
        %v870 = vld [vmem:[%s337 + $0x6e4] sm:$0xf]
        %v871 = vld [vmem:[%s337 + $0x6e8] sm:$0xf]
        %v872 = vld [vmem:[%s337 + $0x6ec] sm:$0xf]
        %v873 = vld [vmem:[%s337 + $0x6f0] sm:$0xf]
        %v874 = vld [vmem:[%s337 + $0x6f4] sm:$0xf]
        %v875 = vld [vmem:[%s337 + $0x6f8] sm:$0xf]
        %v876 = vld [vmem:[%s337 + $0x6fc] sm:$0xf]
        %v877 = vld [vmem:[%s337 + $0x700] sm:$0xf]
        %v878 = vld [vmem:[%s337 + $0x704] sm:$0xf]
        %v879 = vld [vmem:[%s337 + $0x708] sm:$0xf]
        %v880 = vld [vmem:[%s337 + $0x70c] sm:$0xf]
        %v881 = vld [vmem:[%s337 + $0x710] sm:$0xf]
        %v882 = vld [vmem:[%s337 + $0x714] sm:$0xf]
        %v883 = vld [vmem:[%s337 + $0x718] sm:$0xf]
        %v884 = vld [vmem:[%s337 + $0x71c] sm:$0xf]
        %v885 = vld [vmem:[%s337 + $0x720] sm:$0xf]
        %v886 = vld [vmem:[%s337 + $0x724] sm:$0xf]
        %v887 = vld [vmem:[%s337 + $0x728] sm:$0xf]
        %v888 = vld [vmem:[%s337 + $0x72c] sm:$0xf]
        %v889 = vld [vmem:[%s337 + $0x730] sm:$0xf]
        %v890 = vld [vmem:[%s337 + $0x734] sm:$0xf]
        %v891 = vld [vmem:[%s337 + $0x738] sm:$0xf]
        %v892 = vld [vmem:[%s337 + $0x73c] sm:$0xf]
        %v893 = vld [vmem:[%s337 + $0x740] sm:$0xf]
        %v894 = vld [vmem:[%s337 + $0x744] sm:$0xf]
        %v895 = vld [vmem:[%s337 + $0x748] sm:$0xf]
        %v896 = vld [vmem:[%s337 + $0x74c] sm:$0xf]
        %v897 = vld [vmem:[%s337 + $0x750] sm:$0xf]
        %v898 = vld [vmem:[%s337 + $0x754] sm:$0xf]
        %v899 = vld [vmem:[%s337 + $0x758] sm:$0xf]
        %v900 = vld [vmem:[%s337 + $0x75c] sm:$0xf]
        %v901 = vld [vmem:[%s337 + $0x760] sm:$0xf]
        %v902 = vld [vmem:[%s337 + $0x764] sm:$0xf]
        %v903 = vld [vmem:[%s337 + $0x768] sm:$0xf]
        %v904 = vld [vmem:[%s337 + $0x76c] sm:$0xf]
        %v905 = vld [vmem:[%s337 + $0x770] sm:$0xf]
        %v906 = vld [vmem:[%s337 + $0x774] sm:$0xf]
        %v907 = vld [vmem:[%s337 + $0x778] sm:$0xf]
        %v908 = vld [vmem:[%s337 + $0x77c] sm:$0xf]
        %v909 = vld [vmem:[%s337 + $0x780] sm:$0xf]
        %v910 = vld [vmem:[%s337 + $0x784] sm:$0xf]
        %v911 = vld [vmem:[%s337 + $0x788] sm:$0xf]
        %v912 = vld [vmem:[%s337 + $0x78c] sm:$0xf]
        %v913 = vld [vmem:[%s337 + $0x790] sm:$0xf]
        %v914 = vld [vmem:[%s337 + $0x794] sm:$0xf]
        %v915 = vld [vmem:[%s337 + $0x798] sm:$0xf]
        %v916 = vld [vmem:[%s337 + $0x79c] sm:$0xf]
        %v917 = vld [vmem:[%s337 + $0x7a0] sm:$0xf]
        %v918 = vld [vmem:[%s337 + $0x7a4] sm:$0xf]
        %v919 = vld [vmem:[%s337 + $0x7a8] sm:$0xf]
        %v920 = vld [vmem:[%s337 + $0x7ac] sm:$0xf]
        %v921 = vld [vmem:[%s337 + $0x7b0] sm:$0xf]
        %v922 = vld [vmem:[%s337 + $0x7b4] sm:$0xf]
        %v923 = vld [vmem:[%s337 + $0x7b8] sm:$0xf]
        %v924 = vld [vmem:[%s337 + $0x7bc] sm:$0xf]
        %v925 = vld [vmem:[%s337 + $0x7c0] sm:$0xf]
        %v926 = vld [vmem:[%s337 + $0x7c4] sm:$0xf]
        %v927 = vld [vmem:[%s337 + $0x7c8] sm:$0xf]
        %v928 = vld [vmem:[%s337 + $0x7cc] sm:$0xf]
        %v929 = vld [vmem:[%s337 + $0x7d0] sm:$0xf]
        %v930 = vld [vmem:[%s337 + $0x7d4] sm:$0xf]
        %v931 = vld [vmem:[%s337 + $0x7d8] sm:$0xf]
        %v932 = vld [vmem:[%s337 + $0x7dc] sm:$0xf]
        %v933 = vld [vmem:[%s337 + $0x7e0] sm:$0xf]
        %v934 = vld [vmem:[%s337 + $0x7e4] sm:$0xf]
        %v935 = vld [vmem:[%s337 + $0x7e8] sm:$0xf]
        %v936 = vld [vmem:[%s337 + $0x7ec] sm:$0xf]
        %v937 = vld [vmem:[%s337 + $0x7f0] sm:$0xf]
        %v938 = vld [vmem:[%s337 + $0x7f4] sm:$0xf]
        %v939 = vld [vmem:[%s337 + $0x7f8] sm:$0xf]
        %v940 = vld [vmem:[%s337 + $0x7fc] sm:$0xf]
        %v941 = vld [vmem:[%s337 + $0x800] sm:$0xf]
        %v942 = vld [vmem:[%s337 + $0x804] sm:$0xf]
        %v943 = vld [vmem:[%s337 + $0x808] sm:$0xf]
        %v944 = vld [vmem:[%s337 + $0x80c] sm:$0xf]
        %v945 = vld [vmem:[%s337 + $0x810] sm:$0xf]
        %v946 = vld [vmem:[%s337 + $0x814] sm:$0xf]
        %v947 = vld [vmem:[%s337 + $0x818] sm:$0xf]
        %v948 = vld [vmem:[%s337 + $0x81c] sm:$0xf]
        %v949 = vld [vmem:[%s337 + $0x820] sm:$0xf]
        %v950 = vld [vmem:[%s337 + $0x824] sm:$0xf]
        %v951 = vld [vmem:[%s337 + $0x828] sm:$0xf]
        %v952 = vld [vmem:[%s337 + $0x82c] sm:$0xf]
        %v953 = vld [vmem:[%s337 + $0x830] sm:$0xf]
        %v954 = vld [vmem:[%s337 + $0x834] sm:$0xf]
        %v955 = vld [vmem:[%s337 + $0x838] sm:$0xf]
        %v956 = vld [vmem:[%s337 + $0x83c] sm:$0xf]
        %v957 = vld [vmem:[%s337 + $0x840] sm:$0xf]
        %v958 = vld [vmem:[%s337 + $0x844] sm:$0xf]
        %v959 = vld [vmem:[%s337 + $0x848] sm:$0xf]
        %v960 = vld [vmem:[%s337 + $0x84c] sm:$0xf]
        %v961 = vld [vmem:[%s337 + $0x850] sm:$0xf]
        %v962 = vld [vmem:[%s337 + $0x854] sm:$0xf]
        %v963 = vld [vmem:[%s337 + $0x858] sm:$0xf]
        %v964 = vld [vmem:[%s337 + $0x85c] sm:$0xf]
        %v965 = vld [vmem:[%s337 + $0x860] sm:$0xf]
        %v966 = vld [vmem:[%s337 + $0x864] sm:$0xf]
        %v967 = vld [vmem:[%s337 + $0x868] sm:$0xf]
        %v968 = vld [vmem:[%s337 + $0x86c] sm:$0xf]
        %v969 = vld [vmem:[%s337 + $0x870] sm:$0xf]
        %v970 = vld [vmem:[%s337 + $0x874] sm:$0xf]
        %v971 = vld [vmem:[%s337 + $0x878] sm:$0xf]
        %v972 = vld [vmem:[%s337 + $0x87c] sm:$0xf]
        %v973 = vld [vmem:[%s337 + $0x880] sm:$0xf]
        %v974 = vld [vmem:[%s337 + $0x884] sm:$0xf]
        %v975 = vld [vmem:[%s337 + $0x888] sm:$0xf]
        %v976 = vld [vmem:[%s337 + $0x88c] sm:$0xf]
        %v977 = vld [vmem:[%s337 + $0x890] sm:$0xf]
        %v978 = vld [vmem:[%s337 + $0x894] sm:$0xf]
        %v979 = vld [vmem:[%s337 + $0x898] sm:$0xf]
        %v980 = vld [vmem:[%s337 + $0x89c] sm:$0xf]
        %v981 = vld [vmem:[%s337 + $0x8a0] sm:$0xf]
        %v982 = vld [vmem:[%s337 + $0x8a4] sm:$0xf]
        %v983 = vld [vmem:[%s337 + $0x8a8] sm:$0xf]
        %v984 = vld [vmem:[%s337 + $0x8ac] sm:$0xf]
        %v985 = vld [vmem:[%s337 + $0x8b0] sm:$0xf]
        %v986 = vld [vmem:[%s337 + $0x8b4] sm:$0xf]
        %v987 = vld [vmem:[%s337 + $0x8b8] sm:$0xf]
        %v988 = vld [vmem:[%s337 + $0x8bc] sm:$0xf]
        %v989 = vld [vmem:[%s337 + $0x8c0] sm:$0xf]
        %v990 = vld [vmem:[%s337 + $0x8c4] sm:$0xf]
        %v991 = vld [vmem:[%s337 + $0x8c8] sm:$0xf]
        %v992 = vld [vmem:[%s337 + $0x8cc] sm:$0xf]
        %v993 = vld [vmem:[%s337 + $0x8d0] sm:$0xf]
        %v994 = vld [vmem:[%s337 + $0x8d4] sm:$0xf]
        %v995 = vld [vmem:[%s337 + $0x8d8] sm:$0xf]
        %v996 = vld [vmem:[%s337 + $0x8dc] sm:$0xf]
        %v997 = vld [vmem:[%s337 + $0x8e0] sm:$0xf]
        %v998 = vld [vmem:[%s337 + $0x8e4] sm:$0xf]
        %v999 = vld [vmem:[%s337 + $0x8e8] sm:$0xf]
        %v1000 = vld [vmem:[%s337 + $0x8ec] sm:$0xf]
        %v1001 = vld [vmem:[%s337 + $0x8f0] sm:$0xf]
        %v1002 = vld [vmem:[%s337 + $0x8f4] sm:$0xf]
        %v1003 = vld [vmem:[%s337 + $0x8f8] sm:$0xf]
        %v1004 = vld [vmem:[%s337 + $0x8fc] sm:$0xf]
        %v1005 = vld [vmem:[%s337 + $0x900] sm:$0xf]
        %v1006 = vld [vmem:[%s337 + $0x904] sm:$0xf]
        %v1007 = vld [vmem:[%s337 + $0x908] sm:$0xf]
        %v1008 = vld [vmem:[%s337 + $0x90c] sm:$0xf]
        %v1009 = vld [vmem:[%s337 + $0x910] sm:$0xf]
        %v1010 = vld [vmem:[%s337 + $0x914] sm:$0xf]
        %v1011 = vld [vmem:[%s337 + $0x918] sm:$0xf]
        %v1012 = vld [vmem:[%s337 + $0x91c] sm:$0xf]
        %v1013 = vld [vmem:[%s337 + $0x920] sm:$0xf]
        %v1014 = vld [vmem:[%s337 + $0x924] sm:$0xf]
        %v1015 = vld [vmem:[%s337 + $0x928] sm:$0xf]
        %v1016 = vld [vmem:[%s337 + $0x92c] sm:$0xf]
        %v1017 = vld [vmem:[%s337 + $0x930] sm:$0xf]
        %v1018 = vld [vmem:[%s337 + $0x934] sm:$0xf]
        %v1019 = vld [vmem:[%s337 + $0x938] sm:$0xf]
        %v1020 = vld [vmem:[%s337 + $0x93c] sm:$0xf]
        %v1021 = vld [vmem:[%s337 + $0x940] sm:$0xf]
        %v1022 = vld [vmem:[%s337 + $0x944] sm:$0xf]
        %v1023 = vld [vmem:[%s337 + $0x948] sm:$0xf]
        %v1024 = vld [vmem:[%s337 + $0x94c] sm:$0xf]
        %v1025 = vld [vmem:[%s337 + $0x950] sm:$0xf]
        %v1026 = vld [vmem:[%s337 + $0x954] sm:$0xf]
        %v1027 = vld [vmem:[%s337 + $0x958] sm:$0xf]
        %v1028 = vld [vmem:[%s337 + $0x95c] sm:$0xf]
        %v1029 = vld [vmem:[%s337 + $0x960] sm:$0xf]
        %v1030 = vld [vmem:[%s337 + $0x964] sm:$0xf]
        %v1031 = vld [vmem:[%s337 + $0x968] sm:$0xf]
        %v1032 = vld [vmem:[%s337 + $0x96c] sm:$0xf]
        %v1033 = vld [vmem:[%s337 + $0x970] sm:$0xf]
        %v1034 = vld [vmem:[%s337 + $0x974] sm:$0xf]
        %v1035 = vld [vmem:[%s337 + $0x978] sm:$0xf]
        %v1036 = vld [vmem:[%s337 + $0x97c] sm:$0xf]
        %v1037 = vld [vmem:[%s337 + $0x980] sm:$0xf]
        %v1038 = vld [vmem:[%s337 + $0x984] sm:$0xf]
        %v1039 = vld [vmem:[%s337 + $0x988] sm:$0xf]
        %v1040 = vld [vmem:[%s337 + $0x98c] sm:$0xf]
        %v1041 = vld [vmem:[%s337 + $0x990] sm:$0xf]
        %v1042 = vld [vmem:[%s337 + $0x994] sm:$0xf]
        %v1043 = vld [vmem:[%s337 + $0x998] sm:$0xf]
        %v1044 = vld [vmem:[%s337 + $0x99c] sm:$0xf]
        %v1045 = vld [vmem:[%s337 + $0x9a0] sm:$0xf]
        %v1046 = vld [vmem:[%s337 + $0x9a4] sm:$0xf]
        %v1047 = vld [vmem:[%s337 + $0x9a8] sm:$0xf]
        %v1048 = vld [vmem:[%s337 + $0x9ac] sm:$0xf]
        %v1049 = vld [vmem:[%s337 + $0x9b0] sm:$0xf]
        %v1050 = vld [vmem:[%s337 + $0x9b4] sm:$0xf]
        %v1051 = vld [vmem:[%s337 + $0x9b8] sm:$0xf]
        %v1052 = vld [vmem:[%s337 + $0x9bc] sm:$0xf]
        %v1053 = vld [vmem:[%s337 + $0x9c0] sm:$0xf]
        %v1054 = vld [vmem:[%s337 + $0x9c4] sm:$0xf]
        %v1055 = vld [vmem:[%s337 + $0x9c8] sm:$0xf]
        %v1056 = vld [vmem:[%s337 + $0x9cc] sm:$0xf]
        %v1057 = vld [vmem:[%s337 + $0x9d0] sm:$0xf]
        %v1058 = vld [vmem:[%s337 + $0x9d4] sm:$0xf]
        %v1059 = vld [vmem:[%s337 + $0x9d8] sm:$0xf]
        %v1060 = vld [vmem:[%s337 + $0x9dc] sm:$0xf]
        %v1061 = vld [vmem:[%s337 + $0x9e0] sm:$0xf]
        %v1062 = vld [vmem:[%s337 + $0x9e4] sm:$0xf]
        %v1063 = vld [vmem:[%s337 + $0x9e8] sm:$0xf]
        %v1064 = vld [vmem:[%s337 + $0x9ec] sm:$0xf]
        %v1065 = vld [vmem:[%s337 + $0x9f0] sm:$0xf]
        %v1066 = vld [vmem:[%s337 + $0x9f4] sm:$0xf]
        %v1067 = vld [vmem:[%s337 + $0x9f8] sm:$0xf]
        %v1068 = vld [vmem:[%s337 + $0x9fc] sm:$0xf]
        %v1069 = vld [vmem:[%s337 + $0xa00] sm:$0xf]
        %v1070 = vld [vmem:[%s337 + $0xa04] sm:$0xf]
        %v1071 = vld [vmem:[%s337 + $0xa08] sm:$0xf]
        %v1072 = vld [vmem:[%s337 + $0xa0c] sm:$0xf]
        %v1073 = vld [vmem:[%s337 + $0xa10] sm:$0xf]
        %v1074 = vld [vmem:[%s337 + $0xa14] sm:$0xf]
        %v1075 = vld [vmem:[%s337 + $0xa18] sm:$0xf]
        %v1076 = vld [vmem:[%s337 + $0xa1c] sm:$0xf]
        %v1077 = vld [vmem:[%s337 + $0xa20] sm:$0xf]
        %v1078 = vld [vmem:[%s337 + $0xa24] sm:$0xf]
        %v1079 = vld [vmem:[%s337 + $0xa28] sm:$0xf]
        %v1080 = vld [vmem:[%s337 + $0xa2c] sm:$0xf]
        %v1081 = vld [vmem:[%s337 + $0xa30] sm:$0xf]
        %v1082 = vld [vmem:[%s337 + $0xa34] sm:$0xf]
        %v1083 = vld [vmem:[%s337 + $0xa38] sm:$0xf]
        %v1084 = vld [vmem:[%s337 + $0xa3c] sm:$0xf]
        %v1085 = vld [vmem:[%s337 + $0xa40] sm:$0xf]
        %v1086 = vld [vmem:[%s337 + $0xa44] sm:$0xf]
        %v1087 = vld [vmem:[%s337 + $0xa48] sm:$0xf]
        %v1088 = vld [vmem:[%s337 + $0xa4c] sm:$0xf]
        %v1089 = vld [vmem:[%s337 + $0xa50] sm:$0xf]
        %v1090 = vld [vmem:[%s337 + $0xa54] sm:$0xf]
        %v1091 = vld [vmem:[%s337 + $0xa58] sm:$0xf]
        %v1092 = vld [vmem:[%s337 + $0xa5c] sm:$0xf]
        %v1093 = vld [vmem:[%s337 + $0xa60] sm:$0xf]
        %v1094 = vld [vmem:[%s337 + $0xa64] sm:$0xf]
        %v1095 = vld [vmem:[%s337 + $0xa68] sm:$0xf]
        %v1096 = vld [vmem:[%s337 + $0xa6c] sm:$0xf]
        %v1097 = vld [vmem:[%s337 + $0xa70] sm:$0xf]
        %v1098 = vld [vmem:[%s337 + $0xa74] sm:$0xf]
        %v1099 = vld [vmem:[%s337 + $0xa78] sm:$0xf]
        %v1100 = vld [vmem:[%s337 + $0xa7c] sm:$0xf]
        %v1101 = vld [vmem:[%s337 + $0xa80] sm:$0xf]
        %v1102 = vld [vmem:[%s337 + $0xa84] sm:$0xf]
        %v1103 = vld [vmem:[%s337 + $0xa88] sm:$0xf]
        %v1104 = vld [vmem:[%s337 + $0xa8c] sm:$0xf]
        %v1105 = vld [vmem:[%s337 + $0xa90] sm:$0xf]
        %v1106 = vld [vmem:[%s337 + $0xa94] sm:$0xf]
        %v1107 = vld [vmem:[%s337 + $0xa98] sm:$0xf]
        %v1108 = vld [vmem:[%s337 + $0xa9c] sm:$0xf]
        %v1109 = vld [vmem:[%s337 + $0xaa0] sm:$0xf]
        %v1110 = vld [vmem:[%s337 + $0xaa4] sm:$0xf]
        %v1111 = vld [vmem:[%s337 + $0xaa8] sm:$0xf]
        %v1112 = vld [vmem:[%s337 + $0xaac] sm:$0xf]
        %v1113 = vld [vmem:[%s337 + $0xab0] sm:$0xf]
        %v1114 = vld [vmem:[%s337 + $0xab4] sm:$0xf]
        %v1115 = vld [vmem:[%s337 + $0xab8] sm:$0xf]
        %v1116 = vld [vmem:[%s337 + $0xabc] sm:$0xf]
        %v1117 = vld [vmem:[%s337 + $0xac0] sm:$0xf]
        %v1118 = vld [vmem:[%s337 + $0xac4] sm:$0xf]
        %v1119 = vld [vmem:[%s337 + $0xac8] sm:$0xf]
        %v1120 = vld [vmem:[%s337 + $0xacc] sm:$0xf]
        %v1121 = vld [vmem:[%s337 + $0xad0] sm:$0xf]
        %v1122 = vld [vmem:[%s337 + $0xad4] sm:$0xf]
        %v1123 = vld [vmem:[%s337 + $0xad8] sm:$0xf]
        %v1124 = vld [vmem:[%s337 + $0xadc] sm:$0xf]
        %v1125 = vld [vmem:[%s337 + $0xae0] sm:$0xf]
        %v1126 = vld [vmem:[%s337 + $0xae4] sm:$0xf]
        %v1127 = vld [vmem:[%s337 + $0xae8] sm:$0xf]
        %v1128 = vld [vmem:[%s337 + $0xaec] sm:$0xf]
        %v1129 = vld [vmem:[%s337 + $0xaf0] sm:$0xf]
        %v1130 = vld [vmem:[%s337 + $0xaf4] sm:$0xf]
        %v1131 = vld [vmem:[%s337 + $0xaf8] sm:$0xf]
        %v1132 = vld [vmem:[%s337 + $0xafc] sm:$0xf]
        %v1133 = vld [vmem:[%s337 + $0xb00] sm:$0xf]
        %v1134 = vld [vmem:[%s337 + $0xb04] sm:$0xf]
        %v1135 = vld [vmem:[%s337 + $0xb08] sm:$0xf]
        %v1136 = vld [vmem:[%s337 + $0xb0c] sm:$0xf]
        %v1137 = vld [vmem:[%s337 + $0xb10] sm:$0xf]
        %v1138 = vld [vmem:[%s337 + $0xb14] sm:$0xf]
        %v1139 = vld [vmem:[%s337 + $0xb18] sm:$0xf]
        %v1140 = vld [vmem:[%s337 + $0xb1c] sm:$0xf]
        %v1141 = vld [vmem:[%s337 + $0xb20] sm:$0xf]
        %v1142 = vld [vmem:[%s337 + $0xb24] sm:$0xf]
        %v1143 = vld [vmem:[%s337 + $0xb28] sm:$0xf]
        %v1144 = vld [vmem:[%s337 + $0xb2c] sm:$0xf]
        %v1145 = vld [vmem:[%s337 + $0xb30] sm:$0xf]
        %v1146 = vld [vmem:[%s337 + $0xb34] sm:$0xf]
        %v1147 = vld [vmem:[%s337 + $0xb38] sm:$0xf]
        %v1148 = vld [vmem:[%s337 + $0xb3c] sm:$0xf]
        %v1149 = vld [vmem:[%s337 + $0xb40] sm:$0xf]
        %v1150 = vld [vmem:[%s337 + $0xb44] sm:$0xf]
        %v1151 = vld [vmem:[%s337 + $0xb48] sm:$0xf]
        %v1152 = vld [vmem:[%s337 + $0xb4c] sm:$0xf]
        %v1153 = vld [vmem:[%s337 + $0xb50] sm:$0xf]
        %v1154 = vld [vmem:[%s337 + $0xb54] sm:$0xf]
        %v1155 = vld [vmem:[%s337 + $0xb58] sm:$0xf]
        %v1156 = vld [vmem:[%s337 + $0xb5c] sm:$0xf]
        %v1157 = vld [vmem:[%s337 + $0xb60] sm:$0xf]
        %v1158 = vld [vmem:[%s337 + $0xb64] sm:$0xf]
        %v1159 = vld [vmem:[%s337 + $0xb68] sm:$0xf]
        %v1160 = vld [vmem:[%s337 + $0xb6c] sm:$0xf]
        %v1161 = vld [vmem:[%s337 + $0xb70] sm:$0xf]
        %v1162 = vld [vmem:[%s337 + $0xb74] sm:$0xf]
        %v1163 = vld [vmem:[%s337 + $0xb78] sm:$0xf]
        %v1164 = vld [vmem:[%s337 + $0xb7c] sm:$0xf]
        %v1165 = vld [vmem:[%s337 + $0xb80] sm:$0xf]
        %v1166 = vld [vmem:[%s337 + $0xb84] sm:$0xf]
        %v1167 = vld [vmem:[%s337 + $0xb88] sm:$0xf]
        %v1168 = vld [vmem:[%s337 + $0xb8c] sm:$0xf]
        %v1169 = vld [vmem:[%s337 + $0xb90] sm:$0xf]
        %v1170 = vld [vmem:[%s337 + $0xb94] sm:$0xf]
        %v1171 = vld [vmem:[%s337 + $0xb98] sm:$0xf]
        %v1172 = vld [vmem:[%s337 + $0xb9c] sm:$0xf]
        %v1173 = vld [vmem:[%s337 + $0xba0] sm:$0xf]
        %v1174 = vld [vmem:[%s337 + $0xba4] sm:$0xf]
        %v1175 = vld [vmem:[%s337 + $0xba8] sm:$0xf]
        %v1176 = vld [vmem:[%s337 + $0xbac] sm:$0xf]
        %v1177 = vld [vmem:[%s337 + $0xbb0] sm:$0xf]
        %v1178 = vld [vmem:[%s337 + $0xbb4] sm:$0xf]
        %v1179 = vld [vmem:[%s337 + $0xbb8] sm:$0xf]
        %v1180 = vld [vmem:[%s337 + $0xbbc] sm:$0xf]
        %v1181 = vld [vmem:[%s337 + $0xbc0] sm:$0xf]
        %v1182 = vld [vmem:[%s337 + $0xbc4] sm:$0xf]
        %v1183 = vld [vmem:[%s337 + $0xbc8] sm:$0xf]
        %v1184 = vld [vmem:[%s337 + $0xbcc] sm:$0xf]
        %v1185 = vld [vmem:[%s337 + $0xbd0] sm:$0xf]
        %v1186 = vld [vmem:[%s337 + $0xbd4] sm:$0xf]
        %v1187 = vld [vmem:[%s337 + $0xbd8] sm:$0xf]
        %v1188 = vld [vmem:[%s337 + $0xbdc] sm:$0xf]
        %v1189 = vld [vmem:[%s337 + $0xbe0] sm:$0xf]
        %v1190 = vld [vmem:[%s337 + $0xbe4] sm:$0xf]
        %v1191 = vld [vmem:[%s337 + $0xbe8] sm:$0xf]
        %v1192 = vld [vmem:[%s337 + $0xbec] sm:$0xf]
        %v1193 = vld [vmem:[%s337 + $0xbf0] sm:$0xf]
        %v1194 = vld [vmem:[%s337 + $0xbf4] sm:$0xf]
        %v1195 = vld [vmem:[%s337 + $0xbf8] sm:$0xf]
        %v1196 = vld [vmem:[%s337 + $0xbfc] sm:$0xf]
        %v1197 = vld [vmem:[%s337 + $0xc00] sm:$0xf]
        %v1198 = vld [vmem:[%s337 + $0xc04] sm:$0xf]
        %v1199 = vld [vmem:[%s337 + $0xc08] sm:$0xf]
        %v1200 = vld [vmem:[%s337 + $0xc0c] sm:$0xf]
        %v1201 = vld [vmem:[%s337 + $0xc10] sm:$0xf]
        %v1202 = vld [vmem:[%s337 + $0xc14] sm:$0xf]
        %v1203 = vld [vmem:[%s337 + $0xc18] sm:$0xf]
        %v1204 = vld [vmem:[%s337 + $0xc1c] sm:$0xf]
        %v1205 = vld [vmem:[%s337 + $0xc20] sm:$0xf]
        %v1206 = vld [vmem:[%s337 + $0xc24] sm:$0xf]
        %v1207 = vld [vmem:[%s337 + $0xc28] sm:$0xf]
        %v1208 = vld [vmem:[%s337 + $0xc2c] sm:$0xf]
        %v1209 = vld [vmem:[%s337 + $0xc30] sm:$0xf]
        %v1210 = vld [vmem:[%s337 + $0xc34] sm:$0xf]
        %v1211 = vld [vmem:[%s337 + $0xc38] sm:$0xf]
        %v1212 = vld [vmem:[%s337 + $0xc3c] sm:$0xf]
        %v1213 = vld [vmem:[%s337 + $0xc40] sm:$0xf]
        %v1214 = vld [vmem:[%s337 + $0xc44] sm:$0xf]
        %v1215 = vld [vmem:[%s337 + $0xc48] sm:$0xf]
        %v1216 = vld [vmem:[%s337 + $0xc4c] sm:$0xf]
        %v1217 = vld [vmem:[%s337 + $0xc50] sm:$0xf]
        %v1218 = vld [vmem:[%s337 + $0xc54] sm:$0xf]
        %v1219 = vld [vmem:[%s337 + $0xc58] sm:$0xf]
        %v1220 = vld [vmem:[%s337 + $0xc5c] sm:$0xf]
        %v1221 = vld [vmem:[%s337 + $0xc60] sm:$0xf]
        %v1222 = vld [vmem:[%s337 + $0xc64] sm:$0xf]
        %v1223 = vld [vmem:[%s337 + $0xc68] sm:$0xf]
        %v1224 = vld [vmem:[%s337 + $0xc6c] sm:$0xf]
        %v1225 = vld [vmem:[%s337 + $0xc70] sm:$0xf]
        %v1226 = vld [vmem:[%s337 + $0xc74] sm:$0xf]
        %v1227 = vld [vmem:[%s337 + $0xc78] sm:$0xf]
        %v1228 = vld [vmem:[%s337 + $0xc7c] sm:$0xf]
        %v1229 = vld [vmem:[%s337 + $0xc80] sm:$0xf]
        %v1230 = vld [vmem:[%s337 + $0xc84] sm:$0xf]
        %v1231 = vld [vmem:[%s337 + $0xc88] sm:$0xf]
        %v1232 = vld [vmem:[%s337 + $0xc8c] sm:$0xf]
        %v1233 = vld [vmem:[%s337 + $0xc90] sm:$0xf]
        %v1234 = vld [vmem:[%s337 + $0xc94] sm:$0xf]
        %v1235 = vld [vmem:[%s337 + $0xc98] sm:$0xf]
        %v1236 = vld [vmem:[%s337 + $0xc9c] sm:$0xf]
        %v1237 = vld [vmem:[%s337 + $0xca0] sm:$0xf]
        %v1238 = vld [vmem:[%s337 + $0xca4] sm:$0xf]
        %v1239 = vld [vmem:[%s337 + $0xca8] sm:$0xf]
        %v1240 = vld [vmem:[%s337 + $0xcac] sm:$0xf]
        %v1241 = vld [vmem:[%s337 + $0xcb0] sm:$0xf]
        %v1242 = vld [vmem:[%s337 + $0xcb4] sm:$0xf]
        %v1243 = vld [vmem:[%s337 + $0xcb8] sm:$0xf]
        %v1244 = vld [vmem:[%s337 + $0xcbc] sm:$0xf]
        %v1245 = vld [vmem:[%s337 + $0xcc0] sm:$0xf]
        %v1246 = vld [vmem:[%s337 + $0xcc4] sm:$0xf]
        %v1247 = vld [vmem:[%s337 + $0xcc8] sm:$0xf]
        %v1248 = vld [vmem:[%s337 + $0xccc] sm:$0xf]
        %v1249 = vld [vmem:[%s337 + $0xcd0] sm:$0xf]
        %v1250 = vld [vmem:[%s337 + $0xcd4] sm:$0xf]
        %v1251 = vld [vmem:[%s337 + $0xcd8] sm:$0xf]
        %v1252 = vld [vmem:[%s337 + $0xcdc] sm:$0xf]
        %v1253 = vld [vmem:[%s337 + $0xce0] sm:$0xf]
        %v1254 = vld [vmem:[%s337 + $0xce4] sm:$0xf]
        %v1255 = vld [vmem:[%s337 + $0xce8] sm:$0xf]
        %v1256 = vld [vmem:[%s337 + $0xcec] sm:$0xf]
        %v1257 = vld [vmem:[%s337 + $0xcf0] sm:$0xf]
        %v1258 = vld [vmem:[%s337 + $0xcf4] sm:$0xf]
        %v1259 = vld [vmem:[%s337 + $0xcf8] sm:$0xf]
        %v1260 = vld [vmem:[%s337 + $0xcfc] sm:$0xf]
        %v1261 = vld [vmem:[%s337 + $0xd00] sm:$0xf]
        %v1262 = vld [vmem:[%s337 + $0xd04] sm:$0xf]
        %v1263 = vld [vmem:[%s337 + $0xd08] sm:$0xf]
        %v1264 = vld [vmem:[%s337 + $0xd0c] sm:$0xf]
        %v1265 = vld [vmem:[%s337 + $0xd10] sm:$0xf]
        %v1266 = vld [vmem:[%s337 + $0xd14] sm:$0xf]
        %v1267 = vld [vmem:[%s337 + $0xd18] sm:$0xf]
        %v1268 = vld [vmem:[%s337 + $0xd1c] sm:$0xf]
        %v1269 = vld [vmem:[%s337 + $0xd20] sm:$0xf]
        %v1270 = vld [vmem:[%s337 + $0xd24] sm:$0xf]
        %v1271 = vld [vmem:[%s337 + $0xd28] sm:$0xf]
        %v1272 = vld [vmem:[%s337 + $0xd2c] sm:$0xf]
        %v1273 = vld [vmem:[%s337 + $0xd30] sm:$0xf]
        %v1274 = vld [vmem:[%s337 + $0xd34] sm:$0xf]
        %v1275 = vld [vmem:[%s337 + $0xd38] sm:$0xf]
        %v1276 = vld [vmem:[%s337 + $0xd3c] sm:$0xf]
        %v1277 = vld [vmem:[%s337 + $0xd40] sm:$0xf]
        %v1278 = vld [vmem:[%s337 + $0xd44] sm:$0xf]
        %v1279 = vld [vmem:[%s337 + $0xd48] sm:$0xf]
        %v1280 = vld [vmem:[%s337 + $0xd4c] sm:$0xf]
        %v1281 = vld [vmem:[%s337 + $0xd50] sm:$0xf]
        %v1282 = vld [vmem:[%s337 + $0xd54] sm:$0xf]
        %v1283 = vld [vmem:[%s337 + $0xd58] sm:$0xf]
        %v1284 = vld [vmem:[%s337 + $0xd5c] sm:$0xf]
        %v1285 = vld [vmem:[%s337 + $0xd60] sm:$0xf]
        %v1286 = vld [vmem:[%s337 + $0xd64] sm:$0xf]
        %v1287 = vld [vmem:[%s337 + $0xd68] sm:$0xf]
        %v1288 = vld [vmem:[%s337 + $0xd6c] sm:$0xf]
        %v1289 = vld [vmem:[%s337 + $0xd70] sm:$0xf]
        %v1290 = vld [vmem:[%s337 + $0xd74] sm:$0xf]
        %v1291 = vld [vmem:[%s337 + $0xd78] sm:$0xf]
        %v1292 = vld [vmem:[%s337 + $0xd7c] sm:$0xf]
        %v1293 = vld [vmem:[%s337 + $0xd80] sm:$0xf]
        %v1294 = vld [vmem:[%s337 + $0xd84] sm:$0xf]
        %v1295 = vld [vmem:[%s337 + $0xd88] sm:$0xf]
        %v1296 = vld [vmem:[%s337 + $0xd8c] sm:$0xf]
        %v1297 = vld [vmem:[%s337 + $0xd90] sm:$0xf]
        %v1298 = vld [vmem:[%s337 + $0xd94] sm:$0xf]
        %v1299 = vld [vmem:[%s337 + $0xd98] sm:$0xf]
        %v1300 = vld [vmem:[%s337 + $0xd9c] sm:$0xf]
        %v1301 = vld [vmem:[%s337 + $0xda0] sm:$0xf]
        %v1302 = vld [vmem:[%s337 + $0xda4] sm:$0xf]
        %v1303 = vld [vmem:[%s337 + $0xda8] sm:$0xf]
        %v1304 = vld [vmem:[%s337 + $0xdac] sm:$0xf]
        %v1305 = vld [vmem:[%s337 + $0xdb0] sm:$0xf]
        %v1306 = vld [vmem:[%s337 + $0xdb4] sm:$0xf]
        %v1307 = vld [vmem:[%s337 + $0xdb8] sm:$0xf]
        %v1308 = vld [vmem:[%s337 + $0xdbc] sm:$0xf]
        %v1309 = vld [vmem:[%s337 + $0xdc0] sm:$0xf]
        %v1310 = vld [vmem:[%s337 + $0xdc4] sm:$0xf]
        %v1311 = vld [vmem:[%s337 + $0xdc8] sm:$0xf]
        %v1312 = vld [vmem:[%s337 + $0xdcc] sm:$0xf]
        %v1313 = vld [vmem:[%s337 + $0xdd0] sm:$0xf]
        %v1314 = vld [vmem:[%s337 + $0xdd4] sm:$0xf]
        %v1315 = vld [vmem:[%s337 + $0xdd8] sm:$0xf]
        %v1316 = vld [vmem:[%s337 + $0xddc] sm:$0xf]
        %v1317 = vld [vmem:[%s337 + $0xde0] sm:$0xf]
        %v1318 = vld [vmem:[%s337 + $0xde4] sm:$0xf]
        %v1319 = vld [vmem:[%s337 + $0xde8] sm:$0xf]
        %v1320 = vld [vmem:[%s337 + $0xdec] sm:$0xf]
        %v1321 = vld [vmem:[%s337 + $0xdf0] sm:$0xf]
        %v1322 = vld [vmem:[%s337 + $0xdf4] sm:$0xf]
        %v1323 = vld [vmem:[%s337 + $0xdf8] sm:$0xf]
        %v1324 = vld [vmem:[%s337 + $0xdfc] sm:$0xf]
        %v1325 = vld [vmem:[%s337 + $0xe00] sm:$0xf]
        %v1326 = vld [vmem:[%s337 + $0xe04] sm:$0xf]
        %v1327 = vld [vmem:[%s337 + $0xe08] sm:$0xf]
        %v1328 = vld [vmem:[%s337 + $0xe0c] sm:$0xf]
        %v1329 = vld [vmem:[%s337 + $0xe10] sm:$0xf]
        %v1330 = vld [vmem:[%s337 + $0xe14] sm:$0xf]
        %v1331 = vld [vmem:[%s337 + $0xe18] sm:$0xf]
        %v1332 = vld [vmem:[%s337 + $0xe1c] sm:$0xf]
        %v1333 = vld [vmem:[%s337 + $0xe20] sm:$0xf]
        %v1334 = vld [vmem:[%s337 + $0xe24] sm:$0xf]
        %v1335 = vld [vmem:[%s337 + $0xe28] sm:$0xf]
        %v1336 = vld [vmem:[%s337 + $0xe2c] sm:$0xf]
        %v1337 = vld [vmem:[%s337 + $0xe30] sm:$0xf]
        %v1338 = vld [vmem:[%s337 + $0xe34] sm:$0xf]
        %v1339 = vld [vmem:[%s337 + $0xe38] sm:$0xf]
        %v1340 = vld [vmem:[%s337 + $0xe3c] sm:$0xf]
        %v1341 = vld [vmem:[%s337 + $0xe40] sm:$0xf]
        %v1342 = vld [vmem:[%s337 + $0xe44] sm:$0xf]
        %v1343 = vld [vmem:[%s337 + $0xe48] sm:$0xf]
        %v1344 = vld [vmem:[%s337 + $0xe4c] sm:$0xf]
        %v1345 = vld [vmem:[%s337 + $0xe50] sm:$0xf]
        %v1346 = vld [vmem:[%s337 + $0xe54] sm:$0xf]
        %v1347 = vld [vmem:[%s337 + $0xe58] sm:$0xf]
        %v1348 = vld [vmem:[%s337 + $0xe5c] sm:$0xf]
        %v1349 = vld [vmem:[%s337 + $0xe60] sm:$0xf]
        %v1350 = vld [vmem:[%s337 + $0xe64] sm:$0xf]
        %v1351 = vld [vmem:[%s337 + $0xe68] sm:$0xf]
        %v1352 = vld [vmem:[%s337 + $0xe6c] sm:$0xf]
        %v1353 = vld [vmem:[%s337 + $0xe70] sm:$0xf]
        %v1354 = vld [vmem:[%s337 + $0xe74] sm:$0xf]
        %v1355 = vld [vmem:[%s337 + $0xe78] sm:$0xf]
        %v1356 = vld [vmem:[%s337 + $0xe7c] sm:$0xf]
        %v1357 = vld [vmem:[%s337 + $0xe80] sm:$0xf]
        %v1358 = vld [vmem:[%s337 + $0xe84] sm:$0xf]
        %v1359 = vld [vmem:[%s337 + $0xe88] sm:$0xf]
        %v1360 = vld [vmem:[%s337 + $0xe8c] sm:$0xf]
        %v1361 = vld [vmem:[%s337 + $0xe90] sm:$0xf]
        %v1362 = vld [vmem:[%s337 + $0xe94] sm:$0xf]
        %v1363 = vld [vmem:[%s337 + $0xe98] sm:$0xf]
        %v1364 = vld [vmem:[%s337 + $0xe9c] sm:$0xf]
        %v1365 = vld [vmem:[%s337 + $0xea0] sm:$0xf]
        %v1366 = vld [vmem:[%s337 + $0xea4] sm:$0xf]
        %v1367 = vld [vmem:[%s337 + $0xea8] sm:$0xf]
        %v1368 = vld [vmem:[%s337 + $0xeac] sm:$0xf]
        %v1369 = vld [vmem:[%s337 + $0xeb0] sm:$0xf]
        %v1370 = vld [vmem:[%s337 + $0xeb4] sm:$0xf]
        %v1371 = vld [vmem:[%s337 + $0xeb8] sm:$0xf]
        %v1372 = vld [vmem:[%s337 + $0xebc] sm:$0xf]
        %v1373 = vld [vmem:[%s337 + $0xec0] sm:$0xf]
        %v1374 = vld [vmem:[%s337 + $0xec4] sm:$0xf]
        %v1375 = vld [vmem:[%s337 + $0xec8] sm:$0xf]
        %v1376 = vld [vmem:[%s337 + $0xecc] sm:$0xf]
        %v1377 = vld [vmem:[%s337 + $0xed0] sm:$0xf]
        %v1378 = vld [vmem:[%s337 + $0xed4] sm:$0xf]
        %v1379 = vld [vmem:[%s337 + $0xed8] sm:$0xf]
        %v1380 = vld [vmem:[%s337 + $0xedc] sm:$0xf]
        %v1381 = vld [vmem:[%s337 + $0xee0] sm:$0xf]
        %v1382 = vld [vmem:[%s337 + $0xee4] sm:$0xf]
        %v1383 = vld [vmem:[%s337 + $0xee8] sm:$0xf]
        %v1384 = vld [vmem:[%s337 + $0xeec] sm:$0xf]
        %v1385 = vld [vmem:[%s337 + $0xef0] sm:$0xf]
        %v1386 = vld [vmem:[%s337 + $0xef4] sm:$0xf]
        %v1387 = vld [vmem:[%s337 + $0xef8] sm:$0xf]
        %v1388 = vld [vmem:[%s337 + $0xefc] sm:$0xf]
        %v1389 = vld [vmem:[%s337 + $0xf00] sm:$0xf]
        %v1390 = vld [vmem:[%s337 + $0xf04] sm:$0xf]
        %v1391 = vld [vmem:[%s337 + $0xf08] sm:$0xf]
        %v1392 = vld [vmem:[%s337 + $0xf0c] sm:$0xf]
        %v1393 = vld [vmem:[%s337 + $0xf10] sm:$0xf]
        %v1394 = vld [vmem:[%s337 + $0xf14] sm:$0xf]
        %v1395 = vld [vmem:[%s337 + $0xf18] sm:$0xf]
        %v1396 = vld [vmem:[%s337 + $0xf1c] sm:$0xf]
        %v1397 = vld [vmem:[%s337 + $0xf20] sm:$0xf]
        %v1398 = vld [vmem:[%s337 + $0xf24] sm:$0xf]
        %v1399 = vld [vmem:[%s337 + $0xf28] sm:$0xf]
        %v1400 = vld [vmem:[%s337 + $0xf2c] sm:$0xf]
        %v1401 = vld [vmem:[%s337 + $0xf30] sm:$0xf]
        %v1402 = vld [vmem:[%s337 + $0xf34] sm:$0xf]
        %v1403 = vld [vmem:[%s337 + $0xf38] sm:$0xf]
        %v1404 = vld [vmem:[%s337 + $0xf3c] sm:$0xf]
        %v1405 = vld [vmem:[%s337 + $0xf40] sm:$0xf]
        %v1406 = vld [vmem:[%s337 + $0xf44] sm:$0xf]
        %v1407 = vld [vmem:[%s337 + $0xf48] sm:$0xf]
        %v1408 = vld [vmem:[%s337 + $0xf4c] sm:$0xf]
        %v1409 = vld [vmem:[%s337 + $0xf50] sm:$0xf]
        %v1410 = vld [vmem:[%s337 + $0xf54] sm:$0xf]
        %v1411 = vld [vmem:[%s337 + $0xf58] sm:$0xf]
        %v1412 = vld [vmem:[%s337 + $0xf5c] sm:$0xf]
        %v1413 = vld [vmem:[%s337 + $0xf60] sm:$0xf]
        %v1414 = vld [vmem:[%s337 + $0xf64] sm:$0xf]
        %v1415 = vld [vmem:[%s337 + $0xf68] sm:$0xf]
        %v1416 = vld [vmem:[%s337 + $0xf6c] sm:$0xf]
        %v1417 = vld [vmem:[%s337 + $0xf70] sm:$0xf]
        %v1418 = vld [vmem:[%s337 + $0xf74] sm:$0xf]
        %v1419 = vld [vmem:[%s337 + $0xf78] sm:$0xf]
        %v1420 = vld [vmem:[%s337 + $0xf7c] sm:$0xf]
        %v1421 = vld [vmem:[%s337 + $0xf80] sm:$0xf]
        %v1422 = vld [vmem:[%s337 + $0xf84] sm:$0xf]
        %v1423 = vld [vmem:[%s337 + $0xf88] sm:$0xf]
        %v1424 = vld [vmem:[%s337 + $0xf8c] sm:$0xf]
        %v1425 = vld [vmem:[%s337 + $0xf90] sm:$0xf]
        %v1426 = vld [vmem:[%s337 + $0xf94] sm:$0xf]
        %v1427 = vld [vmem:[%s337 + $0xf98] sm:$0xf]
        %v1428 = vld [vmem:[%s337 + $0xf9c] sm:$0xf]
        %v1429 = vld [vmem:[%s337 + $0xfa0] sm:$0xf]
        %v1430 = vld [vmem:[%s337 + $0xfa4] sm:$0xf]
        %v1431 = vld [vmem:[%s337 + $0xfa8] sm:$0xf]
        %v1432 = vld [vmem:[%s337 + $0xfac] sm:$0xf]
        %v1433 = vld [vmem:[%s337 + $0xfb0] sm:$0xf]
        %v1434 = vld [vmem:[%s337 + $0xfb4] sm:$0xf]
        %v1435 = vld [vmem:[%s337 + $0xfb8] sm:$0xf]
        %v1436 = vld [vmem:[%s337 + $0xfbc] sm:$0xf]
        %v1437 = vld [vmem:[%s337 + $0xfc0] sm:$0xf]
        %v1438 = vld [vmem:[%s337 + $0xfc4] sm:$0xf]
        %v1439 = vld [vmem:[%s337 + $0xfc8] sm:$0xf]
        %v1440 = vld [vmem:[%s337 + $0xfcc] sm:$0xf]
        %v1441 = vld [vmem:[%s337 + $0xfd0] sm:$0xf]
        %v1442 = vld [vmem:[%s337 + $0xfd4] sm:$0xf]
        %v1443 = vld [vmem:[%s337 + $0xfd8] sm:$0xf]
        %v1444 = vld [vmem:[%s337 + $0xfdc] sm:$0xf]
        %v1445 = vld [vmem:[%s337 + $0xfe0] sm:$0xf]
        %v1446 = vld [vmem:[%s337 + $0xfe4] sm:$0xf]
        %v1447 = vld [vmem:[%s337 + $0xfe8] sm:$0xf]
        %v1448 = vld [vmem:[%s337 + $0xfec] sm:$0xf]
        %v1449 = vld [vmem:[%s337 + $0xff0] sm:$0xf]
        %v1450 = vld [vmem:[%s337 + $0xff4] sm:$0xf]
        %v1451 = vld [vmem:[%s337 + $0xff8] sm:$0xf]
        %v1452 = vld [vmem:[%s337 + $0xffc] sm:$0xf]
        %v1485 = vunpack.c.l.b16 %v397
        %v1486 = vunpack.c.h.b16 %v397
        %v1487 = vunpack.c.l.b16 %v398
        %v1488 = vunpack.c.h.b16 %v398
        %v1489 = vunpack.c.l.b16 %v399
        %v1490 = vunpack.c.h.b16 %v399
        %v1491 = vunpack.c.l.b16 %v400
        %v1492 = vunpack.c.h.b16 %v400
        %v1493 = vunpack.c.l.b16 %v401
        %v1494 = vunpack.c.h.b16 %v401
        %v1495 = vunpack.c.l.b16 %v402
        %v1496 = vunpack.c.h.b16 %v402
        %v1497 = vunpack.c.l.b16 %v403
        %v1498 = vunpack.c.h.b16 %v403
        %v1499 = vunpack.c.l.b16 %v404
        %v1500 = vunpack.c.h.b16 %v404
        %v1501 = vunpack.c.l.b16 %v405
        %v1502 = vunpack.c.h.b16 %v405
        %v1503 = vunpack.c.l.b16 %v406
        %v1504 = vunpack.c.h.b16 %v406
        %v1505 = vunpack.c.l.b16 %v407
        %v1506 = vunpack.c.h.b16 %v407
        %v1507 = vunpack.c.l.b16 %v408
        %v1508 = vunpack.c.h.b16 %v408
        %v1509 = vunpack.c.l.b16 %v409
        %v1510 = vunpack.c.h.b16 %v409
        %v1511 = vunpack.c.l.b16 %v410
        %v1512 = vunpack.c.h.b16 %v410
        %v1513 = vunpack.c.l.b16 %v411
        %v1514 = vunpack.c.h.b16 %v411
        %v1515 = vunpack.c.l.b16 %v412
        %v1516 = vunpack.c.h.b16 %v412
        %v1517 = vunpack.c.l.b16 %v413
        %v1518 = vunpack.c.h.b16 %v413
        %v1519 = vunpack.c.l.b16 %v414
        %v1520 = vunpack.c.h.b16 %v414
        %v1521 = vunpack.c.l.b16 %v415
        %v1522 = vunpack.c.h.b16 %v415
        %v1523 = vunpack.c.l.b16 %v416
        %v1524 = vunpack.c.h.b16 %v416
        %v1525 = vunpack.c.l.b16 %v417
        %v1526 = vunpack.c.h.b16 %v417
        %v1527 = vunpack.c.l.b16 %v418
        %v1528 = vunpack.c.h.b16 %v418
        %v1529 = vunpack.c.l.b16 %v419
        %v1530 = vunpack.c.h.b16 %v419
        %v1531 = vunpack.c.l.b16 %v420
        %v1532 = vunpack.c.h.b16 %v420
        %v1533 = vunpack.c.l.b16 %v421
        %v1534 = vunpack.c.h.b16 %v421
        %v1535 = vunpack.c.l.b16 %v422
        %v1536 = vunpack.c.h.b16 %v422
        %v1537 = vunpack.c.l.b16 %v423
        %v1538 = vunpack.c.h.b16 %v423
        %v1539 = vunpack.c.l.b16 %v424
        %v1540 = vunpack.c.h.b16 %v424
        %v1541 = vunpack.c.l.b16 %v425
        %v1542 = vunpack.c.h.b16 %v425
        %v1543 = vunpack.c.l.b16 %v426
        %v1544 = vunpack.c.h.b16 %v426
        %v1545 = vunpack.c.l.b16 %v427
        %v1546 = vunpack.c.h.b16 %v427
        %v1547 = vunpack.c.l.b16 %v428
        %v1548 = vunpack.c.h.b16 %v428
        %v1549 = vpack.c.b16 %v1485, %v1485
        %v1550 = vpack.c.b16 %v1486, %v1486
        %v1551 = vpack.c.b16 %v1487, %v1487
        %v1552 = vpack.c.b16 %v1488, %v1488
        %v1553 = vpack.c.b16 %v1489, %v1489
        %v1554 = vpack.c.b16 %v1490, %v1490
        %v1555 = vpack.c.b16 %v1491, %v1491
        %v1556 = vpack.c.b16 %v1492, %v1492
        %v1557 = vpack.c.b16 %v1493, %v1493
        %v1558 = vpack.c.b16 %v1494, %v1494
        %v1559 = vpack.c.b16 %v1495, %v1495
        %v1560 = vpack.c.b16 %v1496, %v1496
        %v1561 = vpack.c.b16 %v1497, %v1497
        %v1562 = vpack.c.b16 %v1498, %v1498
        %v1563 = vpack.c.b16 %v1499, %v1499
        %v1564 = vpack.c.b16 %v1500, %v1500
        %v1565 = vpack.c.b16 %v1501, %v1501
        %v1566 = vpack.c.b16 %v1502, %v1502
        %v1567 = vpack.c.b16 %v1503, %v1503
        %v1568 = vpack.c.b16 %v1504, %v1504
        %v1569 = vpack.c.b16 %v1505, %v1505
        %v1570 = vpack.c.b16 %v1506, %v1506
        %v1571 = vpack.c.b16 %v1507, %v1507
        %v1572 = vpack.c.b16 %v1508, %v1508
        %v1573 = vpack.c.b16 %v1509, %v1509
        %v1574 = vpack.c.b16 %v1510, %v1510
        %v1575 = vpack.c.b16 %v1511, %v1511
        %v1576 = vpack.c.b16 %v1512, %v1512
        %v1577 = vpack.c.b16 %v1513, %v1513
        %v1578 = vpack.c.b16 %v1514, %v1514
        %v1579 = vpack.c.b16 %v1515, %v1515
        %v1580 = vpack.c.b16 %v1516, %v1516
        %v1581 = vpack.c.b16 %v1517, %v1517
        %v1582 = vpack.c.b16 %v1518, %v1518
        %v1583 = vpack.c.b16 %v1519, %v1519
        %v1584 = vpack.c.b16 %v1520, %v1520
        %v1585 = vpack.c.b16 %v1521, %v1521
        %v1586 = vpack.c.b16 %v1522, %v1522
        %v1587 = vpack.c.b16 %v1523, %v1523
        %v1588 = vpack.c.b16 %v1524, %v1524
        %v1589 = vpack.c.b16 %v1525, %v1525
        %v1590 = vpack.c.b16 %v1526, %v1526
        %v1591 = vpack.c.b16 %v1527, %v1527
        %v1592 = vpack.c.b16 %v1528, %v1528
        %v1593 = vpack.c.b16 %v1529, %v1529
        %v1594 = vpack.c.b16 %v1530, %v1530
        %v1595 = vpack.c.b16 %v1531, %v1531
        %v1596 = vpack.c.b16 %v1532, %v1532
        %v1597 = vpack.c.b16 %v1533, %v1533
        %v1598 = vpack.c.b16 %v1534, %v1534
        %v1599 = vpack.c.b16 %v1535, %v1535
        %v1600 = vpack.c.b16 %v1536, %v1536
        %v1601 = vpack.c.b16 %v1537, %v1537
        %v1602 = vpack.c.b16 %v1538, %v1538
        %v1603 = vpack.c.b16 %v1539, %v1539
        %v1604 = vpack.c.b16 %v1540, %v1540
        %v1605 = vpack.c.b16 %v1541, %v1541
        %v1606 = vpack.c.b16 %v1542, %v1542
        %v1607 = vpack.c.b16 %v1543, %v1543
        %v1608 = vpack.c.b16 %v1544, %v1544
        %v1609 = vpack.c.b16 %v1545, %v1545
        %v1610 = vpack.c.b16 %v1546, %v1546
        %v1611 = vpack.c.b16 %v1547, %v1547
        %v1612 = vpack.c.b16 %v1548, %v1548
        %v2701 = vunpack.c.l.b16 %v429
        %v2702 = vunpack.c.l.b16 %v430
        %v2703 = vunpack.c.l.b16 %v431
        %v2704 = vunpack.c.l.b16 %v432
        %v2705 = vunpack.c.l.b16 %v433
        %v2706 = vunpack.c.l.b16 %v434
        %v2707 = vunpack.c.l.b16 %v435
        %v2708 = vunpack.c.l.b16 %v436
        %v2709 = vunpack.c.l.b16 %v437
        %v2710 = vunpack.c.l.b16 %v438
        %v2711 = vunpack.c.l.b16 %v439
        %v2712 = vunpack.c.l.b16 %v440
        %v2713 = vunpack.c.l.b16 %v441
        %v2714 = vunpack.c.l.b16 %v442
        %v2715 = vunpack.c.l.b16 %v443
        %v2716 = vunpack.c.l.b16 %v444
        %v2717 = vunpack.c.l.b16 %v445
        %v2718 = vunpack.c.l.b16 %v446
        %v2719 = vunpack.c.l.b16 %v447
        %v2720 = vunpack.c.l.b16 %v448
        %v2721 = vunpack.c.l.b16 %v449
        %v2722 = vunpack.c.l.b16 %v450
        %v2723 = vunpack.c.l.b16 %v451
        %v2724 = vunpack.c.l.b16 %v452
        %v2725 = vunpack.c.l.b16 %v453
        %v2726 = vunpack.c.l.b16 %v454
        %v2727 = vunpack.c.l.b16 %v455
        %v2728 = vunpack.c.l.b16 %v456
        %v2729 = vunpack.c.l.b16 %v457
        %v2730 = vunpack.c.l.b16 %v458
        %v2731 = vunpack.c.l.b16 %v459
        %v2732 = vunpack.c.l.b16 %v460
        %v2733 = vunpack.c.l.b16 %v461
        %v2734 = vunpack.c.l.b16 %v462
        %v2735 = vunpack.c.l.b16 %v463
        %v2736 = vunpack.c.l.b16 %v464
        %v2737 = vunpack.c.l.b16 %v465
        %v2738 = vunpack.c.l.b16 %v466
        %v2739 = vunpack.c.l.b16 %v467
        %v2740 = vunpack.c.l.b16 %v468
        %v2741 = vunpack.c.l.b16 %v469
        %v2742 = vunpack.c.l.b16 %v470
        %v2743 = vunpack.c.l.b16 %v471
        %v2744 = vunpack.c.l.b16 %v472
        %v2745 = vunpack.c.l.b16 %v473
        %v2746 = vunpack.c.l.b16 %v474
        %v2747 = vunpack.c.l.b16 %v475
        %v2748 = vunpack.c.l.b16 %v476
        %v2749 = vunpack.c.l.b16 %v477
        %v2750 = vunpack.c.l.b16 %v478
        %v2751 = vunpack.c.l.b16 %v479
        %v2752 = vunpack.c.l.b16 %v480
        %v2753 = vunpack.c.l.b16 %v481
        %v2754 = vunpack.c.l.b16 %v482
        %v2755 = vunpack.c.l.b16 %v483
        %v2756 = vunpack.c.l.b16 %v484
        %v2757 = vunpack.c.l.b16 %v485
        %v2758 = vunpack.c.l.b16 %v486
        %v2759 = vunpack.c.l.b16 %v487
        %v2760 = vunpack.c.l.b16 %v488
        %v2761 = vunpack.c.l.b16 %v489
        %v2762 = vunpack.c.l.b16 %v490
        %v2763 = vunpack.c.l.b16 %v491
        %v2764 = vunpack.c.l.b16 %v492
        %v2765 = vunpack.c.l.b16 %v493
        %v2766 = vunpack.c.l.b16 %v494
        %v2767 = vunpack.c.l.b16 %v495
        %v2768 = vunpack.c.l.b16 %v496
        %v2769 = vunpack.c.l.b16 %v497
        %v2770 = vunpack.c.l.b16 %v498
        %v2771 = vunpack.c.l.b16 %v499
        %v2772 = vunpack.c.l.b16 %v500
        %v2773 = vunpack.c.l.b16 %v501
        %v2774 = vunpack.c.l.b16 %v502
        %v2775 = vunpack.c.l.b16 %v503
        %v2776 = vunpack.c.l.b16 %v504
        %v2777 = vunpack.c.l.b16 %v505
        %v2778 = vunpack.c.l.b16 %v506
        %v2779 = vunpack.c.l.b16 %v507
        %v2780 = vunpack.c.l.b16 %v508
        %v2781 = vunpack.c.l.b16 %v509
        %v2782 = vunpack.c.l.b16 %v510
        %v2783 = vunpack.c.l.b16 %v511
        %v2784 = vunpack.c.l.b16 %v512
        %v2785 = vunpack.c.l.b16 %v513
        %v2786 = vunpack.c.l.b16 %v514
        %v2787 = vunpack.c.l.b16 %v515
        %v2788 = vunpack.c.l.b16 %v516
        %v2789 = vunpack.c.l.b16 %v517
        %v2790 = vunpack.c.l.b16 %v518
        %v2791 = vunpack.c.l.b16 %v519
        %v2792 = vunpack.c.l.b16 %v520
        %v2793 = vunpack.c.l.b16 %v521
        %v2794 = vunpack.c.l.b16 %v522
        %v2795 = vunpack.c.l.b16 %v523
        %v2796 = vunpack.c.l.b16 %v524
        %v2797 = vunpack.c.l.b16 %v525
        %v2798 = vunpack.c.l.b16 %v526
        %v2799 = vunpack.c.l.b16 %v527
        %v2800 = vunpack.c.l.b16 %v528
        %v2801 = vunpack.c.l.b16 %v529
        %v2802 = vunpack.c.l.b16 %v530
        %v2803 = vunpack.c.l.b16 %v531
        %v2804 = vunpack.c.l.b16 %v532
        %v2805 = vunpack.c.l.b16 %v533
        %v2806 = vunpack.c.l.b16 %v534
        %v2807 = vunpack.c.l.b16 %v535
        %v2808 = vunpack.c.l.b16 %v536
        %v2809 = vunpack.c.l.b16 %v537
        %v2810 = vunpack.c.l.b16 %v538
        %v2811 = vunpack.c.l.b16 %v539
        %v2812 = vunpack.c.l.b16 %v540
        %v2813 = vunpack.c.l.b16 %v541
        %v2814 = vunpack.c.l.b16 %v542
        %v2815 = vunpack.c.l.b16 %v543
        %v2816 = vunpack.c.l.b16 %v544
        %v2817 = vunpack.c.l.b16 %v545
        %v2818 = vunpack.c.l.b16 %v546
        %v2819 = vunpack.c.l.b16 %v547
        %v2820 = vunpack.c.l.b16 %v548
        %v2821 = vunpack.c.l.b16 %v549
        %v2822 = vunpack.c.l.b16 %v550
        %v2823 = vunpack.c.l.b16 %v551
        %v2824 = vunpack.c.l.b16 %v552
        %v2825 = vunpack.c.l.b16 %v553
        %v2826 = vunpack.c.l.b16 %v554
        %v2827 = vunpack.c.l.b16 %v555
        %v2828 = vunpack.c.l.b16 %v556
        %v2829 = vunpack.c.l.b16 %v557
        %v2830 = vunpack.c.l.b16 %v558
        %v2831 = vunpack.c.l.b16 %v559
        %v2832 = vunpack.c.l.b16 %v560
        %v2833 = vunpack.c.l.b16 %v561
        %v2834 = vunpack.c.l.b16 %v562
        %v2835 = vunpack.c.l.b16 %v563
        %v2836 = vunpack.c.l.b16 %v564
        %v2837 = vunpack.c.l.b16 %v565
        %v2838 = vunpack.c.l.b16 %v566
        %v2839 = vunpack.c.l.b16 %v567
        %v2840 = vunpack.c.l.b16 %v568
        %v2841 = vunpack.c.l.b16 %v569
        %v2842 = vunpack.c.l.b16 %v570
        %v2843 = vunpack.c.l.b16 %v571
        %v2844 = vunpack.c.l.b16 %v572
        %v2845 = vunpack.c.l.b16 %v573
        %v2846 = vunpack.c.l.b16 %v574
        %v2847 = vunpack.c.l.b16 %v575
        %v2848 = vunpack.c.l.b16 %v576
        %v2849 = vunpack.c.l.b16 %v577
        %v2850 = vunpack.c.l.b16 %v578
        %v2851 = vunpack.c.l.b16 %v579
        %v2852 = vunpack.c.l.b16 %v580
        %v2853 = vunpack.c.l.b16 %v581
        %v2854 = vunpack.c.l.b16 %v582
        %v2855 = vunpack.c.l.b16 %v583
        %v2856 = vunpack.c.l.b16 %v584
        %v2857 = vunpack.c.l.b16 %v585
        %v2858 = vunpack.c.l.b16 %v586
        %v2859 = vunpack.c.l.b16 %v587
        %v2860 = vunpack.c.l.b16 %v588
        %v2861 = vunpack.c.l.b16 %v589
        %v2862 = vunpack.c.l.b16 %v590
        %v2863 = vunpack.c.l.b16 %v591
        %v2864 = vunpack.c.l.b16 %v592
        %v2865 = vunpack.c.l.b16 %v593
        %v2866 = vunpack.c.l.b16 %v594
        %v2867 = vunpack.c.l.b16 %v595
        %v2868 = vunpack.c.l.b16 %v596
        %v2869 = vunpack.c.l.b16 %v597
        %v2870 = vunpack.c.l.b16 %v598
        %v2871 = vunpack.c.l.b16 %v599
        %v2872 = vunpack.c.l.b16 %v600
        %v2873 = vunpack.c.l.b16 %v601
        %v2874 = vunpack.c.l.b16 %v602
        %v2875 = vunpack.c.l.b16 %v603
        %v2876 = vunpack.c.l.b16 %v604
        %v2877 = vunpack.c.l.b16 %v605
        %v2878 = vunpack.c.l.b16 %v606
        %v2879 = vunpack.c.l.b16 %v607
        %v2880 = vunpack.c.l.b16 %v608
        %v2881 = vunpack.c.l.b16 %v609
        %v2882 = vunpack.c.l.b16 %v610
        %v2883 = vunpack.c.l.b16 %v611
        %v2884 = vunpack.c.l.b16 %v612
        %v2885 = vunpack.c.l.b16 %v613
        %v2886 = vunpack.c.l.b16 %v614
        %v2887 = vunpack.c.l.b16 %v615
        %v2888 = vunpack.c.l.b16 %v616
        %v2889 = vunpack.c.l.b16 %v617
        %v2890 = vunpack.c.l.b16 %v618
        %v2891 = vunpack.c.l.b16 %v619
        %v2892 = vunpack.c.l.b16 %v620
        %v2893 = vunpack.c.l.b16 %v621
        %v2894 = vunpack.c.l.b16 %v622
        %v2895 = vunpack.c.l.b16 %v623
        %v2896 = vunpack.c.l.b16 %v624
        %v2897 = vunpack.c.l.b16 %v625
        %v2898 = vunpack.c.l.b16 %v626
        %v2899 = vunpack.c.l.b16 %v627
        %v2900 = vunpack.c.l.b16 %v628
        %v2901 = vunpack.c.l.b16 %v629
        %v2902 = vunpack.c.l.b16 %v630
        %v2903 = vunpack.c.l.b16 %v631
        %v2904 = vunpack.c.l.b16 %v632
        %v2905 = vunpack.c.l.b16 %v633
        %v2906 = vunpack.c.l.b16 %v634
        %v2907 = vunpack.c.l.b16 %v635
        %v2908 = vunpack.c.l.b16 %v636
        %v2909 = vunpack.c.l.b16 %v637
        %v2910 = vunpack.c.l.b16 %v638
        %v2911 = vunpack.c.l.b16 %v639
        %v2912 = vunpack.c.l.b16 %v640
        %v2913 = vunpack.c.l.b16 %v641
        %v2914 = vunpack.c.l.b16 %v642
        %v2915 = vunpack.c.l.b16 %v643
        %v2916 = vunpack.c.l.b16 %v644
        %v2917 = vunpack.c.l.b16 %v645
        %v2918 = vunpack.c.l.b16 %v646
        %v2919 = vunpack.c.l.b16 %v647
        %v2920 = vunpack.c.l.b16 %v648
        %v2921 = vunpack.c.l.b16 %v649
        %v2922 = vunpack.c.l.b16 %v650
        %v2923 = vunpack.c.l.b16 %v651
        %v2924 = vunpack.c.l.b16 %v652
        %v2925 = vunpack.c.l.b16 %v653
        %v2926 = vunpack.c.l.b16 %v654
        %v2927 = vunpack.c.l.b16 %v655
        %v2928 = vunpack.c.l.b16 %v656
        %v2929 = vunpack.c.l.b16 %v657
        %v2930 = vunpack.c.l.b16 %v658
        %v2931 = vunpack.c.l.b16 %v659
        %v2932 = vunpack.c.l.b16 %v660
        %v2933 = vunpack.c.l.b16 %v661
        %v2934 = vunpack.c.l.b16 %v662
        %v2935 = vunpack.c.l.b16 %v663
        %v2936 = vunpack.c.l.b16 %v664
        %v2937 = vunpack.c.l.b16 %v665
        %v2938 = vunpack.c.l.b16 %v666
        %v2939 = vunpack.c.l.b16 %v667
        %v2940 = vunpack.c.l.b16 %v668
        %v2941 = vunpack.c.l.b16 %v669
        %v2942 = vunpack.c.l.b16 %v670
        %v2943 = vunpack.c.l.b16 %v671
        %v2944 = vunpack.c.l.b16 %v672
        %v2945 = vunpack.c.l.b16 %v673
        %v2946 = vunpack.c.l.b16 %v674
        %v2947 = vunpack.c.l.b16 %v675
        %v2948 = vunpack.c.l.b16 %v676
        %v2949 = vunpack.c.l.b16 %v677
        %v2950 = vunpack.c.l.b16 %v678
        %v2951 = vunpack.c.l.b16 %v679
        %v2952 = vunpack.c.l.b16 %v680
        %v2953 = vunpack.c.l.b16 %v681
        %v2954 = vunpack.c.l.b16 %v682
        %v2955 = vunpack.c.l.b16 %v683
        %v2956 = vunpack.c.l.b16 %v684
        %v2957 = vunpack.c.l.b16 %v685
        %v2958 = vunpack.c.l.b16 %v686
        %v2959 = vunpack.c.l.b16 %v687
        %v2960 = vunpack.c.l.b16 %v688
        %v2961 = vunpack.c.l.b16 %v689
        %v2962 = vunpack.c.l.b16 %v690
        %v2963 = vunpack.c.l.b16 %v691
        %v2964 = vunpack.c.l.b16 %v692
        %v2965 = vunpack.c.l.b16 %v693
        %v2966 = vunpack.c.l.b16 %v694
        %v2967 = vunpack.c.l.b16 %v695
        %v2968 = vunpack.c.l.b16 %v696
        %v2969 = vunpack.c.l.b16 %v697
        %v2970 = vunpack.c.l.b16 %v698
        %v2971 = vunpack.c.l.b16 %v699
        %v2972 = vunpack.c.l.b16 %v700
        %v2973 = vunpack.c.l.b16 %v701
        %v2974 = vunpack.c.l.b16 %v702
        %v2975 = vunpack.c.l.b16 %v703
        %v2976 = vunpack.c.l.b16 %v704
        %v2977 = vunpack.c.l.b16 %v705
        %v2978 = vunpack.c.l.b16 %v706
        %v2979 = vunpack.c.l.b16 %v707
        %v2980 = vunpack.c.l.b16 %v708
        %v2981 = vunpack.c.l.b16 %v709
        %v2982 = vunpack.c.l.b16 %v710
        %v2983 = vunpack.c.l.b16 %v711
        %v2984 = vunpack.c.l.b16 %v712
        %v2985 = vunpack.c.l.b16 %v713
        %v2986 = vunpack.c.l.b16 %v714
        %v2987 = vunpack.c.l.b16 %v715
        %v2988 = vunpack.c.l.b16 %v716
        %v2989 = vunpack.c.l.b16 %v717
        %v2990 = vunpack.c.l.b16 %v718
        %v2991 = vunpack.c.l.b16 %v719
        %v2992 = vunpack.c.l.b16 %v720
        %v2993 = vunpack.c.l.b16 %v721
        %v2994 = vunpack.c.l.b16 %v722
        %v2995 = vunpack.c.l.b16 %v723
        %v2996 = vunpack.c.l.b16 %v724
        %v2997 = vunpack.c.l.b16 %v725
        %v2998 = vunpack.c.l.b16 %v726
        %v2999 = vunpack.c.l.b16 %v727
        %v3000 = vunpack.c.l.b16 %v728
        %v3001 = vunpack.c.l.b16 %v729
        %v3002 = vunpack.c.l.b16 %v730
        %v3003 = vunpack.c.l.b16 %v731
        %v3004 = vunpack.c.l.b16 %v732
        %v3005 = vunpack.c.l.b16 %v733
        %v3006 = vunpack.c.l.b16 %v734
        %v3007 = vunpack.c.l.b16 %v735
        %v3008 = vunpack.c.l.b16 %v736
        %v3009 = vunpack.c.l.b16 %v737
        %v3010 = vunpack.c.l.b16 %v738
        %v3011 = vunpack.c.l.b16 %v739
        %v3012 = vunpack.c.l.b16 %v740
        %v3013 = vunpack.c.l.b16 %v741
        %v3014 = vunpack.c.l.b16 %v742
        %v3015 = vunpack.c.l.b16 %v743
        %v3016 = vunpack.c.l.b16 %v744
        %v3017 = vunpack.c.l.b16 %v745
        %v3018 = vunpack.c.l.b16 %v746
        %v3019 = vunpack.c.l.b16 %v747
        %v3020 = vunpack.c.l.b16 %v748
        %v3021 = vunpack.c.l.b16 %v749
        %v3022 = vunpack.c.l.b16 %v750
        %v3023 = vunpack.c.l.b16 %v751
        %v3024 = vunpack.c.l.b16 %v752
        %v3025 = vunpack.c.l.b16 %v753
        %v3026 = vunpack.c.l.b16 %v754
        %v3027 = vunpack.c.l.b16 %v755
        %v3028 = vunpack.c.l.b16 %v756
        %v3029 = vunpack.c.l.b16 %v757
        %v3030 = vunpack.c.l.b16 %v758
        %v3031 = vunpack.c.l.b16 %v759
        %v3032 = vunpack.c.l.b16 %v760
        %v3033 = vunpack.c.l.b16 %v761
        %v3034 = vunpack.c.l.b16 %v762
        %v3035 = vunpack.c.l.b16 %v763
        %v3036 = vunpack.c.l.b16 %v764
        %v3037 = vunpack.c.l.b16 %v765
        %v3038 = vunpack.c.l.b16 %v766
        %v3039 = vunpack.c.l.b16 %v767
        %v3040 = vunpack.c.l.b16 %v768
        %v3041 = vunpack.c.l.b16 %v769
        %v3042 = vunpack.c.l.b16 %v770
        %v3043 = vunpack.c.l.b16 %v771
        %v3044 = vunpack.c.l.b16 %v772
        %v3045 = vunpack.c.l.b16 %v773
        %v3046 = vunpack.c.l.b16 %v774
        %v3047 = vunpack.c.l.b16 %v775
        %v3048 = vunpack.c.l.b16 %v776
        %v3049 = vunpack.c.l.b16 %v777
        %v3050 = vunpack.c.l.b16 %v778
        %v3051 = vunpack.c.l.b16 %v779
        %v3052 = vunpack.c.l.b16 %v780
        %v3053 = vunpack.c.l.b16 %v781
        %v3054 = vunpack.c.l.b16 %v782
        %v3055 = vunpack.c.l.b16 %v783
        %v3056 = vunpack.c.l.b16 %v784
        %v3057 = vunpack.c.l.b16 %v785
        %v3058 = vunpack.c.l.b16 %v786
        %v3059 = vunpack.c.l.b16 %v787
        %v3060 = vunpack.c.l.b16 %v788
        %v3061 = vunpack.c.l.b16 %v789
        %v3062 = vunpack.c.l.b16 %v790
        %v3063 = vunpack.c.l.b16 %v791
        %v3064 = vunpack.c.l.b16 %v792
        %v3065 = vunpack.c.l.b16 %v793
        %v3066 = vunpack.c.l.b16 %v794
        %v3067 = vunpack.c.l.b16 %v795
        %v3068 = vunpack.c.l.b16 %v796
        %v3069 = vunpack.c.l.b16 %v797
        %v3070 = vunpack.c.l.b16 %v798
        %v3071 = vunpack.c.l.b16 %v799
        %v3072 = vunpack.c.l.b16 %v800
        %v3073 = vunpack.c.l.b16 %v801
        %v3074 = vunpack.c.l.b16 %v802
        %v3075 = vunpack.c.l.b16 %v803
        %v3076 = vunpack.c.l.b16 %v804
        %v3077 = vunpack.c.l.b16 %v805
        %v3078 = vunpack.c.l.b16 %v806
        %v3079 = vunpack.c.l.b16 %v807
        %v3080 = vunpack.c.l.b16 %v808
        %v3081 = vunpack.c.l.b16 %v809
        %v3082 = vunpack.c.l.b16 %v810
        %v3083 = vunpack.c.l.b16 %v811
        %v3084 = vunpack.c.l.b16 %v812
        %v3085 = vunpack.c.l.b16 %v813
        %v3086 = vunpack.c.l.b16 %v814
        %v3087 = vunpack.c.l.b16 %v815
        %v3088 = vunpack.c.l.b16 %v816
        %v3089 = vunpack.c.l.b16 %v817
        %v3090 = vunpack.c.l.b16 %v818
        %v3091 = vunpack.c.l.b16 %v819
        %v3092 = vunpack.c.l.b16 %v820
        %v3093 = vunpack.c.l.b16 %v821
        %v3094 = vunpack.c.l.b16 %v822
        %v3095 = vunpack.c.l.b16 %v823
        %v3096 = vunpack.c.l.b16 %v824
        %v3097 = vunpack.c.l.b16 %v825
        %v3098 = vunpack.c.l.b16 %v826
        %v3099 = vunpack.c.l.b16 %v827
        %v3100 = vunpack.c.l.b16 %v828
        %v3101 = vunpack.c.l.b16 %v829
        %v3102 = vunpack.c.l.b16 %v830
        %v3103 = vunpack.c.l.b16 %v831
        %v3104 = vunpack.c.l.b16 %v832
        %v3105 = vunpack.c.l.b16 %v833
        %v3106 = vunpack.c.l.b16 %v834
        %v3107 = vunpack.c.l.b16 %v835
        %v3108 = vunpack.c.l.b16 %v836
        %v3109 = vunpack.c.l.b16 %v837
        %v3110 = vunpack.c.l.b16 %v838
        %v3111 = vunpack.c.l.b16 %v839
        %v3112 = vunpack.c.l.b16 %v840
        %v3113 = vunpack.c.l.b16 %v841
        %v3114 = vunpack.c.l.b16 %v842
        %v3115 = vunpack.c.l.b16 %v843
        %v3116 = vunpack.c.l.b16 %v844
        %v3117 = vunpack.c.l.b16 %v845
        %v3118 = vunpack.c.l.b16 %v846
        %v3119 = vunpack.c.l.b16 %v847
        %v3120 = vunpack.c.l.b16 %v848
        %v3121 = vunpack.c.l.b16 %v849
        %v3122 = vunpack.c.l.b16 %v850
        %v3123 = vunpack.c.l.b16 %v851
        %v3124 = vunpack.c.l.b16 %v852
        %v3125 = vunpack.c.l.b16 %v853
        %v3126 = vunpack.c.l.b16 %v854
        %v3127 = vunpack.c.l.b16 %v855
        %v3128 = vunpack.c.l.b16 %v856
        %v3129 = vunpack.c.l.b16 %v857
        %v3130 = vunpack.c.l.b16 %v858
        %v3131 = vunpack.c.l.b16 %v859
        %v3132 = vunpack.c.l.b16 %v860
        %v3133 = vunpack.c.l.b16 %v861
        %v3134 = vunpack.c.l.b16 %v862
        %v3135 = vunpack.c.l.b16 %v863
        %v3136 = vunpack.c.l.b16 %v864
        %v3137 = vunpack.c.l.b16 %v865
        %v3138 = vunpack.c.l.b16 %v866
        %v3139 = vunpack.c.l.b16 %v867
        %v3140 = vunpack.c.l.b16 %v868
        %v3141 = vunpack.c.l.b16 %v869
        %v3142 = vunpack.c.l.b16 %v870
        %v3143 = vunpack.c.l.b16 %v871
        %v3144 = vunpack.c.l.b16 %v872
        %v3145 = vunpack.c.l.b16 %v873
        %v3146 = vunpack.c.l.b16 %v874
        %v3147 = vunpack.c.l.b16 %v875
        %v3148 = vunpack.c.l.b16 %v876
        %v3149 = vunpack.c.l.b16 %v877
        %v3150 = vunpack.c.l.b16 %v878
        %v3151 = vunpack.c.l.b16 %v879
        %v3152 = vunpack.c.l.b16 %v880
        %v3153 = vunpack.c.l.b16 %v881
        %v3154 = vunpack.c.l.b16 %v882
        %v3155 = vunpack.c.l.b16 %v883
        %v3156 = vunpack.c.l.b16 %v884
        %v3157 = vunpack.c.l.b16 %v885
        %v3158 = vunpack.c.l.b16 %v886
        %v3159 = vunpack.c.l.b16 %v887
        %v3160 = vunpack.c.l.b16 %v888
        %v3161 = vunpack.c.l.b16 %v889
        %v3162 = vunpack.c.l.b16 %v890
        %v3163 = vunpack.c.l.b16 %v891
        %v3164 = vunpack.c.l.b16 %v892
        %v3165 = vunpack.c.l.b16 %v893
        %v3166 = vunpack.c.l.b16 %v894
        %v3167 = vunpack.c.l.b16 %v895
        %v3168 = vunpack.c.l.b16 %v896
        %v3169 = vunpack.c.l.b16 %v897
        %v3170 = vunpack.c.l.b16 %v898
        %v3171 = vunpack.c.l.b16 %v899
        %v3172 = vunpack.c.l.b16 %v900
        %v3173 = vunpack.c.l.b16 %v901
        %v3174 = vunpack.c.l.b16 %v902
        %v3175 = vunpack.c.l.b16 %v903
        %v3176 = vunpack.c.l.b16 %v904
        %v3177 = vunpack.c.l.b16 %v905
        %v3178 = vunpack.c.l.b16 %v906
        %v3179 = vunpack.c.l.b16 %v907
        %v3180 = vunpack.c.l.b16 %v908
        %v3181 = vunpack.c.l.b16 %v909
        %v3182 = vunpack.c.l.b16 %v910
        %v3183 = vunpack.c.l.b16 %v911
        %v3184 = vunpack.c.l.b16 %v912
        %v3185 = vunpack.c.l.b16 %v913
        %v3186 = vunpack.c.l.b16 %v914
        %v3187 = vunpack.c.l.b16 %v915
        %v3188 = vunpack.c.l.b16 %v916
        %v3189 = vunpack.c.l.b16 %v917
        %v3190 = vunpack.c.l.b16 %v918
        %v3191 = vunpack.c.l.b16 %v919
        %v3192 = vunpack.c.l.b16 %v920
        %v3193 = vunpack.c.l.b16 %v921
        %v3194 = vunpack.c.l.b16 %v922
        %v3195 = vunpack.c.l.b16 %v923
        %v3196 = vunpack.c.l.b16 %v924
        %v3197 = vunpack.c.l.b16 %v925
        %v3198 = vunpack.c.l.b16 %v926
        %v3199 = vunpack.c.l.b16 %v927
        %v3200 = vunpack.c.l.b16 %v928
        %v3201 = vunpack.c.l.b16 %v929
        %v3202 = vunpack.c.l.b16 %v930
        %v3203 = vunpack.c.l.b16 %v931
        %v3204 = vunpack.c.l.b16 %v932
        %v3205 = vunpack.c.l.b16 %v933
        %v3206 = vunpack.c.l.b16 %v934
        %v3207 = vunpack.c.l.b16 %v935
        %v3208 = vunpack.c.l.b16 %v936
        %v3209 = vunpack.c.l.b16 %v937
        %v3210 = vunpack.c.l.b16 %v938
        %v3211 = vunpack.c.l.b16 %v939
        %v3212 = vunpack.c.l.b16 %v940
        %v3213 = vunpack.c.l.b16 %v941
        %v3214 = vunpack.c.l.b16 %v942
        %v3215 = vunpack.c.l.b16 %v943
        %v3216 = vunpack.c.l.b16 %v944
        %v3217 = vunpack.c.l.b16 %v945
        %v3218 = vunpack.c.l.b16 %v946
        %v3219 = vunpack.c.l.b16 %v947
        %v3220 = vunpack.c.l.b16 %v948
        %v3221 = vunpack.c.l.b16 %v949
        %v3222 = vunpack.c.l.b16 %v950
        %v3223 = vunpack.c.l.b16 %v951
        %v3224 = vunpack.c.l.b16 %v952
        %v3225 = vunpack.c.l.b16 %v953
        %v3226 = vunpack.c.l.b16 %v954
        %v3227 = vunpack.c.l.b16 %v955
        %v3228 = vunpack.c.l.b16 %v956
        %v3229 = vunpack.c.l.b16 %v957
        %v3230 = vunpack.c.l.b16 %v958
        %v3231 = vunpack.c.l.b16 %v959
        %v3232 = vunpack.c.l.b16 %v960
        %v3233 = vunpack.c.l.b16 %v961
        %v3234 = vunpack.c.l.b16 %v962
        %v3235 = vunpack.c.l.b16 %v963
        %v3236 = vunpack.c.l.b16 %v964
        %v3237 = vunpack.c.l.b16 %v965
        %v3238 = vunpack.c.l.b16 %v966
        %v3239 = vunpack.c.l.b16 %v967
        %v3240 = vunpack.c.l.b16 %v968
        %v3241 = vunpack.c.l.b16 %v969
        %v3242 = vunpack.c.l.b16 %v970
        %v3243 = vunpack.c.l.b16 %v971
        %v3244 = vunpack.c.l.b16 %v972
        %v3245 = vunpack.c.l.b16 %v973
        %v3246 = vunpack.c.l.b16 %v974
        %v3247 = vunpack.c.l.b16 %v975
        %v3248 = vunpack.c.l.b16 %v976
        %v3249 = vunpack.c.l.b16 %v977
        %v3250 = vunpack.c.l.b16 %v978
        %v3251 = vunpack.c.l.b16 %v979
        %v3252 = vunpack.c.l.b16 %v980
        %v3253 = vunpack.c.l.b16 %v981
        %v3254 = vunpack.c.l.b16 %v982
        %v3255 = vunpack.c.l.b16 %v983
        %v3256 = vunpack.c.l.b16 %v984
        %v3257 = vunpack.c.l.b16 %v985
        %v3258 = vunpack.c.l.b16 %v986
        %v3259 = vunpack.c.l.b16 %v987
        %v3260 = vunpack.c.l.b16 %v988
        %v3261 = vunpack.c.l.b16 %v989
        %v3262 = vunpack.c.l.b16 %v990
        %v3263 = vunpack.c.l.b16 %v991
        %v3264 = vunpack.c.l.b16 %v992
        %v3265 = vunpack.c.l.b16 %v993
        %v3266 = vunpack.c.l.b16 %v994
        %v3267 = vunpack.c.l.b16 %v995
        %v3268 = vunpack.c.l.b16 %v996
        %v3269 = vunpack.c.l.b16 %v997
        %v3270 = vunpack.c.l.b16 %v998
        %v3271 = vunpack.c.l.b16 %v999
        %v3272 = vunpack.c.l.b16 %v1000
        %v3273 = vunpack.c.l.b16 %v1001
        %v3274 = vunpack.c.l.b16 %v1002
        %v3275 = vunpack.c.l.b16 %v1003
        %v3276 = vunpack.c.l.b16 %v1004
        %v3277 = vunpack.c.l.b16 %v1005
        %v3278 = vunpack.c.l.b16 %v1006
        %v3279 = vunpack.c.l.b16 %v1007
        %v3280 = vunpack.c.l.b16 %v1008
        %v3281 = vunpack.c.l.b16 %v1009
        %v3282 = vunpack.c.l.b16 %v1010
        %v3283 = vunpack.c.l.b16 %v1011
        %v3284 = vunpack.c.l.b16 %v1012
        %v3285 = vunpack.c.l.b16 %v1013
        %v3286 = vunpack.c.l.b16 %v1014
        %v3287 = vunpack.c.l.b16 %v1015
        %v3288 = vunpack.c.l.b16 %v1016
        %v3289 = vunpack.c.l.b16 %v1017
        %v3290 = vunpack.c.l.b16 %v1018
        %v3291 = vunpack.c.l.b16 %v1019
        %v3292 = vunpack.c.l.b16 %v1020
        %v3293 = vunpack.c.l.b16 %v1021
        %v3294 = vunpack.c.l.b16 %v1022
        %v3295 = vunpack.c.l.b16 %v1023
        %v3296 = vunpack.c.l.b16 %v1024
        %v3297 = vunpack.c.l.b16 %v1025
        %v3298 = vunpack.c.l.b16 %v1026
        %v3299 = vunpack.c.l.b16 %v1027
        %v3300 = vunpack.c.l.b16 %v1028
        %v3301 = vunpack.c.l.b16 %v1029
        %v3302 = vunpack.c.l.b16 %v1030
        %v3303 = vunpack.c.l.b16 %v1031
        %v3304 = vunpack.c.l.b16 %v1032
        %v3305 = vunpack.c.l.b16 %v1033
        %v3306 = vunpack.c.l.b16 %v1034
        %v3307 = vunpack.c.l.b16 %v1035
        %v3308 = vunpack.c.l.b16 %v1036
        %v3309 = vunpack.c.l.b16 %v1037
        %v3310 = vunpack.c.l.b16 %v1038
        %v3311 = vunpack.c.l.b16 %v1039
        %v3312 = vunpack.c.l.b16 %v1040
        %v3313 = vunpack.c.l.b16 %v1041
        %v3314 = vunpack.c.l.b16 %v1042
        %v3315 = vunpack.c.l.b16 %v1043
        %v3316 = vunpack.c.l.b16 %v1044
        %v3317 = vunpack.c.l.b16 %v1045
        %v3318 = vunpack.c.l.b16 %v1046
        %v3319 = vunpack.c.l.b16 %v1047
        %v3320 = vunpack.c.l.b16 %v1048
        %v3321 = vunpack.c.l.b16 %v1049
        %v3322 = vunpack.c.l.b16 %v1050
        %v3323 = vunpack.c.l.b16 %v1051
        %v3324 = vunpack.c.l.b16 %v1052
        %v3325 = vunpack.c.l.b16 %v1053
        %v3326 = vunpack.c.l.b16 %v1054
        %v3327 = vunpack.c.l.b16 %v1055
        %v3328 = vunpack.c.l.b16 %v1056
        %v3329 = vunpack.c.l.b16 %v1057
        %v3330 = vunpack.c.l.b16 %v1058
        %v3331 = vunpack.c.l.b16 %v1059
        %v3332 = vunpack.c.l.b16 %v1060
        %v3333 = vunpack.c.l.b16 %v1061
        %v3334 = vunpack.c.l.b16 %v1062
        %v3335 = vunpack.c.l.b16 %v1063
        %v3336 = vunpack.c.l.b16 %v1064
        %v3337 = vunpack.c.l.b16 %v1065
        %v3338 = vunpack.c.l.b16 %v1066
        %v3339 = vunpack.c.l.b16 %v1067
        %v3340 = vunpack.c.l.b16 %v1068
        %v3341 = vunpack.c.l.b16 %v1069
        %v3342 = vunpack.c.l.b16 %v1070
        %v3343 = vunpack.c.l.b16 %v1071
        %v3344 = vunpack.c.l.b16 %v1072
        %v3345 = vunpack.c.l.b16 %v1073
        %v3346 = vunpack.c.l.b16 %v1074
        %v3347 = vunpack.c.l.b16 %v1075
        %v3348 = vunpack.c.l.b16 %v1076
        %v3349 = vunpack.c.l.b16 %v1077
        %v3350 = vunpack.c.l.b16 %v1078
        %v3351 = vunpack.c.l.b16 %v1079
        %v3352 = vunpack.c.l.b16 %v1080
        %v3353 = vunpack.c.l.b16 %v1081
        %v3354 = vunpack.c.l.b16 %v1082
        %v3355 = vunpack.c.l.b16 %v1083
        %v3356 = vunpack.c.l.b16 %v1084
        %v3357 = vunpack.c.l.b16 %v1085
        %v3358 = vunpack.c.l.b16 %v1086
        %v3359 = vunpack.c.l.b16 %v1087
        %v3360 = vunpack.c.l.b16 %v1088
        %v3361 = vunpack.c.l.b16 %v1089
        %v3362 = vunpack.c.l.b16 %v1090
        %v3363 = vunpack.c.l.b16 %v1091
        %v3364 = vunpack.c.l.b16 %v1092
        %v3365 = vunpack.c.l.b16 %v1093
        %v3366 = vunpack.c.l.b16 %v1094
        %v3367 = vunpack.c.l.b16 %v1095
        %v3368 = vunpack.c.l.b16 %v1096
        %v3369 = vunpack.c.l.b16 %v1097
        %v3370 = vunpack.c.l.b16 %v1098
        %v3371 = vunpack.c.l.b16 %v1099
        %v3372 = vunpack.c.l.b16 %v1100
        %v3373 = vunpack.c.l.b16 %v1101
        %v3374 = vunpack.c.l.b16 %v1102
        %v3375 = vunpack.c.l.b16 %v1103
        %v3376 = vunpack.c.l.b16 %v1104
        %v3377 = vunpack.c.l.b16 %v1105
        %v3378 = vunpack.c.l.b16 %v1106
        %v3379 = vunpack.c.l.b16 %v1107
        %v3380 = vunpack.c.l.b16 %v1108
        %v3381 = vunpack.c.l.b16 %v1109
        %v3382 = vunpack.c.l.b16 %v1110
        %v3383 = vunpack.c.l.b16 %v1111
        %v3384 = vunpack.c.l.b16 %v1112
        %v3385 = vunpack.c.l.b16 %v1113
        %v3386 = vunpack.c.l.b16 %v1114
        %v3387 = vunpack.c.l.b16 %v1115
        %v3388 = vunpack.c.l.b16 %v1116
        %v3389 = vunpack.c.l.b16 %v1117
        %v3390 = vunpack.c.l.b16 %v1118
        %v3391 = vunpack.c.l.b16 %v1119
        %v3392 = vunpack.c.l.b16 %v1120
        %v3393 = vunpack.c.l.b16 %v1121
        %v3394 = vunpack.c.l.b16 %v1122
        %v3395 = vunpack.c.l.b16 %v1123
        %v3396 = vunpack.c.l.b16 %v1124
        %v3397 = vunpack.c.l.b16 %v1125
        %v3398 = vunpack.c.l.b16 %v1126
        %v3399 = vunpack.c.l.b16 %v1127
        %v3400 = vunpack.c.l.b16 %v1128
        %v3401 = vunpack.c.l.b16 %v1129
        %v3402 = vunpack.c.l.b16 %v1130
        %v3403 = vunpack.c.l.b16 %v1131
        %v3404 = vunpack.c.l.b16 %v1132
        %v3405 = vunpack.c.l.b16 %v1133
        %v3406 = vunpack.c.l.b16 %v1134
        %v3407 = vunpack.c.l.b16 %v1135
        %v3408 = vunpack.c.l.b16 %v1136
        %v3409 = vunpack.c.l.b16 %v1137
        %v3410 = vunpack.c.l.b16 %v1138
        %v3411 = vunpack.c.l.b16 %v1139
        %v3412 = vunpack.c.l.b16 %v1140
        %v3413 = vunpack.c.l.b16 %v1141
        %v3414 = vunpack.c.l.b16 %v1142
        %v3415 = vunpack.c.l.b16 %v1143
        %v3416 = vunpack.c.l.b16 %v1144
        %v3417 = vunpack.c.l.b16 %v1145
        %v3418 = vunpack.c.l.b16 %v1146
        %v3419 = vunpack.c.l.b16 %v1147
        %v3420 = vunpack.c.l.b16 %v1148
        %v3421 = vunpack.c.l.b16 %v1149
        %v3422 = vunpack.c.l.b16 %v1150
        %v3423 = vunpack.c.l.b16 %v1151
        %v3424 = vunpack.c.l.b16 %v1152
        %v3425 = vunpack.c.l.b16 %v1153
        %v3426 = vunpack.c.l.b16 %v1154
        %v3427 = vunpack.c.l.b16 %v1155
        %v3428 = vunpack.c.l.b16 %v1156
        %v3429 = vunpack.c.l.b16 %v1157
        %v3430 = vunpack.c.l.b16 %v1158
        %v3431 = vunpack.c.l.b16 %v1159
        %v3432 = vunpack.c.l.b16 %v1160
        %v3433 = vunpack.c.l.b16 %v1161
        %v3434 = vunpack.c.l.b16 %v1162
        %v3435 = vunpack.c.l.b16 %v1163
        %v3436 = vunpack.c.l.b16 %v1164
        %v3437 = vunpack.c.l.b16 %v1165
        %v3438 = vunpack.c.l.b16 %v1166
        %v3439 = vunpack.c.l.b16 %v1167
        %v3440 = vunpack.c.l.b16 %v1168
        %v3441 = vunpack.c.l.b16 %v1169
        %v3442 = vunpack.c.l.b16 %v1170
        %v3443 = vunpack.c.l.b16 %v1171
        %v3444 = vunpack.c.l.b16 %v1172
        %v3445 = vunpack.c.l.b16 %v1173
        %v3446 = vunpack.c.l.b16 %v1174
        %v3447 = vunpack.c.l.b16 %v1175
        %v3448 = vunpack.c.l.b16 %v1176
        %v3449 = vunpack.c.l.b16 %v1177
        %v3450 = vunpack.c.l.b16 %v1178
        %v3451 = vunpack.c.l.b16 %v1179
        %v3452 = vunpack.c.l.b16 %v1180
        %v3453 = vunpack.c.l.b16 %v1181
        %v3454 = vunpack.c.l.b16 %v1182
        %v3455 = vunpack.c.l.b16 %v1183
        %v3456 = vunpack.c.l.b16 %v1184
        %v3457 = vunpack.c.l.b16 %v1185
        %v3458 = vunpack.c.l.b16 %v1186
        %v3459 = vunpack.c.l.b16 %v1187
        %v3460 = vunpack.c.l.b16 %v1188
        %v3461 = vunpack.c.l.b16 %v1189
        %v3462 = vunpack.c.l.b16 %v1190
        %v3463 = vunpack.c.l.b16 %v1191
        %v3464 = vunpack.c.l.b16 %v1192
        %v3465 = vunpack.c.l.b16 %v1193
        %v3466 = vunpack.c.l.b16 %v1194
        %v3467 = vunpack.c.l.b16 %v1195
        %v3468 = vunpack.c.l.b16 %v1196
        %v3469 = vunpack.c.l.b16 %v1197
        %v3470 = vunpack.c.l.b16 %v1198
        %v3471 = vunpack.c.l.b16 %v1199
        %v3472 = vunpack.c.l.b16 %v1200
        %v3473 = vunpack.c.l.b16 %v1201
        %v3474 = vunpack.c.l.b16 %v1202
        %v3475 = vunpack.c.l.b16 %v1203
        %v3476 = vunpack.c.l.b16 %v1204
        %v3477 = vunpack.c.l.b16 %v1205
        %v3478 = vunpack.c.l.b16 %v1206
        %v3479 = vunpack.c.l.b16 %v1207
        %v3480 = vunpack.c.l.b16 %v1208
        %v3481 = vunpack.c.l.b16 %v1209
        %v3482 = vunpack.c.l.b16 %v1210
        %v3483 = vunpack.c.l.b16 %v1211
        %v3484 = vunpack.c.l.b16 %v1212
        %v3485 = vunpack.c.l.b16 %v1213
        %v3486 = vunpack.c.l.b16 %v1214
        %v3487 = vunpack.c.l.b16 %v1215
        %v3488 = vunpack.c.l.b16 %v1216
        %v3489 = vunpack.c.l.b16 %v1217
        %v3490 = vunpack.c.l.b16 %v1218
        %v3491 = vunpack.c.l.b16 %v1219
        %v3492 = vunpack.c.l.b16 %v1220
        %v3493 = vunpack.c.l.b16 %v1221
        %v3494 = vunpack.c.l.b16 %v1222
        %v3495 = vunpack.c.l.b16 %v1223
        %v3496 = vunpack.c.l.b16 %v1224
        %v3497 = vunpack.c.l.b16 %v1225
        %v3498 = vunpack.c.l.b16 %v1226
        %v3499 = vunpack.c.l.b16 %v1227
        %v3500 = vunpack.c.l.b16 %v1228
        %v3501 = vunpack.c.l.b16 %v1229
        %v3502 = vunpack.c.l.b16 %v1230
        %v3503 = vunpack.c.l.b16 %v1231
        %v3504 = vunpack.c.l.b16 %v1232
        %v3505 = vunpack.c.l.b16 %v1233
        %v3506 = vunpack.c.l.b16 %v1234
        %v3507 = vunpack.c.l.b16 %v1235
        %v3508 = vunpack.c.l.b16 %v1236
        %v3509 = vunpack.c.l.b16 %v1237
        %v3510 = vunpack.c.l.b16 %v1238
        %v3511 = vunpack.c.l.b16 %v1239
        %v3512 = vunpack.c.l.b16 %v1240
        %v3513 = vunpack.c.l.b16 %v1241
        %v3514 = vunpack.c.l.b16 %v1242
        %v3515 = vunpack.c.l.b16 %v1243
        %v3516 = vunpack.c.l.b16 %v1244
        %v3517 = vunpack.c.l.b16 %v1245
        %v3518 = vunpack.c.l.b16 %v1246
        %v3519 = vunpack.c.l.b16 %v1247
        %v3520 = vunpack.c.l.b16 %v1248
        %v3521 = vunpack.c.l.b16 %v1249
        %v3522 = vunpack.c.l.b16 %v1250
        %v3523 = vunpack.c.l.b16 %v1251
        %v3524 = vunpack.c.l.b16 %v1252
        %v3525 = vunpack.c.l.b16 %v1253
        %v3526 = vunpack.c.l.b16 %v1254
        %v3527 = vunpack.c.l.b16 %v1255
        %v3528 = vunpack.c.l.b16 %v1256
        %v3529 = vunpack.c.l.b16 %v1257
        %v3530 = vunpack.c.l.b16 %v1258
        %v3531 = vunpack.c.l.b16 %v1259
        %v3532 = vunpack.c.l.b16 %v1260
        %v3533 = vunpack.c.l.b16 %v1261
        %v3534 = vunpack.c.l.b16 %v1262
        %v3535 = vunpack.c.l.b16 %v1263
        %v3536 = vunpack.c.l.b16 %v1264
        %v3537 = vunpack.c.l.b16 %v1265
        %v3538 = vunpack.c.l.b16 %v1266
        %v3539 = vunpack.c.l.b16 %v1267
        %v3540 = vunpack.c.l.b16 %v1268
        %v3541 = vunpack.c.l.b16 %v1269
        %v3542 = vunpack.c.l.b16 %v1270
        %v3543 = vunpack.c.l.b16 %v1271
        %v3544 = vunpack.c.l.b16 %v1272
        %v3545 = vunpack.c.l.b16 %v1273
        %v3546 = vunpack.c.l.b16 %v1274
        %v3547 = vunpack.c.l.b16 %v1275
        %v3548 = vunpack.c.l.b16 %v1276
        %v3549 = vunpack.c.l.b16 %v1277
        %v3550 = vunpack.c.l.b16 %v1278
        %v3551 = vunpack.c.l.b16 %v1279
        %v3552 = vunpack.c.l.b16 %v1280
        %v3553 = vunpack.c.l.b16 %v1281
        %v3554 = vunpack.c.l.b16 %v1282
        %v3555 = vunpack.c.l.b16 %v1283
        %v3556 = vunpack.c.l.b16 %v1284
        %v3557 = vunpack.c.l.b16 %v1285
        %v3558 = vunpack.c.l.b16 %v1286
        %v3559 = vunpack.c.l.b16 %v1287
        %v3560 = vunpack.c.l.b16 %v1288
        %v3561 = vunpack.c.l.b16 %v1289
        %v3562 = vunpack.c.l.b16 %v1290
        %v3563 = vunpack.c.l.b16 %v1291
        %v3564 = vunpack.c.l.b16 %v1292
        %v3565 = vunpack.c.l.b16 %v1293
        %v3566 = vunpack.c.l.b16 %v1294
        %v3567 = vunpack.c.l.b16 %v1295
        %v3568 = vunpack.c.l.b16 %v1296
        %v3569 = vunpack.c.l.b16 %v1297
        %v3570 = vunpack.c.l.b16 %v1298
        %v3571 = vunpack.c.l.b16 %v1299
        %v3572 = vunpack.c.l.b16 %v1300
        %v3573 = vunpack.c.l.b16 %v1301
        %v3574 = vunpack.c.l.b16 %v1302
        %v3575 = vunpack.c.l.b16 %v1303
        %v3576 = vunpack.c.l.b16 %v1304
        %v3577 = vunpack.c.l.b16 %v1305
        %v3578 = vunpack.c.l.b16 %v1306
        %v3579 = vunpack.c.l.b16 %v1307
        %v3580 = vunpack.c.l.b16 %v1308
        %v3581 = vunpack.c.l.b16 %v1309
        %v3582 = vunpack.c.l.b16 %v1310
        %v3583 = vunpack.c.l.b16 %v1311
        %v3584 = vunpack.c.l.b16 %v1312
        %v3585 = vunpack.c.l.b16 %v1313
        %v3586 = vunpack.c.l.b16 %v1314
        %v3587 = vunpack.c.l.b16 %v1315
        %v3588 = vunpack.c.l.b16 %v1316
        %v3589 = vunpack.c.l.b16 %v1317
        %v3590 = vunpack.c.l.b16 %v1318
        %v3591 = vunpack.c.l.b16 %v1319
        %v3592 = vunpack.c.l.b16 %v1320
        %v3593 = vunpack.c.l.b16 %v1321
        %v3594 = vunpack.c.l.b16 %v1322
        %v3595 = vunpack.c.l.b16 %v1323
        %v3596 = vunpack.c.l.b16 %v1324
        %v3597 = vunpack.c.l.b16 %v1325
        %v3598 = vunpack.c.l.b16 %v1326
        %v3599 = vunpack.c.l.b16 %v1327
        %v3600 = vunpack.c.l.b16 %v1328
        %v3601 = vunpack.c.l.b16 %v1329
        %v3602 = vunpack.c.l.b16 %v1330
        %v3603 = vunpack.c.l.b16 %v1331
        %v3604 = vunpack.c.l.b16 %v1332
        %v3605 = vunpack.c.l.b16 %v1333
        %v3606 = vunpack.c.l.b16 %v1334
        %v3607 = vunpack.c.l.b16 %v1335
        %v3608 = vunpack.c.l.b16 %v1336
        %v3609 = vunpack.c.l.b16 %v1337
        %v3610 = vunpack.c.l.b16 %v1338
        %v3611 = vunpack.c.l.b16 %v1339
        %v3612 = vunpack.c.l.b16 %v1340
        %v3613 = vunpack.c.l.b16 %v1341
        %v3614 = vunpack.c.l.b16 %v1342
        %v3615 = vunpack.c.l.b16 %v1343
        %v3616 = vunpack.c.l.b16 %v1344
        %v3617 = vunpack.c.l.b16 %v1345
        %v3618 = vunpack.c.l.b16 %v1346
        %v3619 = vunpack.c.l.b16 %v1347
        %v3620 = vunpack.c.l.b16 %v1348
        %v3621 = vunpack.c.l.b16 %v1349
        %v3622 = vunpack.c.l.b16 %v1350
        %v3623 = vunpack.c.l.b16 %v1351
        %v3624 = vunpack.c.l.b16 %v1352
        %v3625 = vunpack.c.l.b16 %v1353
        %v3626 = vunpack.c.l.b16 %v1354
        %v3627 = vunpack.c.l.b16 %v1355
        %v3628 = vunpack.c.l.b16 %v1356
        %v3629 = vunpack.c.l.b16 %v1357
        %v3630 = vunpack.c.l.b16 %v1358
        %v3631 = vunpack.c.l.b16 %v1359
        %v3632 = vunpack.c.l.b16 %v1360
        %v3633 = vunpack.c.l.b16 %v1361
        %v3634 = vunpack.c.l.b16 %v1362
        %v3635 = vunpack.c.l.b16 %v1363
        %v3636 = vunpack.c.l.b16 %v1364
        %v3637 = vunpack.c.l.b16 %v1365
        %v3638 = vunpack.c.l.b16 %v1366
        %v3639 = vunpack.c.l.b16 %v1367
        %v3640 = vunpack.c.l.b16 %v1368
        %v3641 = vunpack.c.l.b16 %v1369
        %v3642 = vunpack.c.l.b16 %v1370
        %v3643 = vunpack.c.l.b16 %v1371
        %v3644 = vunpack.c.l.b16 %v1372
        %v3645 = vunpack.c.l.b16 %v1373
        %v3646 = vunpack.c.l.b16 %v1374
        %v3647 = vunpack.c.l.b16 %v1375
        %v3648 = vunpack.c.l.b16 %v1376
        %v3649 = vunpack.c.l.b16 %v1377
        %v3650 = vunpack.c.l.b16 %v1378
        %v3651 = vunpack.c.l.b16 %v1379
        %v3652 = vunpack.c.l.b16 %v1380
        %v3653 = vunpack.c.l.b16 %v1381
        %v3654 = vunpack.c.l.b16 %v1382
        %v3655 = vunpack.c.l.b16 %v1383
        %v3656 = vunpack.c.l.b16 %v1384
        %v3657 = vunpack.c.l.b16 %v1385
        %v3658 = vunpack.c.l.b16 %v1386
        %v3659 = vunpack.c.l.b16 %v1387
        %v3660 = vunpack.c.l.b16 %v1388
        %v3661 = vunpack.c.l.b16 %v1389
        %v3662 = vunpack.c.l.b16 %v1390
        %v3663 = vunpack.c.l.b16 %v1391
        %v3664 = vunpack.c.l.b16 %v1392
        %v3665 = vunpack.c.l.b16 %v1393
        %v3666 = vunpack.c.l.b16 %v1394
        %v3667 = vunpack.c.l.b16 %v1395
        %v3668 = vunpack.c.l.b16 %v1396
        %v3669 = vunpack.c.l.b16 %v1397
        %v3670 = vunpack.c.l.b16 %v1398
        %v3671 = vunpack.c.l.b16 %v1399
        %v3672 = vunpack.c.l.b16 %v1400
        %v3673 = vunpack.c.l.b16 %v1401
        %v3674 = vunpack.c.l.b16 %v1402
        %v3675 = vunpack.c.l.b16 %v1403
        %v3676 = vunpack.c.l.b16 %v1404
        %v3677 = vunpack.c.l.b16 %v1405
        %v3678 = vunpack.c.l.b16 %v1406
        %v3679 = vunpack.c.l.b16 %v1407
        %v3680 = vunpack.c.l.b16 %v1408
        %v3681 = vunpack.c.l.b16 %v1409
        %v3682 = vunpack.c.l.b16 %v1410
        %v3683 = vunpack.c.l.b16 %v1411
        %v3684 = vunpack.c.l.b16 %v1412
        %v3685 = vunpack.c.l.b16 %v1413
        %v3686 = vunpack.c.l.b16 %v1414
        %v3687 = vunpack.c.l.b16 %v1415
        %v3688 = vunpack.c.l.b16 %v1416
        %v3689 = vunpack.c.l.b16 %v1417
        %v3690 = vunpack.c.l.b16 %v1418
        %v3691 = vunpack.c.l.b16 %v1419
        %v3692 = vunpack.c.l.b16 %v1420
        %v3693 = vunpack.c.l.b16 %v1421
        %v3694 = vunpack.c.l.b16 %v1422
        %v3695 = vunpack.c.l.b16 %v1423
        %v3696 = vunpack.c.l.b16 %v1424
        %v3697 = vunpack.c.l.b16 %v1425
        %v3698 = vunpack.c.l.b16 %v1426
        %v3699 = vunpack.c.l.b16 %v1427
        %v3700 = vunpack.c.l.b16 %v1428
        %v3701 = vunpack.c.l.b16 %v1429
        %v3702 = vunpack.c.l.b16 %v1430
        %v3703 = vunpack.c.l.b16 %v1431
        %v3704 = vunpack.c.l.b16 %v1432
        %v3705 = vunpack.c.l.b16 %v1433
        %v3706 = vunpack.c.l.b16 %v1434
        %v3707 = vunpack.c.l.b16 %v1435
        %v3708 = vunpack.c.l.b16 %v1436
        %v3709 = vunpack.c.l.b16 %v1437
        %v3710 = vunpack.c.l.b16 %v1438
        %v3711 = vunpack.c.l.b16 %v1439
        %v3712 = vunpack.c.l.b16 %v1440
        %v3713 = vunpack.c.l.b16 %v1441
        %v3714 = vunpack.c.l.b16 %v1442
        %v3715 = vunpack.c.l.b16 %v1443
        %v3716 = vunpack.c.l.b16 %v1444
        %v3717 = vunpack.c.l.b16 %v1445
        %v3718 = vunpack.c.l.b16 %v1446
        %v3719 = vunpack.c.l.b16 %v1447
        %v3720 = vunpack.c.l.b16 %v1448
        %v3721 = vunpack.c.l.b16 %v1449
        %v3722 = vunpack.c.l.b16 %v1450
        %v3723 = vunpack.c.l.b16 %v1451
        %v3724 = vunpack.c.l.b16 %v1452
        %v3725 = vpack.c.b16 %v2702, %v2701
        %v3726 = vpack.c.b16 %v2704, %v2703
        %v3727 = vpack.c.b16 %v2706, %v2705
        %v3728 = vpack.c.b16 %v2708, %v2707
        %v3729 = vpack.c.b16 %v2710, %v2709
        %v3730 = vpack.c.b16 %v2712, %v2711
        %v3731 = vpack.c.b16 %v2714, %v2713
        %v3732 = vpack.c.b16 %v2716, %v2715
        %v3733 = vpack.c.b16 %v2718, %v2717
        %v3734 = vpack.c.b16 %v2720, %v2719
        %v3735 = vpack.c.b16 %v2722, %v2721
        %v3736 = vpack.c.b16 %v2724, %v2723
        %v3737 = vpack.c.b16 %v2726, %v2725
        %v3738 = vpack.c.b16 %v2728, %v2727
        %v3739 = vpack.c.b16 %v2730, %v2729
        %v3740 = vpack.c.b16 %v2732, %v2731
        %v3741 = vpack.c.b16 %v2734, %v2733
        %v3742 = vpack.c.b16 %v2736, %v2735
        %v3743 = vpack.c.b16 %v2738, %v2737
        %v3744 = vpack.c.b16 %v2740, %v2739
        %v3745 = vpack.c.b16 %v2742, %v2741
        %v3746 = vpack.c.b16 %v2744, %v2743
        %v3747 = vpack.c.b16 %v2746, %v2745
        %v3748 = vpack.c.b16 %v2748, %v2747
        %v3749 = vpack.c.b16 %v2750, %v2749
        %v3750 = vpack.c.b16 %v2752, %v2751
        %v3751 = vpack.c.b16 %v2754, %v2753
        %v3752 = vpack.c.b16 %v2756, %v2755
        %v3753 = vpack.c.b16 %v2758, %v2757
        %v3754 = vpack.c.b16 %v2760, %v2759
        %v3755 = vpack.c.b16 %v2762, %v2761
        %v3756 = vpack.c.b16 %v2764, %v2763
        %v3757 = vpack.c.b16 %v2766, %v2765
        %v3758 = vpack.c.b16 %v2768, %v2767
        %v3759 = vpack.c.b16 %v2770, %v2769
        %v3760 = vpack.c.b16 %v2772, %v2771
        %v3761 = vpack.c.b16 %v2774, %v2773
        %v3762 = vpack.c.b16 %v2776, %v2775
        %v3763 = vpack.c.b16 %v2778, %v2777
        %v3764 = vpack.c.b16 %v2780, %v2779
        %v3765 = vpack.c.b16 %v2782, %v2781
        %v3766 = vpack.c.b16 %v2784, %v2783
        %v3767 = vpack.c.b16 %v2786, %v2785
        %v3768 = vpack.c.b16 %v2788, %v2787
        %v3769 = vpack.c.b16 %v2790, %v2789
        %v3770 = vpack.c.b16 %v2792, %v2791
        %v3771 = vpack.c.b16 %v2794, %v2793
        %v3772 = vpack.c.b16 %v2796, %v2795
        %v3773 = vpack.c.b16 %v2798, %v2797
        %v3774 = vpack.c.b16 %v2800, %v2799
        %v3775 = vpack.c.b16 %v2802, %v2801
        %v3776 = vpack.c.b16 %v2804, %v2803
        %v3777 = vpack.c.b16 %v2806, %v2805
        %v3778 = vpack.c.b16 %v2808, %v2807
        %v3779 = vpack.c.b16 %v2810, %v2809
        %v3780 = vpack.c.b16 %v2812, %v2811
        %v3781 = vpack.c.b16 %v2814, %v2813
        %v3782 = vpack.c.b16 %v2816, %v2815
        %v3783 = vpack.c.b16 %v2818, %v2817
        %v3784 = vpack.c.b16 %v2820, %v2819
        %v3785 = vpack.c.b16 %v2822, %v2821
        %v3786 = vpack.c.b16 %v2824, %v2823
        %v3787 = vpack.c.b16 %v2826, %v2825
        %v3788 = vpack.c.b16 %v2828, %v2827
        %v3789 = vpack.c.b16 %v2830, %v2829
        %v3790 = vpack.c.b16 %v2832, %v2831
        %v3791 = vpack.c.b16 %v2834, %v2833
        %v3792 = vpack.c.b16 %v2836, %v2835
        %v3793 = vpack.c.b16 %v2838, %v2837
        %v3794 = vpack.c.b16 %v2840, %v2839
        %v3795 = vpack.c.b16 %v2842, %v2841
        %v3796 = vpack.c.b16 %v2844, %v2843
        %v3797 = vpack.c.b16 %v2846, %v2845
        %v3798 = vpack.c.b16 %v2848, %v2847
        %v3799 = vpack.c.b16 %v2850, %v2849
        %v3800 = vpack.c.b16 %v2852, %v2851
        %v3801 = vpack.c.b16 %v2854, %v2853
        %v3802 = vpack.c.b16 %v2856, %v2855
        %v3803 = vpack.c.b16 %v2858, %v2857
        %v3804 = vpack.c.b16 %v2860, %v2859
        %v3805 = vpack.c.b16 %v2862, %v2861
        %v3806 = vpack.c.b16 %v2864, %v2863
        %v3807 = vpack.c.b16 %v2866, %v2865
        %v3808 = vpack.c.b16 %v2868, %v2867
        %v3809 = vpack.c.b16 %v2870, %v2869
        %v3810 = vpack.c.b16 %v2872, %v2871
        %v3811 = vpack.c.b16 %v2874, %v2873
        %v3812 = vpack.c.b16 %v2876, %v2875
        %v3813 = vpack.c.b16 %v2878, %v2877
        %v3814 = vpack.c.b16 %v2880, %v2879
        %v3815 = vpack.c.b16 %v2882, %v2881
        %v3816 = vpack.c.b16 %v2884, %v2883
        %v3817 = vpack.c.b16 %v2886, %v2885
        %v3818 = vpack.c.b16 %v2888, %v2887
        %v3819 = vpack.c.b16 %v2890, %v2889
        %v3820 = vpack.c.b16 %v2892, %v2891
        %v3821 = vpack.c.b16 %v2894, %v2893
        %v3822 = vpack.c.b16 %v2896, %v2895
        %v3823 = vpack.c.b16 %v2898, %v2897
        %v3824 = vpack.c.b16 %v2900, %v2899
        %v3825 = vpack.c.b16 %v2902, %v2901
        %v3826 = vpack.c.b16 %v2904, %v2903
        %v3827 = vpack.c.b16 %v2906, %v2905
        %v3828 = vpack.c.b16 %v2908, %v2907
        %v3829 = vpack.c.b16 %v2910, %v2909
        %v3830 = vpack.c.b16 %v2912, %v2911
        %v3831 = vpack.c.b16 %v2914, %v2913
        %v3832 = vpack.c.b16 %v2916, %v2915
        %v3833 = vpack.c.b16 %v2918, %v2917
        %v3834 = vpack.c.b16 %v2920, %v2919
        %v3835 = vpack.c.b16 %v2922, %v2921
        %v3836 = vpack.c.b16 %v2924, %v2923
        %v3837 = vpack.c.b16 %v2926, %v2925
        %v3838 = vpack.c.b16 %v2928, %v2927
        %v3839 = vpack.c.b16 %v2930, %v2929
        %v3840 = vpack.c.b16 %v2932, %v2931
        %v3841 = vpack.c.b16 %v2934, %v2933
        %v3842 = vpack.c.b16 %v2936, %v2935
        %v3843 = vpack.c.b16 %v2938, %v2937
        %v3844 = vpack.c.b16 %v2940, %v2939
        %v3845 = vpack.c.b16 %v2942, %v2941
        %v3846 = vpack.c.b16 %v2944, %v2943
        %v3847 = vpack.c.b16 %v2946, %v2945
        %v3848 = vpack.c.b16 %v2948, %v2947
        %v3849 = vpack.c.b16 %v2950, %v2949
        %v3850 = vpack.c.b16 %v2952, %v2951
        %v3851 = vpack.c.b16 %v2954, %v2953
        %v3852 = vpack.c.b16 %v2956, %v2955
        %v3853 = vpack.c.b16 %v2958, %v2957
        %v3854 = vpack.c.b16 %v2960, %v2959
        %v3855 = vpack.c.b16 %v2962, %v2961
        %v3856 = vpack.c.b16 %v2964, %v2963
        %v3857 = vpack.c.b16 %v2966, %v2965
        %v3858 = vpack.c.b16 %v2968, %v2967
        %v3859 = vpack.c.b16 %v2970, %v2969
        %v3860 = vpack.c.b16 %v2972, %v2971
        %v3861 = vpack.c.b16 %v2974, %v2973
        %v3862 = vpack.c.b16 %v2976, %v2975
        %v3863 = vpack.c.b16 %v2978, %v2977
        %v3864 = vpack.c.b16 %v2980, %v2979
        %v3865 = vpack.c.b16 %v2982, %v2981
        %v3866 = vpack.c.b16 %v2984, %v2983
        %v3867 = vpack.c.b16 %v2986, %v2985
        %v3868 = vpack.c.b16 %v2988, %v2987
        %v3869 = vpack.c.b16 %v2990, %v2989
        %v3870 = vpack.c.b16 %v2992, %v2991
        %v3871 = vpack.c.b16 %v2994, %v2993
        %v3872 = vpack.c.b16 %v2996, %v2995
        %v3873 = vpack.c.b16 %v2998, %v2997
        %v3874 = vpack.c.b16 %v3000, %v2999
        %v3875 = vpack.c.b16 %v3002, %v3001
        %v3876 = vpack.c.b16 %v3004, %v3003
        %v3877 = vpack.c.b16 %v3006, %v3005
        %v3878 = vpack.c.b16 %v3008, %v3007
        %v3879 = vpack.c.b16 %v3010, %v3009
        %v3880 = vpack.c.b16 %v3012, %v3011
        %v3881 = vpack.c.b16 %v3014, %v3013
        %v3882 = vpack.c.b16 %v3016, %v3015
        %v3883 = vpack.c.b16 %v3018, %v3017
        %v3884 = vpack.c.b16 %v3020, %v3019
        %v3885 = vpack.c.b16 %v3022, %v3021
        %v3886 = vpack.c.b16 %v3024, %v3023
        %v3887 = vpack.c.b16 %v3026, %v3025
        %v3888 = vpack.c.b16 %v3028, %v3027
        %v3889 = vpack.c.b16 %v3030, %v3029
        %v3890 = vpack.c.b16 %v3032, %v3031
        %v3891 = vpack.c.b16 %v3034, %v3033
        %v3892 = vpack.c.b16 %v3036, %v3035
        %v3893 = vpack.c.b16 %v3038, %v3037
        %v3894 = vpack.c.b16 %v3040, %v3039
        %v3895 = vpack.c.b16 %v3042, %v3041
        %v3896 = vpack.c.b16 %v3044, %v3043
        %v3897 = vpack.c.b16 %v3046, %v3045
        %v3898 = vpack.c.b16 %v3048, %v3047
        %v3899 = vpack.c.b16 %v3050, %v3049
        %v3900 = vpack.c.b16 %v3052, %v3051
        %v3901 = vpack.c.b16 %v3054, %v3053
        %v3902 = vpack.c.b16 %v3056, %v3055
        %v3903 = vpack.c.b16 %v3058, %v3057
        %v3904 = vpack.c.b16 %v3060, %v3059
        %v3905 = vpack.c.b16 %v3062, %v3061
        %v3906 = vpack.c.b16 %v3064, %v3063
        %v3907 = vpack.c.b16 %v3066, %v3065
        %v3908 = vpack.c.b16 %v3068, %v3067
        %v3909 = vpack.c.b16 %v3070, %v3069
        %v3910 = vpack.c.b16 %v3072, %v3071
        %v3911 = vpack.c.b16 %v3074, %v3073
        %v3912 = vpack.c.b16 %v3076, %v3075
        %v3913 = vpack.c.b16 %v3078, %v3077
        %v3914 = vpack.c.b16 %v3080, %v3079
        %v3915 = vpack.c.b16 %v3082, %v3081
        %v3916 = vpack.c.b16 %v3084, %v3083
        %v3917 = vpack.c.b16 %v3086, %v3085
        %v3918 = vpack.c.b16 %v3088, %v3087
        %v3919 = vpack.c.b16 %v3090, %v3089
        %v3920 = vpack.c.b16 %v3092, %v3091
        %v3921 = vpack.c.b16 %v3094, %v3093
        %v3922 = vpack.c.b16 %v3096, %v3095
        %v3923 = vpack.c.b16 %v3098, %v3097
        %v3924 = vpack.c.b16 %v3100, %v3099
        %v3925 = vpack.c.b16 %v3102, %v3101
        %v3926 = vpack.c.b16 %v3104, %v3103
        %v3927 = vpack.c.b16 %v3106, %v3105
        %v3928 = vpack.c.b16 %v3108, %v3107
        %v3929 = vpack.c.b16 %v3110, %v3109
        %v3930 = vpack.c.b16 %v3112, %v3111
        %v3931 = vpack.c.b16 %v3114, %v3113
        %v3932 = vpack.c.b16 %v3116, %v3115
        %v3933 = vpack.c.b16 %v3118, %v3117
        %v3934 = vpack.c.b16 %v3120, %v3119
        %v3935 = vpack.c.b16 %v3122, %v3121
        %v3936 = vpack.c.b16 %v3124, %v3123
        %v3937 = vpack.c.b16 %v3126, %v3125
        %v3938 = vpack.c.b16 %v3128, %v3127
        %v3939 = vpack.c.b16 %v3130, %v3129
        %v3940 = vpack.c.b16 %v3132, %v3131
        %v3941 = vpack.c.b16 %v3134, %v3133
        %v3942 = vpack.c.b16 %v3136, %v3135
        %v3943 = vpack.c.b16 %v3138, %v3137
        %v3944 = vpack.c.b16 %v3140, %v3139
        %v3945 = vpack.c.b16 %v3142, %v3141
        %v3946 = vpack.c.b16 %v3144, %v3143
        %v3947 = vpack.c.b16 %v3146, %v3145
        %v3948 = vpack.c.b16 %v3148, %v3147
        %v3949 = vpack.c.b16 %v3150, %v3149
        %v3950 = vpack.c.b16 %v3152, %v3151
        %v3951 = vpack.c.b16 %v3154, %v3153
        %v3952 = vpack.c.b16 %v3156, %v3155
        %v3953 = vpack.c.b16 %v3158, %v3157
        %v3954 = vpack.c.b16 %v3160, %v3159
        %v3955 = vpack.c.b16 %v3162, %v3161
        %v3956 = vpack.c.b16 %v3164, %v3163
        %v3957 = vpack.c.b16 %v3166, %v3165
        %v3958 = vpack.c.b16 %v3168, %v3167
        %v3959 = vpack.c.b16 %v3170, %v3169
        %v3960 = vpack.c.b16 %v3172, %v3171
        %v3961 = vpack.c.b16 %v3174, %v3173
        %v3962 = vpack.c.b16 %v3176, %v3175
        %v3963 = vpack.c.b16 %v3178, %v3177
        %v3964 = vpack.c.b16 %v3180, %v3179
        %v3965 = vpack.c.b16 %v3182, %v3181
        %v3966 = vpack.c.b16 %v3184, %v3183
        %v3967 = vpack.c.b16 %v3186, %v3185
        %v3968 = vpack.c.b16 %v3188, %v3187
        %v3969 = vpack.c.b16 %v3190, %v3189
        %v3970 = vpack.c.b16 %v3192, %v3191
        %v3971 = vpack.c.b16 %v3194, %v3193
        %v3972 = vpack.c.b16 %v3196, %v3195
        %v3973 = vpack.c.b16 %v3198, %v3197
        %v3974 = vpack.c.b16 %v3200, %v3199
        %v3975 = vpack.c.b16 %v3202, %v3201
        %v3976 = vpack.c.b16 %v3204, %v3203
        %v3977 = vpack.c.b16 %v3206, %v3205
        %v3978 = vpack.c.b16 %v3208, %v3207
        %v3979 = vpack.c.b16 %v3210, %v3209
        %v3980 = vpack.c.b16 %v3212, %v3211
        %v3981 = vpack.c.b16 %v3214, %v3213
        %v3982 = vpack.c.b16 %v3216, %v3215
        %v3983 = vpack.c.b16 %v3218, %v3217
        %v3984 = vpack.c.b16 %v3220, %v3219
        %v3985 = vpack.c.b16 %v3222, %v3221
        %v3986 = vpack.c.b16 %v3224, %v3223
        %v3987 = vpack.c.b16 %v3226, %v3225
        %v3988 = vpack.c.b16 %v3228, %v3227
        %v3989 = vpack.c.b16 %v3230, %v3229
        %v3990 = vpack.c.b16 %v3232, %v3231
        %v3991 = vpack.c.b16 %v3234, %v3233
        %v3992 = vpack.c.b16 %v3236, %v3235
        %v3993 = vpack.c.b16 %v3238, %v3237
        %v3994 = vpack.c.b16 %v3240, %v3239
        %v3995 = vpack.c.b16 %v3242, %v3241
        %v3996 = vpack.c.b16 %v3244, %v3243
        %v3997 = vpack.c.b16 %v3246, %v3245
        %v3998 = vpack.c.b16 %v3248, %v3247
        %v3999 = vpack.c.b16 %v3250, %v3249
        %v4000 = vpack.c.b16 %v3252, %v3251
        %v4001 = vpack.c.b16 %v3254, %v3253
        %v4002 = vpack.c.b16 %v3256, %v3255
        %v4003 = vpack.c.b16 %v3258, %v3257
        %v4004 = vpack.c.b16 %v3260, %v3259
        %v4005 = vpack.c.b16 %v3262, %v3261
        %v4006 = vpack.c.b16 %v3264, %v3263
        %v4007 = vpack.c.b16 %v3266, %v3265
        %v4008 = vpack.c.b16 %v3268, %v3267
        %v4009 = vpack.c.b16 %v3270, %v3269
        %v4010 = vpack.c.b16 %v3272, %v3271
        %v4011 = vpack.c.b16 %v3274, %v3273
        %v4012 = vpack.c.b16 %v3276, %v3275
        %v4013 = vpack.c.b16 %v3278, %v3277
        %v4014 = vpack.c.b16 %v3280, %v3279
        %v4015 = vpack.c.b16 %v3282, %v3281
        %v4016 = vpack.c.b16 %v3284, %v3283
        %v4017 = vpack.c.b16 %v3286, %v3285
        %v4018 = vpack.c.b16 %v3288, %v3287
        %v4019 = vpack.c.b16 %v3290, %v3289
        %v4020 = vpack.c.b16 %v3292, %v3291
        %v4021 = vpack.c.b16 %v3294, %v3293
        %v4022 = vpack.c.b16 %v3296, %v3295
        %v4023 = vpack.c.b16 %v3298, %v3297
        %v4024 = vpack.c.b16 %v3300, %v3299
        %v4025 = vpack.c.b16 %v3302, %v3301
        %v4026 = vpack.c.b16 %v3304, %v3303
        %v4027 = vpack.c.b16 %v3306, %v3305
        %v4028 = vpack.c.b16 %v3308, %v3307
        %v4029 = vpack.c.b16 %v3310, %v3309
        %v4030 = vpack.c.b16 %v3312, %v3311
        %v4031 = vpack.c.b16 %v3314, %v3313
        %v4032 = vpack.c.b16 %v3316, %v3315
        %v4033 = vpack.c.b16 %v3318, %v3317
        %v4034 = vpack.c.b16 %v3320, %v3319
        %v4035 = vpack.c.b16 %v3322, %v3321
        %v4036 = vpack.c.b16 %v3324, %v3323
        %v4037 = vpack.c.b16 %v3326, %v3325
        %v4038 = vpack.c.b16 %v3328, %v3327
        %v4039 = vpack.c.b16 %v3330, %v3329
        %v4040 = vpack.c.b16 %v3332, %v3331
        %v4041 = vpack.c.b16 %v3334, %v3333
        %v4042 = vpack.c.b16 %v3336, %v3335
        %v4043 = vpack.c.b16 %v3338, %v3337
        %v4044 = vpack.c.b16 %v3340, %v3339
        %v4045 = vpack.c.b16 %v3342, %v3341
        %v4046 = vpack.c.b16 %v3344, %v3343
        %v4047 = vpack.c.b16 %v3346, %v3345
        %v4048 = vpack.c.b16 %v3348, %v3347
        %v4049 = vpack.c.b16 %v3350, %v3349
        %v4050 = vpack.c.b16 %v3352, %v3351
        %v4051 = vpack.c.b16 %v3354, %v3353
        %v4052 = vpack.c.b16 %v3356, %v3355
        %v4053 = vpack.c.b16 %v3358, %v3357
        %v4054 = vpack.c.b16 %v3360, %v3359
        %v4055 = vpack.c.b16 %v3362, %v3361
        %v4056 = vpack.c.b16 %v3364, %v3363
        %v4057 = vpack.c.b16 %v3366, %v3365
        %v4058 = vpack.c.b16 %v3368, %v3367
        %v4059 = vpack.c.b16 %v3370, %v3369
        %v4060 = vpack.c.b16 %v3372, %v3371
        %v4061 = vpack.c.b16 %v3374, %v3373
        %v4062 = vpack.c.b16 %v3376, %v3375
        %v4063 = vpack.c.b16 %v3378, %v3377
        %v4064 = vpack.c.b16 %v3380, %v3379
        %v4065 = vpack.c.b16 %v3382, %v3381
        %v4066 = vpack.c.b16 %v3384, %v3383
        %v4067 = vpack.c.b16 %v3386, %v3385
        %v4068 = vpack.c.b16 %v3388, %v3387
        %v4069 = vpack.c.b16 %v3390, %v3389
        %v4070 = vpack.c.b16 %v3392, %v3391
        %v4071 = vpack.c.b16 %v3394, %v3393
        %v4072 = vpack.c.b16 %v3396, %v3395
        %v4073 = vpack.c.b16 %v3398, %v3397
        %v4074 = vpack.c.b16 %v3400, %v3399
        %v4075 = vpack.c.b16 %v3402, %v3401
        %v4076 = vpack.c.b16 %v3404, %v3403
        %v4077 = vpack.c.b16 %v3406, %v3405
        %v4078 = vpack.c.b16 %v3408, %v3407
        %v4079 = vpack.c.b16 %v3410, %v3409
        %v4080 = vpack.c.b16 %v3412, %v3411
        %v4081 = vpack.c.b16 %v3414, %v3413
        %v4082 = vpack.c.b16 %v3416, %v3415
        %v4083 = vpack.c.b16 %v3418, %v3417
        %v4084 = vpack.c.b16 %v3420, %v3419
        %v4085 = vpack.c.b16 %v3422, %v3421
        %v4086 = vpack.c.b16 %v3424, %v3423
        %v4087 = vpack.c.b16 %v3426, %v3425
        %v4088 = vpack.c.b16 %v3428, %v3427
        %v4089 = vpack.c.b16 %v3430, %v3429
        %v4090 = vpack.c.b16 %v3432, %v3431
        %v4091 = vpack.c.b16 %v3434, %v3433
        %v4092 = vpack.c.b16 %v3436, %v3435
        %v4093 = vpack.c.b16 %v3438, %v3437
        %v4094 = vpack.c.b16 %v3440, %v3439
        %v4095 = vpack.c.b16 %v3442, %v3441
        %v4096 = vpack.c.b16 %v3444, %v3443
        %v4097 = vpack.c.b16 %v3446, %v3445
        %v4098 = vpack.c.b16 %v3448, %v3447
        %v4099 = vpack.c.b16 %v3450, %v3449
        %v4100 = vpack.c.b16 %v3452, %v3451
        %v4101 = vpack.c.b16 %v3454, %v3453
        %v4102 = vpack.c.b16 %v3456, %v3455
        %v4103 = vpack.c.b16 %v3458, %v3457
        %v4104 = vpack.c.b16 %v3460, %v3459
        %v4105 = vpack.c.b16 %v3462, %v3461
        %v4106 = vpack.c.b16 %v3464, %v3463
        %v4107 = vpack.c.b16 %v3466, %v3465
        %v4108 = vpack.c.b16 %v3468, %v3467
        %v4109 = vpack.c.b16 %v3470, %v3469
        %v4110 = vpack.c.b16 %v3472, %v3471
        %v4111 = vpack.c.b16 %v3474, %v3473
        %v4112 = vpack.c.b16 %v3476, %v3475
        %v4113 = vpack.c.b16 %v3478, %v3477
        %v4114 = vpack.c.b16 %v3480, %v3479
        %v4115 = vpack.c.b16 %v3482, %v3481
        %v4116 = vpack.c.b16 %v3484, %v3483
        %v4117 = vpack.c.b16 %v3486, %v3485
        %v4118 = vpack.c.b16 %v3488, %v3487
        %v4119 = vpack.c.b16 %v3490, %v3489
        %v4120 = vpack.c.b16 %v3492, %v3491
        %v4121 = vpack.c.b16 %v3494, %v3493
        %v4122 = vpack.c.b16 %v3496, %v3495
        %v4123 = vpack.c.b16 %v3498, %v3497
        %v4124 = vpack.c.b16 %v3500, %v3499
        %v4125 = vpack.c.b16 %v3502, %v3501
        %v4126 = vpack.c.b16 %v3504, %v3503
        %v4127 = vpack.c.b16 %v3506, %v3505
        %v4128 = vpack.c.b16 %v3508, %v3507
        %v4129 = vpack.c.b16 %v3510, %v3509
        %v4130 = vpack.c.b16 %v3512, %v3511
        %v4131 = vpack.c.b16 %v3514, %v3513
        %v4132 = vpack.c.b16 %v3516, %v3515
        %v4133 = vpack.c.b16 %v3518, %v3517
        %v4134 = vpack.c.b16 %v3520, %v3519
        %v4135 = vpack.c.b16 %v3522, %v3521
        %v4136 = vpack.c.b16 %v3524, %v3523
        %v4137 = vpack.c.b16 %v3526, %v3525
        %v4138 = vpack.c.b16 %v3528, %v3527
        %v4139 = vpack.c.b16 %v3530, %v3529
        %v4140 = vpack.c.b16 %v3532, %v3531
        %v4141 = vpack.c.b16 %v3534, %v3533
        %v4142 = vpack.c.b16 %v3536, %v3535
        %v4143 = vpack.c.b16 %v3538, %v3537
        %v4144 = vpack.c.b16 %v3540, %v3539
        %v4145 = vpack.c.b16 %v3542, %v3541
        %v4146 = vpack.c.b16 %v3544, %v3543
        %v4147 = vpack.c.b16 %v3546, %v3545
        %v4148 = vpack.c.b16 %v3548, %v3547
        %v4149 = vpack.c.b16 %v3550, %v3549
        %v4150 = vpack.c.b16 %v3552, %v3551
        %v4151 = vpack.c.b16 %v3554, %v3553
        %v4152 = vpack.c.b16 %v3556, %v3555
        %v4153 = vpack.c.b16 %v3558, %v3557
        %v4154 = vpack.c.b16 %v3560, %v3559
        %v4155 = vpack.c.b16 %v3562, %v3561
        %v4156 = vpack.c.b16 %v3564, %v3563
        %v4157 = vpack.c.b16 %v3566, %v3565
        %v4158 = vpack.c.b16 %v3568, %v3567
        %v4159 = vpack.c.b16 %v3570, %v3569
        %v4160 = vpack.c.b16 %v3572, %v3571
        %v4161 = vpack.c.b16 %v3574, %v3573
        %v4162 = vpack.c.b16 %v3576, %v3575
        %v4163 = vpack.c.b16 %v3578, %v3577
        %v4164 = vpack.c.b16 %v3580, %v3579
        %v4165 = vpack.c.b16 %v3582, %v3581
        %v4166 = vpack.c.b16 %v3584, %v3583
        %v4167 = vpack.c.b16 %v3586, %v3585
        %v4168 = vpack.c.b16 %v3588, %v3587
        %v4169 = vpack.c.b16 %v3590, %v3589
        %v4170 = vpack.c.b16 %v3592, %v3591
        %v4171 = vpack.c.b16 %v3594, %v3593
        %v4172 = vpack.c.b16 %v3596, %v3595
        %v4173 = vpack.c.b16 %v3598, %v3597
        %v4174 = vpack.c.b16 %v3600, %v3599
        %v4175 = vpack.c.b16 %v3602, %v3601
        %v4176 = vpack.c.b16 %v3604, %v3603
        %v4177 = vpack.c.b16 %v3606, %v3605
        %v4178 = vpack.c.b16 %v3608, %v3607
        %v4179 = vpack.c.b16 %v3610, %v3609
        %v4180 = vpack.c.b16 %v3612, %v3611
        %v4181 = vpack.c.b16 %v3614, %v3613
        %v4182 = vpack.c.b16 %v3616, %v3615
        %v4183 = vpack.c.b16 %v3618, %v3617
        %v4184 = vpack.c.b16 %v3620, %v3619
        %v4185 = vpack.c.b16 %v3622, %v3621
        %v4186 = vpack.c.b16 %v3624, %v3623
        %v4187 = vpack.c.b16 %v3626, %v3625
        %v4188 = vpack.c.b16 %v3628, %v3627
        %v4189 = vpack.c.b16 %v3630, %v3629
        %v4190 = vpack.c.b16 %v3632, %v3631
        %v4191 = vpack.c.b16 %v3634, %v3633
        %v4192 = vpack.c.b16 %v3636, %v3635
        %v4193 = vpack.c.b16 %v3638, %v3637
        %v4194 = vpack.c.b16 %v3640, %v3639
        %v4195 = vpack.c.b16 %v3642, %v3641
        %v4196 = vpack.c.b16 %v3644, %v3643
        %v4197 = vpack.c.b16 %v3646, %v3645
        %v4198 = vpack.c.b16 %v3648, %v3647
        %v4199 = vpack.c.b16 %v3650, %v3649
        %v4200 = vpack.c.b16 %v3652, %v3651
        %v4201 = vpack.c.b16 %v3654, %v3653
        %v4202 = vpack.c.b16 %v3656, %v3655
        %v4203 = vpack.c.b16 %v3658, %v3657
        %v4204 = vpack.c.b16 %v3660, %v3659
        %v4205 = vpack.c.b16 %v3662, %v3661
        %v4206 = vpack.c.b16 %v3664, %v3663
        %v4207 = vpack.c.b16 %v3666, %v3665
        %v4208 = vpack.c.b16 %v3668, %v3667
        %v4209 = vpack.c.b16 %v3670, %v3669
        %v4210 = vpack.c.b16 %v3672, %v3671
        %v4211 = vpack.c.b16 %v3674, %v3673
        %v4212 = vpack.c.b16 %v3676, %v3675
        %v4213 = vpack.c.b16 %v3678, %v3677
        %v4214 = vpack.c.b16 %v3680, %v3679
        %v4215 = vpack.c.b16 %v3682, %v3681
        %v4216 = vpack.c.b16 %v3684, %v3683
        %v4217 = vpack.c.b16 %v3686, %v3685
        %v4218 = vpack.c.b16 %v3688, %v3687
        %v4219 = vpack.c.b16 %v3690, %v3689
        %v4220 = vpack.c.b16 %v3692, %v3691
        %v4221 = vpack.c.b16 %v3694, %v3693
        %v4222 = vpack.c.b16 %v3696, %v3695
        %v4223 = vpack.c.b16 %v3698, %v3697
        %v4224 = vpack.c.b16 %v3700, %v3699
        %v4225 = vpack.c.b16 %v3702, %v3701
        %v4226 = vpack.c.b16 %v3704, %v3703
        %v4227 = vpack.c.b16 %v3706, %v3705
        %v4228 = vpack.c.b16 %v3708, %v3707
        %v4229 = vpack.c.b16 %v3710, %v3709
        %v4230 = vpack.c.b16 %v3712, %v3711
        %v4231 = vpack.c.b16 %v3714, %v3713
        %v4232 = vpack.c.b16 %v3716, %v3715
        %v4233 = vpack.c.b16 %v3718, %v3717
        %v4234 = vpack.c.b16 %v3720, %v3719
        %v4235 = vpack.c.b16 %v3722, %v3721
        %v4236 = vpack.c.b16 %v3724, %v3723
        %4749 = vmatpush.bf16.msra.mxu0 %v3732
        %4750 = vmatpush.bf16.msra.mxu0 %v3731
        %4751 = vmatpush.bf16.msra.mxu0 %v3730
        %4752 = vmatpush.bf16.msra.mxu0 %v3729
        %4753 = vmatpush.bf16.msra.mxu0 %v3728
        %4754 = vmatpush.bf16.msra.mxu0 %v3727
        %4755 = vmatpush.bf16.msra.mxu0 %v3726
        %4756 = vmatpush.bf16.msra.mxu0 %v3725
        %4757 = vmatmul.bf16.gmra.mxu0 %v1549
        %v4758 = vpop.f32.mrf.mxu0
        %v4759 = vadd.f32 0.0, %v4758
        %v4760 = vpop.f32.mrf.mxu0
        %4761 = vdwg.mxu0
        %4762 = vmatpush.bf16.msra.mxu0 %v3740
        %4763 = vmatpush.bf16.msra.mxu0 %v3739
        %4764 = vmatpush.bf16.msra.mxu0 %v3738
        %4765 = vmatpush.bf16.msra.mxu0 %v3737
        %4766 = vmatpush.bf16.msra.mxu0 %v3736
        %4767 = vmatpush.bf16.msra.mxu0 %v3735
        %4768 = vmatpush.bf16.msra.mxu0 %v3734
        %4769 = vmatpush.bf16.msra.mxu0 %v3733
        %4770 = vmatmul.bf16.gmra.mxu0 %v1550
        %v4771 = vpop.f32.mrf.mxu0
        %v4772 = vadd.f32 %v4759, %v4771
        %v4773 = vpop.f32.mrf.mxu0
        %4774 = vdwg.mxu0
        %4775 = vmatpush.bf16.msra.mxu0 %v3748
        %4776 = vmatpush.bf16.msra.mxu0 %v3747
        %4777 = vmatpush.bf16.msra.mxu0 %v3746
        %4778 = vmatpush.bf16.msra.mxu0 %v3745
        %4779 = vmatpush.bf16.msra.mxu0 %v3744
        %4780 = vmatpush.bf16.msra.mxu0 %v3743
        %4781 = vmatpush.bf16.msra.mxu0 %v3742
        %4782 = vmatpush.bf16.msra.mxu0 %v3741
        %4783 = vmatmul.bf16.gmra.mxu0 %v1551
        %v4784 = vpop.f32.mrf.mxu0
        %v4785 = vadd.f32 %v4772, %v4784
        %v4786 = vpop.f32.mrf.mxu0
        %4787 = vdwg.mxu0
        %4788 = vmatpush.bf16.msra.mxu0 %v3756
        %4789 = vmatpush.bf16.msra.mxu0 %v3755
        %4790 = vmatpush.bf16.msra.mxu0 %v3754
        %4791 = vmatpush.bf16.msra.mxu0 %v3753
        %4792 = vmatpush.bf16.msra.mxu0 %v3752
        %4793 = vmatpush.bf16.msra.mxu0 %v3751
        %4794 = vmatpush.bf16.msra.mxu0 %v3750
        %4795 = vmatpush.bf16.msra.mxu0 %v3749
        %4796 = vmatmul.bf16.gmra.mxu0 %v1552
        %v4797 = vpop.f32.mrf.mxu0
        %v4798 = vadd.f32 %v4785, %v4797
        %v4799 = vpop.f32.mrf.mxu0
        %4800 = vdwg.mxu0
        %4801 = vmatpush.bf16.msra.mxu0 %v3764
        %4802 = vmatpush.bf16.msra.mxu0 %v3763
        %4803 = vmatpush.bf16.msra.mxu0 %v3762
        %4804 = vmatpush.bf16.msra.mxu0 %v3761
        %4805 = vmatpush.bf16.msra.mxu0 %v3760
        %4806 = vmatpush.bf16.msra.mxu0 %v3759
        %4807 = vmatpush.bf16.msra.mxu0 %v3758
        %4808 = vmatpush.bf16.msra.mxu0 %v3757
        %4809 = vmatmul.bf16.gmra.mxu0 %v1553
        %v4810 = vpop.f32.mrf.mxu0
        %v4811 = vadd.f32 %v4798, %v4810
        %v4812 = vpop.f32.mrf.mxu0
        %4813 = vdwg.mxu0
        %4814 = vmatpush.bf16.msra.mxu0 %v3772
        %4815 = vmatpush.bf16.msra.mxu0 %v3771
        %4816 = vmatpush.bf16.msra.mxu0 %v3770
        %4817 = vmatpush.bf16.msra.mxu0 %v3769
        %4818 = vmatpush.bf16.msra.mxu0 %v3768
        %4819 = vmatpush.bf16.msra.mxu0 %v3767
        %4820 = vmatpush.bf16.msra.mxu0 %v3766
        %4821 = vmatpush.bf16.msra.mxu0 %v3765
        %4822 = vmatmul.bf16.gmra.mxu0 %v1554
        %v4823 = vpop.f32.mrf.mxu0
        %v4824 = vadd.f32 %v4811, %v4823
        %v4825 = vpop.f32.mrf.mxu0
        %4826 = vdwg.mxu0
        %4827 = vmatpush.bf16.msra.mxu0 %v3780
        %4828 = vmatpush.bf16.msra.mxu0 %v3779
        %4829 = vmatpush.bf16.msra.mxu0 %v3778
        %4830 = vmatpush.bf16.msra.mxu0 %v3777
        %4831 = vmatpush.bf16.msra.mxu0 %v3776
        %4832 = vmatpush.bf16.msra.mxu0 %v3775
        %4833 = vmatpush.bf16.msra.mxu0 %v3774
        %4834 = vmatpush.bf16.msra.mxu0 %v3773
        %4835 = vmatmul.bf16.gmra.mxu0 %v1555
        %v4836 = vpop.f32.mrf.mxu0
        %v4837 = vadd.f32 %v4824, %v4836
        %v4838 = vpop.f32.mrf.mxu0
        %4839 = vdwg.mxu0
        %4840 = vmatpush.bf16.msra.mxu0 %v3788
        %4841 = vmatpush.bf16.msra.mxu0 %v3787
        %4842 = vmatpush.bf16.msra.mxu0 %v3786
        %4843 = vmatpush.bf16.msra.mxu0 %v3785
        %4844 = vmatpush.bf16.msra.mxu0 %v3784
        %4845 = vmatpush.bf16.msra.mxu0 %v3783
        %4846 = vmatpush.bf16.msra.mxu0 %v3782
        %4847 = vmatpush.bf16.msra.mxu0 %v3781
        %4848 = vmatmul.bf16.gmra.mxu0 %v1556
        %v4849 = vpop.f32.mrf.mxu0
        %v4850 = vadd.f32 %v4837, %v4849
        %v4851 = vpop.f32.mrf.mxu0
        %4852 = vdwg.mxu0
        %4853 = vmatpush.bf16.msra.mxu0 %v3796
        %4854 = vmatpush.bf16.msra.mxu0 %v3795
        %4855 = vmatpush.bf16.msra.mxu0 %v3794
        %4856 = vmatpush.bf16.msra.mxu0 %v3793
        %4857 = vmatpush.bf16.msra.mxu0 %v3792
        %4858 = vmatpush.bf16.msra.mxu0 %v3791
        %4859 = vmatpush.bf16.msra.mxu0 %v3790
        %4860 = vmatpush.bf16.msra.mxu0 %v3789
        %4861 = vmatmul.bf16.gmra.mxu0 %v1557
        %v4862 = vpop.f32.mrf.mxu0
        %v4863 = vadd.f32 %v4850, %v4862
        %v4864 = vpop.f32.mrf.mxu0
        %4865 = vdwg.mxu0
        %4866 = vmatpush.bf16.msra.mxu0 %v3804
        %4867 = vmatpush.bf16.msra.mxu0 %v3803
        %4868 = vmatpush.bf16.msra.mxu0 %v3802
        %4869 = vmatpush.bf16.msra.mxu0 %v3801
        %4870 = vmatpush.bf16.msra.mxu0 %v3800
        %4871 = vmatpush.bf16.msra.mxu0 %v3799
        %4872 = vmatpush.bf16.msra.mxu0 %v3798
        %4873 = vmatpush.bf16.msra.mxu0 %v3797
        %4874 = vmatmul.bf16.gmra.mxu0 %v1558
        %v4875 = vpop.f32.mrf.mxu0
        %v4876 = vadd.f32 %v4863, %v4875
        %v4877 = vpop.f32.mrf.mxu0
        %4878 = vdwg.mxu0
        %4879 = vmatpush.bf16.msra.mxu0 %v3812
        %4880 = vmatpush.bf16.msra.mxu0 %v3811
        %4881 = vmatpush.bf16.msra.mxu0 %v3810
        %4882 = vmatpush.bf16.msra.mxu0 %v3809
        %4883 = vmatpush.bf16.msra.mxu0 %v3808
        %4884 = vmatpush.bf16.msra.mxu0 %v3807
        %4885 = vmatpush.bf16.msra.mxu0 %v3806
        %4886 = vmatpush.bf16.msra.mxu0 %v3805
        %4887 = vmatmul.bf16.gmra.mxu0 %v1559
        %v4888 = vpop.f32.mrf.mxu0
        %v4889 = vadd.f32 %v4876, %v4888
        %v4890 = vpop.f32.mrf.mxu0
        %4891 = vdwg.mxu0
        %4892 = vmatpush.bf16.msra.mxu0 %v3820
        %4893 = vmatpush.bf16.msra.mxu0 %v3819
        %4894 = vmatpush.bf16.msra.mxu0 %v3818
        %4895 = vmatpush.bf16.msra.mxu0 %v3817
        %4896 = vmatpush.bf16.msra.mxu0 %v3816
        %4897 = vmatpush.bf16.msra.mxu0 %v3815
        %4898 = vmatpush.bf16.msra.mxu0 %v3814
        %4899 = vmatpush.bf16.msra.mxu0 %v3813
        %4900 = vmatmul.bf16.gmra.mxu0 %v1560
        %v4901 = vpop.f32.mrf.mxu0
        %v4902 = vadd.f32 %v4889, %v4901
        %v4903 = vpop.f32.mrf.mxu0
        %4904 = vdwg.mxu0
        %4905 = vmatpush.bf16.msra.mxu0 %v3828
        %4906 = vmatpush.bf16.msra.mxu0 %v3827
        %4907 = vmatpush.bf16.msra.mxu0 %v3826
        %4908 = vmatpush.bf16.msra.mxu0 %v3825
        %4909 = vmatpush.bf16.msra.mxu0 %v3824
        %4910 = vmatpush.bf16.msra.mxu0 %v3823
        %4911 = vmatpush.bf16.msra.mxu0 %v3822
        %4912 = vmatpush.bf16.msra.mxu0 %v3821
        %4913 = vmatmul.bf16.gmra.mxu0 %v1561
        %v4914 = vpop.f32.mrf.mxu0
        %v4915 = vadd.f32 %v4902, %v4914
        %v4916 = vpop.f32.mrf.mxu0
        %4917 = vdwg.mxu0
        %4918 = vmatpush.bf16.msra.mxu0 %v3836
        %4919 = vmatpush.bf16.msra.mxu0 %v3835
        %4920 = vmatpush.bf16.msra.mxu0 %v3834
        %4921 = vmatpush.bf16.msra.mxu0 %v3833
        %4922 = vmatpush.bf16.msra.mxu0 %v3832
        %4923 = vmatpush.bf16.msra.mxu0 %v3831
        %4924 = vmatpush.bf16.msra.mxu0 %v3830
        %4925 = vmatpush.bf16.msra.mxu0 %v3829
        %4926 = vmatmul.bf16.gmra.mxu0 %v1562
        %v4927 = vpop.f32.mrf.mxu0
        %v4928 = vadd.f32 %v4915, %v4927
        %v4929 = vpop.f32.mrf.mxu0
        %4930 = vdwg.mxu0
        %4931 = vmatpush.bf16.msra.mxu0 %v3844
        %4932 = vmatpush.bf16.msra.mxu0 %v3843
        %4933 = vmatpush.bf16.msra.mxu0 %v3842
        %4934 = vmatpush.bf16.msra.mxu0 %v3841
        %4935 = vmatpush.bf16.msra.mxu0 %v3840
        %4936 = vmatpush.bf16.msra.mxu0 %v3839
        %4937 = vmatpush.bf16.msra.mxu0 %v3838
        %4938 = vmatpush.bf16.msra.mxu0 %v3837
        %4939 = vmatmul.bf16.gmra.mxu0 %v1563
        %v4940 = vpop.f32.mrf.mxu0
        %v4941 = vadd.f32 %v4928, %v4940
        %v4942 = vpop.f32.mrf.mxu0
        %4943 = vdwg.mxu0
        %4944 = vmatpush.bf16.msra.mxu0 %v3852
        %4945 = vmatpush.bf16.msra.mxu0 %v3851
        %4946 = vmatpush.bf16.msra.mxu0 %v3850
        %4947 = vmatpush.bf16.msra.mxu0 %v3849
        %4948 = vmatpush.bf16.msra.mxu0 %v3848
        %4949 = vmatpush.bf16.msra.mxu0 %v3847
        %4950 = vmatpush.bf16.msra.mxu0 %v3846
        %4951 = vmatpush.bf16.msra.mxu0 %v3845
        %4952 = vmatmul.bf16.gmra.mxu0 %v1564
        %v4953 = vpop.f32.mrf.mxu0
        %v4954 = vadd.f32 %v4941, %v4953
        %v4955 = vpop.f32.mrf.mxu0
        %4956 = vdwg.mxu0
        %4957 = vmatpush.bf16.msra.mxu0 %v3860
        %4958 = vmatpush.bf16.msra.mxu0 %v3859
        %4959 = vmatpush.bf16.msra.mxu0 %v3858
        %4960 = vmatpush.bf16.msra.mxu0 %v3857
        %4961 = vmatpush.bf16.msra.mxu0 %v3856
        %4962 = vmatpush.bf16.msra.mxu0 %v3855
        %4963 = vmatpush.bf16.msra.mxu0 %v3854
        %4964 = vmatpush.bf16.msra.mxu0 %v3853
        %4965 = vmatmul.bf16.gmra.mxu0 %v1565
        %v4966 = vpop.f32.mrf.mxu0
        %v4967 = vadd.f32 %v4954, %v4966
        %v4968 = vpop.f32.mrf.mxu0
        %4969 = vdwg.mxu0
        %4970 = vmatpush.bf16.msra.mxu0 %v3868
        %4971 = vmatpush.bf16.msra.mxu0 %v3867
        %4972 = vmatpush.bf16.msra.mxu0 %v3866
        %4973 = vmatpush.bf16.msra.mxu0 %v3865
        %4974 = vmatpush.bf16.msra.mxu0 %v3864
        %4975 = vmatpush.bf16.msra.mxu0 %v3863
        %4976 = vmatpush.bf16.msra.mxu0 %v3862
        %4977 = vmatpush.bf16.msra.mxu0 %v3861
        %4978 = vmatmul.bf16.gmra.mxu0 %v1566
        %v4979 = vpop.f32.mrf.mxu0
        %v4980 = vadd.f32 %v4967, %v4979
        %v4981 = vpop.f32.mrf.mxu0
        %4982 = vdwg.mxu0
        %4983 = vmatpush.bf16.msra.mxu0 %v3876
        %4984 = vmatpush.bf16.msra.mxu0 %v3875
        %4985 = vmatpush.bf16.msra.mxu0 %v3874
        %4986 = vmatpush.bf16.msra.mxu0 %v3873
        %4987 = vmatpush.bf16.msra.mxu0 %v3872
        %4988 = vmatpush.bf16.msra.mxu0 %v3871
        %4989 = vmatpush.bf16.msra.mxu0 %v3870
        %4990 = vmatpush.bf16.msra.mxu0 %v3869
        %4991 = vmatmul.bf16.gmra.mxu0 %v1567
        %v4992 = vpop.f32.mrf.mxu0
        %v4993 = vadd.f32 %v4980, %v4992
        %v4994 = vpop.f32.mrf.mxu0
        %4995 = vdwg.mxu0
        %4996 = vmatpush.bf16.msra.mxu0 %v3884
        %4997 = vmatpush.bf16.msra.mxu0 %v3883
        %4998 = vmatpush.bf16.msra.mxu0 %v3882
        %4999 = vmatpush.bf16.msra.mxu0 %v3881
        %5000 = vmatpush.bf16.msra.mxu0 %v3880
        %5001 = vmatpush.bf16.msra.mxu0 %v3879
        %5002 = vmatpush.bf16.msra.mxu0 %v3878
        %5003 = vmatpush.bf16.msra.mxu0 %v3877
        %5004 = vmatmul.bf16.gmra.mxu0 %v1568
        %v5005 = vpop.f32.mrf.mxu0
        %v5006 = vadd.f32 %v4993, %v5005
        %v5007 = vpop.f32.mrf.mxu0
        %5008 = vdwg.mxu0
        %5009 = vmatpush.bf16.msra.mxu0 %v3892
        %5010 = vmatpush.bf16.msra.mxu0 %v3891
        %5011 = vmatpush.bf16.msra.mxu0 %v3890
        %5012 = vmatpush.bf16.msra.mxu0 %v3889
        %5013 = vmatpush.bf16.msra.mxu0 %v3888
        %5014 = vmatpush.bf16.msra.mxu0 %v3887
        %5015 = vmatpush.bf16.msra.mxu0 %v3886
        %5016 = vmatpush.bf16.msra.mxu0 %v3885
        %5017 = vmatmul.bf16.gmra.mxu0 %v1569
        %v5018 = vpop.f32.mrf.mxu0
        %v5019 = vadd.f32 %v5006, %v5018
        %v5020 = vpop.f32.mrf.mxu0
        %5021 = vdwg.mxu0
        %5022 = vmatpush.bf16.msra.mxu0 %v3900
        %5023 = vmatpush.bf16.msra.mxu0 %v3899
        %5024 = vmatpush.bf16.msra.mxu0 %v3898
        %5025 = vmatpush.bf16.msra.mxu0 %v3897
        %5026 = vmatpush.bf16.msra.mxu0 %v3896
        %5027 = vmatpush.bf16.msra.mxu0 %v3895
        %5028 = vmatpush.bf16.msra.mxu0 %v3894
        %5029 = vmatpush.bf16.msra.mxu0 %v3893
        %5030 = vmatmul.bf16.gmra.mxu0 %v1570
        %v5031 = vpop.f32.mrf.mxu0
        %v5032 = vadd.f32 %v5019, %v5031
        %v5033 = vpop.f32.mrf.mxu0
        %5034 = vdwg.mxu0
        %5035 = vmatpush.bf16.msra.mxu0 %v3908
        %5036 = vmatpush.bf16.msra.mxu0 %v3907
        %5037 = vmatpush.bf16.msra.mxu0 %v3906
        %5038 = vmatpush.bf16.msra.mxu0 %v3905
        %5039 = vmatpush.bf16.msra.mxu0 %v3904
        %5040 = vmatpush.bf16.msra.mxu0 %v3903
        %5041 = vmatpush.bf16.msra.mxu0 %v3902
        %5042 = vmatpush.bf16.msra.mxu0 %v3901
        %5043 = vmatmul.bf16.gmra.mxu0 %v1571
        %v5044 = vpop.f32.mrf.mxu0
        %v5045 = vadd.f32 %v5032, %v5044
        %v5046 = vpop.f32.mrf.mxu0
        %5047 = vdwg.mxu0
        %5048 = vmatpush.bf16.msra.mxu0 %v3916
        %5049 = vmatpush.bf16.msra.mxu0 %v3915
        %5050 = vmatpush.bf16.msra.mxu0 %v3914
        %5051 = vmatpush.bf16.msra.mxu0 %v3913
        %5052 = vmatpush.bf16.msra.mxu0 %v3912
        %5053 = vmatpush.bf16.msra.mxu0 %v3911
        %5054 = vmatpush.bf16.msra.mxu0 %v3910
        %5055 = vmatpush.bf16.msra.mxu0 %v3909
        %5056 = vmatmul.bf16.gmra.mxu0 %v1572
        %v5057 = vpop.f32.mrf.mxu0
        %v5058 = vadd.f32 %v5045, %v5057
        %v5059 = vpop.f32.mrf.mxu0
        %5060 = vdwg.mxu0
        %5061 = vmatpush.bf16.msra.mxu0 %v3924
        %5062 = vmatpush.bf16.msra.mxu0 %v3923
        %5063 = vmatpush.bf16.msra.mxu0 %v3922
        %5064 = vmatpush.bf16.msra.mxu0 %v3921
        %5065 = vmatpush.bf16.msra.mxu0 %v3920
        %5066 = vmatpush.bf16.msra.mxu0 %v3919
        %5067 = vmatpush.bf16.msra.mxu0 %v3918
        %5068 = vmatpush.bf16.msra.mxu0 %v3917
        %5069 = vmatmul.bf16.gmra.mxu0 %v1573
        %v5070 = vpop.f32.mrf.mxu0
        %v5071 = vadd.f32 %v5058, %v5070
        %v5072 = vpop.f32.mrf.mxu0
        %5073 = vdwg.mxu0
        %5074 = vmatpush.bf16.msra.mxu0 %v3932
        %5075 = vmatpush.bf16.msra.mxu0 %v3931
        %5076 = vmatpush.bf16.msra.mxu0 %v3930
        %5077 = vmatpush.bf16.msra.mxu0 %v3929
        %5078 = vmatpush.bf16.msra.mxu0 %v3928
        %5079 = vmatpush.bf16.msra.mxu0 %v3927
        %5080 = vmatpush.bf16.msra.mxu0 %v3926
        %5081 = vmatpush.bf16.msra.mxu0 %v3925
        %5082 = vmatmul.bf16.gmra.mxu0 %v1574
        %v5083 = vpop.f32.mrf.mxu0
        %v5084 = vadd.f32 %v5071, %v5083
        %v5085 = vpop.f32.mrf.mxu0
        %5086 = vdwg.mxu0
        %5087 = vmatpush.bf16.msra.mxu0 %v3940
        %5088 = vmatpush.bf16.msra.mxu0 %v3939
        %5089 = vmatpush.bf16.msra.mxu0 %v3938
        %5090 = vmatpush.bf16.msra.mxu0 %v3937
        %5091 = vmatpush.bf16.msra.mxu0 %v3936
        %5092 = vmatpush.bf16.msra.mxu0 %v3935
        %5093 = vmatpush.bf16.msra.mxu0 %v3934
        %5094 = vmatpush.bf16.msra.mxu0 %v3933
        %5095 = vmatmul.bf16.gmra.mxu0 %v1575
        %v5096 = vpop.f32.mrf.mxu0
        %v5097 = vadd.f32 %v5084, %v5096
        %v5098 = vpop.f32.mrf.mxu0
        %5099 = vdwg.mxu0
        %5100 = vmatpush.bf16.msra.mxu0 %v3948
        %5101 = vmatpush.bf16.msra.mxu0 %v3947
        %5102 = vmatpush.bf16.msra.mxu0 %v3946
        %5103 = vmatpush.bf16.msra.mxu0 %v3945
        %5104 = vmatpush.bf16.msra.mxu0 %v3944
        %5105 = vmatpush.bf16.msra.mxu0 %v3943
        %5106 = vmatpush.bf16.msra.mxu0 %v3942
        %5107 = vmatpush.bf16.msra.mxu0 %v3941
        %5108 = vmatmul.bf16.gmra.mxu0 %v1576
        %v5109 = vpop.f32.mrf.mxu0
        %v5110 = vadd.f32 %v5097, %v5109
        %v5111 = vpop.f32.mrf.mxu0
        %5112 = vdwg.mxu0
        %5113 = vmatpush.bf16.msra.mxu0 %v3956
        %5114 = vmatpush.bf16.msra.mxu0 %v3955
        %5115 = vmatpush.bf16.msra.mxu0 %v3954
        %5116 = vmatpush.bf16.msra.mxu0 %v3953
        %5117 = vmatpush.bf16.msra.mxu0 %v3952
        %5118 = vmatpush.bf16.msra.mxu0 %v3951
        %5119 = vmatpush.bf16.msra.mxu0 %v3950
        %5120 = vmatpush.bf16.msra.mxu0 %v3949
        %5121 = vmatmul.bf16.gmra.mxu0 %v1577
        %v5122 = vpop.f32.mrf.mxu0
        %v5123 = vadd.f32 %v5110, %v5122
        %v5124 = vpop.f32.mrf.mxu0
        %5125 = vdwg.mxu0
        %5126 = vmatpush.bf16.msra.mxu0 %v3964
        %5127 = vmatpush.bf16.msra.mxu0 %v3963
        %5128 = vmatpush.bf16.msra.mxu0 %v3962
        %5129 = vmatpush.bf16.msra.mxu0 %v3961
        %5130 = vmatpush.bf16.msra.mxu0 %v3960
        %5131 = vmatpush.bf16.msra.mxu0 %v3959
        %5132 = vmatpush.bf16.msra.mxu0 %v3958
        %5133 = vmatpush.bf16.msra.mxu0 %v3957
        %5134 = vmatmul.bf16.gmra.mxu0 %v1578
        %v5135 = vpop.f32.mrf.mxu0
        %v5136 = vadd.f32 %v5123, %v5135
        %v5137 = vpop.f32.mrf.mxu0
        %5138 = vdwg.mxu0
        %5139 = vmatpush.bf16.msra.mxu0 %v3972
        %5140 = vmatpush.bf16.msra.mxu0 %v3971
        %5141 = vmatpush.bf16.msra.mxu0 %v3970
        %5142 = vmatpush.bf16.msra.mxu0 %v3969
        %5143 = vmatpush.bf16.msra.mxu0 %v3968
        %5144 = vmatpush.bf16.msra.mxu0 %v3967
        %5145 = vmatpush.bf16.msra.mxu0 %v3966
        %5146 = vmatpush.bf16.msra.mxu0 %v3965
        %5147 = vmatmul.bf16.gmra.mxu0 %v1579
        %v5148 = vpop.f32.mrf.mxu0
        %v5149 = vadd.f32 %v5136, %v5148
        %v5150 = vpop.f32.mrf.mxu0
        %5151 = vdwg.mxu0
        %5152 = vmatpush.bf16.msra.mxu0 %v3980
        %5153 = vmatpush.bf16.msra.mxu0 %v3979
        %5154 = vmatpush.bf16.msra.mxu0 %v3978
        %5155 = vmatpush.bf16.msra.mxu0 %v3977
        %5156 = vmatpush.bf16.msra.mxu0 %v3976
        %5157 = vmatpush.bf16.msra.mxu0 %v3975
        %5158 = vmatpush.bf16.msra.mxu0 %v3974
        %5159 = vmatpush.bf16.msra.mxu0 %v3973
        %5160 = vmatmul.bf16.gmra.mxu0 %v1580
        %v5161 = vpop.f32.mrf.mxu0
        %v5162 = vadd.f32 %v5149, %v5161
        %v5163 = vpop.f32.mrf.mxu0
        %5164 = vdwg.mxu0
        %5165 = vmatpush.bf16.msra.mxu0 %v3988
        %5166 = vmatpush.bf16.msra.mxu0 %v3987
        %5167 = vmatpush.bf16.msra.mxu0 %v3986
        %5168 = vmatpush.bf16.msra.mxu0 %v3985
        %5169 = vmatpush.bf16.msra.mxu0 %v3984
        %5170 = vmatpush.bf16.msra.mxu0 %v3983
        %5171 = vmatpush.bf16.msra.mxu0 %v3982
        %5172 = vmatpush.bf16.msra.mxu0 %v3981
        %5173 = vmatmul.bf16.gmra.mxu0 %v1581
        %v5174 = vpop.f32.mrf.mxu0
        %v5175 = vadd.f32 %v5162, %v5174
        %v5176 = vpop.f32.mrf.mxu0
        %5177 = vdwg.mxu0
        %5178 = vmatpush.bf16.msra.mxu0 %v3996
        %5179 = vmatpush.bf16.msra.mxu0 %v3995
        %5180 = vmatpush.bf16.msra.mxu0 %v3994
        %5181 = vmatpush.bf16.msra.mxu0 %v3993
        %5182 = vmatpush.bf16.msra.mxu0 %v3992
        %5183 = vmatpush.bf16.msra.mxu0 %v3991
        %5184 = vmatpush.bf16.msra.mxu0 %v3990
        %5185 = vmatpush.bf16.msra.mxu0 %v3989
        %5186 = vmatmul.bf16.gmra.mxu0 %v1582
        %v5187 = vpop.f32.mrf.mxu0
        %v5188 = vadd.f32 %v5175, %v5187
        %v5189 = vpop.f32.mrf.mxu0
        %5190 = vdwg.mxu0
        %5191 = vmatpush.bf16.msra.mxu0 %v4004
        %5192 = vmatpush.bf16.msra.mxu0 %v4003
        %5193 = vmatpush.bf16.msra.mxu0 %v4002
        %5194 = vmatpush.bf16.msra.mxu0 %v4001
        %5195 = vmatpush.bf16.msra.mxu0 %v4000
        %5196 = vmatpush.bf16.msra.mxu0 %v3999
        %5197 = vmatpush.bf16.msra.mxu0 %v3998
        %5198 = vmatpush.bf16.msra.mxu0 %v3997
        %5199 = vmatmul.bf16.gmra.mxu0 %v1583
        %v5200 = vpop.f32.mrf.mxu0
        %v5201 = vadd.f32 %v5188, %v5200
        %v5202 = vpop.f32.mrf.mxu0
        %5203 = vdwg.mxu0
        %5204 = vmatpush.bf16.msra.mxu0 %v4012
        %5205 = vmatpush.bf16.msra.mxu0 %v4011
        %5206 = vmatpush.bf16.msra.mxu0 %v4010
        %5207 = vmatpush.bf16.msra.mxu0 %v4009
        %5208 = vmatpush.bf16.msra.mxu0 %v4008
        %5209 = vmatpush.bf16.msra.mxu0 %v4007
        %5210 = vmatpush.bf16.msra.mxu0 %v4006
        %5211 = vmatpush.bf16.msra.mxu0 %v4005
        %5212 = vmatmul.bf16.gmra.mxu0 %v1584
        %v5213 = vpop.f32.mrf.mxu0
        %v5214 = vadd.f32 %v5201, %v5213
        %v5215 = vpop.f32.mrf.mxu0
        %5216 = vdwg.mxu0
        %5217 = vmatpush.bf16.msra.mxu0 %v4020
        %5218 = vmatpush.bf16.msra.mxu0 %v4019
        %5219 = vmatpush.bf16.msra.mxu0 %v4018
        %5220 = vmatpush.bf16.msra.mxu0 %v4017
        %5221 = vmatpush.bf16.msra.mxu0 %v4016
        %5222 = vmatpush.bf16.msra.mxu0 %v4015
        %5223 = vmatpush.bf16.msra.mxu0 %v4014
        %5224 = vmatpush.bf16.msra.mxu0 %v4013
        %5225 = vmatmul.bf16.gmra.mxu0 %v1585
        %v5226 = vpop.f32.mrf.mxu0
        %v5227 = vadd.f32 %v5214, %v5226
        %v5228 = vpop.f32.mrf.mxu0
        %5229 = vdwg.mxu0
        %5230 = vmatpush.bf16.msra.mxu0 %v4028
        %5231 = vmatpush.bf16.msra.mxu0 %v4027
        %5232 = vmatpush.bf16.msra.mxu0 %v4026
        %5233 = vmatpush.bf16.msra.mxu0 %v4025
        %5234 = vmatpush.bf16.msra.mxu0 %v4024
        %5235 = vmatpush.bf16.msra.mxu0 %v4023
        %5236 = vmatpush.bf16.msra.mxu0 %v4022
        %5237 = vmatpush.bf16.msra.mxu0 %v4021
        %5238 = vmatmul.bf16.gmra.mxu0 %v1586
        %v5239 = vpop.f32.mrf.mxu0
        %v5240 = vadd.f32 %v5227, %v5239
        %v5241 = vpop.f32.mrf.mxu0
        %5242 = vdwg.mxu0
        %5243 = vmatpush.bf16.msra.mxu0 %v4036
        %5244 = vmatpush.bf16.msra.mxu0 %v4035
        %5245 = vmatpush.bf16.msra.mxu0 %v4034
        %5246 = vmatpush.bf16.msra.mxu0 %v4033
        %5247 = vmatpush.bf16.msra.mxu0 %v4032
        %5248 = vmatpush.bf16.msra.mxu0 %v4031
        %5249 = vmatpush.bf16.msra.mxu0 %v4030
        %5250 = vmatpush.bf16.msra.mxu0 %v4029
        %5251 = vmatmul.bf16.gmra.mxu0 %v1587
        %v5252 = vpop.f32.mrf.mxu0
        %v5253 = vadd.f32 %v5240, %v5252
        %v5254 = vpop.f32.mrf.mxu0
        %5255 = vdwg.mxu0
        %5256 = vmatpush.bf16.msra.mxu0 %v4044
        %5257 = vmatpush.bf16.msra.mxu0 %v4043
        %5258 = vmatpush.bf16.msra.mxu0 %v4042
        %5259 = vmatpush.bf16.msra.mxu0 %v4041
        %5260 = vmatpush.bf16.msra.mxu0 %v4040
        %5261 = vmatpush.bf16.msra.mxu0 %v4039
        %5262 = vmatpush.bf16.msra.mxu0 %v4038
        %5263 = vmatpush.bf16.msra.mxu0 %v4037
        %5264 = vmatmul.bf16.gmra.mxu0 %v1588
        %v5265 = vpop.f32.mrf.mxu0
        %v5266 = vadd.f32 %v5253, %v5265
        %v5267 = vpop.f32.mrf.mxu0
        %5268 = vdwg.mxu0
        %5269 = vmatpush.bf16.msra.mxu0 %v4052
        %5270 = vmatpush.bf16.msra.mxu0 %v4051
        %5271 = vmatpush.bf16.msra.mxu0 %v4050
        %5272 = vmatpush.bf16.msra.mxu0 %v4049
        %5273 = vmatpush.bf16.msra.mxu0 %v4048
        %5274 = vmatpush.bf16.msra.mxu0 %v4047
        %5275 = vmatpush.bf16.msra.mxu0 %v4046
        %5276 = vmatpush.bf16.msra.mxu0 %v4045
        %5277 = vmatmul.bf16.gmra.mxu0 %v1589
        %v5278 = vpop.f32.mrf.mxu0
        %v5279 = vadd.f32 %v5266, %v5278
        %v5280 = vpop.f32.mrf.mxu0
        %5281 = vdwg.mxu0
        %5282 = vmatpush.bf16.msra.mxu0 %v4060
        %5283 = vmatpush.bf16.msra.mxu0 %v4059
        %5284 = vmatpush.bf16.msra.mxu0 %v4058
        %5285 = vmatpush.bf16.msra.mxu0 %v4057
        %5286 = vmatpush.bf16.msra.mxu0 %v4056
        %5287 = vmatpush.bf16.msra.mxu0 %v4055
        %5288 = vmatpush.bf16.msra.mxu0 %v4054
        %5289 = vmatpush.bf16.msra.mxu0 %v4053
        %5290 = vmatmul.bf16.gmra.mxu0 %v1590
        %v5291 = vpop.f32.mrf.mxu0
        %v5292 = vadd.f32 %v5279, %v5291
        %v5293 = vpop.f32.mrf.mxu0
        %5294 = vdwg.mxu0
        %5295 = vmatpush.bf16.msra.mxu0 %v4068
        %5296 = vmatpush.bf16.msra.mxu0 %v4067
        %5297 = vmatpush.bf16.msra.mxu0 %v4066
        %5298 = vmatpush.bf16.msra.mxu0 %v4065
        %5299 = vmatpush.bf16.msra.mxu0 %v4064
        %5300 = vmatpush.bf16.msra.mxu0 %v4063
        %5301 = vmatpush.bf16.msra.mxu0 %v4062
        %5302 = vmatpush.bf16.msra.mxu0 %v4061
        %5303 = vmatmul.bf16.gmra.mxu0 %v1591
        %v5304 = vpop.f32.mrf.mxu0
        %v5305 = vadd.f32 %v5292, %v5304
        %v5306 = vpop.f32.mrf.mxu0
        %5307 = vdwg.mxu0
        %5308 = vmatpush.bf16.msra.mxu0 %v4076
        %5309 = vmatpush.bf16.msra.mxu0 %v4075
        %5310 = vmatpush.bf16.msra.mxu0 %v4074
        %5311 = vmatpush.bf16.msra.mxu0 %v4073
        %5312 = vmatpush.bf16.msra.mxu0 %v4072
        %5313 = vmatpush.bf16.msra.mxu0 %v4071
        %5314 = vmatpush.bf16.msra.mxu0 %v4070
        %5315 = vmatpush.bf16.msra.mxu0 %v4069
        %5316 = vmatmul.bf16.gmra.mxu0 %v1592
        %v5317 = vpop.f32.mrf.mxu0
        %v5318 = vadd.f32 %v5305, %v5317
        %v5319 = vpop.f32.mrf.mxu0
        %5320 = vdwg.mxu0
        %5321 = vmatpush.bf16.msra.mxu0 %v4084
        %5322 = vmatpush.bf16.msra.mxu0 %v4083
        %5323 = vmatpush.bf16.msra.mxu0 %v4082
        %5324 = vmatpush.bf16.msra.mxu0 %v4081
        %5325 = vmatpush.bf16.msra.mxu0 %v4080
        %5326 = vmatpush.bf16.msra.mxu0 %v4079
        %5327 = vmatpush.bf16.msra.mxu0 %v4078
        %5328 = vmatpush.bf16.msra.mxu0 %v4077
        %5329 = vmatmul.bf16.gmra.mxu0 %v1593
        %v5330 = vpop.f32.mrf.mxu0
        %v5331 = vadd.f32 %v5318, %v5330
        %v5332 = vpop.f32.mrf.mxu0
        %5333 = vdwg.mxu0
        %5334 = vmatpush.bf16.msra.mxu0 %v4092
        %5335 = vmatpush.bf16.msra.mxu0 %v4091
        %5336 = vmatpush.bf16.msra.mxu0 %v4090
        %5337 = vmatpush.bf16.msra.mxu0 %v4089
        %5338 = vmatpush.bf16.msra.mxu0 %v4088
        %5339 = vmatpush.bf16.msra.mxu0 %v4087
        %5340 = vmatpush.bf16.msra.mxu0 %v4086
        %5341 = vmatpush.bf16.msra.mxu0 %v4085
        %5342 = vmatmul.bf16.gmra.mxu0 %v1594
        %v5343 = vpop.f32.mrf.mxu0
        %v5344 = vadd.f32 %v5331, %v5343
        %v5345 = vpop.f32.mrf.mxu0
        %5346 = vdwg.mxu0
        %5347 = vmatpush.bf16.msra.mxu0 %v4100
        %5348 = vmatpush.bf16.msra.mxu0 %v4099
        %5349 = vmatpush.bf16.msra.mxu0 %v4098
        %5350 = vmatpush.bf16.msra.mxu0 %v4097
        %5351 = vmatpush.bf16.msra.mxu0 %v4096
        %5352 = vmatpush.bf16.msra.mxu0 %v4095
        %5353 = vmatpush.bf16.msra.mxu0 %v4094
        %5354 = vmatpush.bf16.msra.mxu0 %v4093
        %5355 = vmatmul.bf16.gmra.mxu0 %v1595
        %v5356 = vpop.f32.mrf.mxu0
        %v5357 = vadd.f32 %v5344, %v5356
        %v5358 = vpop.f32.mrf.mxu0
        %5359 = vdwg.mxu0
        %5360 = vmatpush.bf16.msra.mxu0 %v4108
        %5361 = vmatpush.bf16.msra.mxu0 %v4107
        %5362 = vmatpush.bf16.msra.mxu0 %v4106
        %5363 = vmatpush.bf16.msra.mxu0 %v4105
        %5364 = vmatpush.bf16.msra.mxu0 %v4104
        %5365 = vmatpush.bf16.msra.mxu0 %v4103
        %5366 = vmatpush.bf16.msra.mxu0 %v4102
        %5367 = vmatpush.bf16.msra.mxu0 %v4101
        %5368 = vmatmul.bf16.gmra.mxu0 %v1596
        %v5369 = vpop.f32.mrf.mxu0
        %v5370 = vadd.f32 %v5357, %v5369
        %v5371 = vpop.f32.mrf.mxu0
        %5372 = vdwg.mxu0
        %5373 = vmatpush.bf16.msra.mxu0 %v4116
        %5374 = vmatpush.bf16.msra.mxu0 %v4115
        %5375 = vmatpush.bf16.msra.mxu0 %v4114
        %5376 = vmatpush.bf16.msra.mxu0 %v4113
        %5377 = vmatpush.bf16.msra.mxu0 %v4112
        %5378 = vmatpush.bf16.msra.mxu0 %v4111
        %5379 = vmatpush.bf16.msra.mxu0 %v4110
        %5380 = vmatpush.bf16.msra.mxu0 %v4109
        %5381 = vmatmul.bf16.gmra.mxu0 %v1597
        %v5382 = vpop.f32.mrf.mxu0
        %v5383 = vadd.f32 %v5370, %v5382
        %v5384 = vpop.f32.mrf.mxu0
        %5385 = vdwg.mxu0
        %5386 = vmatpush.bf16.msra.mxu0 %v4124
        %5387 = vmatpush.bf16.msra.mxu0 %v4123
        %5388 = vmatpush.bf16.msra.mxu0 %v4122
        %5389 = vmatpush.bf16.msra.mxu0 %v4121
        %5390 = vmatpush.bf16.msra.mxu0 %v4120
        %5391 = vmatpush.bf16.msra.mxu0 %v4119
        %5392 = vmatpush.bf16.msra.mxu0 %v4118
        %5393 = vmatpush.bf16.msra.mxu0 %v4117
        %5394 = vmatmul.bf16.gmra.mxu0 %v1598
        %v5395 = vpop.f32.mrf.mxu0
        %v5396 = vadd.f32 %v5383, %v5395
        %v5397 = vpop.f32.mrf.mxu0
        %5398 = vdwg.mxu0
        %5399 = vmatpush.bf16.msra.mxu0 %v4132
        %5400 = vmatpush.bf16.msra.mxu0 %v4131
        %5401 = vmatpush.bf16.msra.mxu0 %v4130
        %5402 = vmatpush.bf16.msra.mxu0 %v4129
        %5403 = vmatpush.bf16.msra.mxu0 %v4128
        %5404 = vmatpush.bf16.msra.mxu0 %v4127
        %5405 = vmatpush.bf16.msra.mxu0 %v4126
        %5406 = vmatpush.bf16.msra.mxu0 %v4125
        %5407 = vmatmul.bf16.gmra.mxu0 %v1599
        %v5408 = vpop.f32.mrf.mxu0
        %v5409 = vadd.f32 %v5396, %v5408
        %v5410 = vpop.f32.mrf.mxu0
        %5411 = vdwg.mxu0
        %5412 = vmatpush.bf16.msra.mxu0 %v4140
        %5413 = vmatpush.bf16.msra.mxu0 %v4139
        %5414 = vmatpush.bf16.msra.mxu0 %v4138
        %5415 = vmatpush.bf16.msra.mxu0 %v4137
        %5416 = vmatpush.bf16.msra.mxu0 %v4136
        %5417 = vmatpush.bf16.msra.mxu0 %v4135
        %5418 = vmatpush.bf16.msra.mxu0 %v4134
        %5419 = vmatpush.bf16.msra.mxu0 %v4133
        %5420 = vmatmul.bf16.gmra.mxu0 %v1600
        %v5421 = vpop.f32.mrf.mxu0
        %v5422 = vadd.f32 %v5409, %v5421
        %v5423 = vpop.f32.mrf.mxu0
        %5424 = vdwg.mxu0
        %5425 = vmatpush.bf16.msra.mxu0 %v4148
        %5426 = vmatpush.bf16.msra.mxu0 %v4147
        %5427 = vmatpush.bf16.msra.mxu0 %v4146
        %5428 = vmatpush.bf16.msra.mxu0 %v4145
        %5429 = vmatpush.bf16.msra.mxu0 %v4144
        %5430 = vmatpush.bf16.msra.mxu0 %v4143
        %5431 = vmatpush.bf16.msra.mxu0 %v4142
        %5432 = vmatpush.bf16.msra.mxu0 %v4141
        %5433 = vmatmul.bf16.gmra.mxu0 %v1601
        %v5434 = vpop.f32.mrf.mxu0
        %v5435 = vadd.f32 %v5422, %v5434
        %v5436 = vpop.f32.mrf.mxu0
        %5437 = vdwg.mxu0
        %5438 = vmatpush.bf16.msra.mxu0 %v4156
        %5439 = vmatpush.bf16.msra.mxu0 %v4155
        %5440 = vmatpush.bf16.msra.mxu0 %v4154
        %5441 = vmatpush.bf16.msra.mxu0 %v4153
        %5442 = vmatpush.bf16.msra.mxu0 %v4152
        %5443 = vmatpush.bf16.msra.mxu0 %v4151
        %5444 = vmatpush.bf16.msra.mxu0 %v4150
        %5445 = vmatpush.bf16.msra.mxu0 %v4149
        %5446 = vmatmul.bf16.gmra.mxu0 %v1602
        %v5447 = vpop.f32.mrf.mxu0
        %v5448 = vadd.f32 %v5435, %v5447
        %v5449 = vpop.f32.mrf.mxu0
        %5450 = vdwg.mxu0
        %5451 = vmatpush.bf16.msra.mxu0 %v4164
        %5452 = vmatpush.bf16.msra.mxu0 %v4163
        %5453 = vmatpush.bf16.msra.mxu0 %v4162
        %5454 = vmatpush.bf16.msra.mxu0 %v4161
        %5455 = vmatpush.bf16.msra.mxu0 %v4160
        %5456 = vmatpush.bf16.msra.mxu0 %v4159
        %5457 = vmatpush.bf16.msra.mxu0 %v4158
        %5458 = vmatpush.bf16.msra.mxu0 %v4157
        %5459 = vmatmul.bf16.gmra.mxu0 %v1603
        %v5460 = vpop.f32.mrf.mxu0
        %v5461 = vadd.f32 %v5448, %v5460
        %v5462 = vpop.f32.mrf.mxu0
        %5463 = vdwg.mxu0
        %5464 = vmatpush.bf16.msra.mxu0 %v4172
        %5465 = vmatpush.bf16.msra.mxu0 %v4171
        %5466 = vmatpush.bf16.msra.mxu0 %v4170
        %5467 = vmatpush.bf16.msra.mxu0 %v4169
        %5468 = vmatpush.bf16.msra.mxu0 %v4168
        %5469 = vmatpush.bf16.msra.mxu0 %v4167
        %5470 = vmatpush.bf16.msra.mxu0 %v4166
        %5471 = vmatpush.bf16.msra.mxu0 %v4165
        %5472 = vmatmul.bf16.gmra.mxu0 %v1604
        %v5473 = vpop.f32.mrf.mxu0
        %v5474 = vadd.f32 %v5461, %v5473
        %v5475 = vpop.f32.mrf.mxu0
        %5476 = vdwg.mxu0
        %5477 = vmatpush.bf16.msra.mxu0 %v4180
        %5478 = vmatpush.bf16.msra.mxu0 %v4179
        %5479 = vmatpush.bf16.msra.mxu0 %v4178
        %5480 = vmatpush.bf16.msra.mxu0 %v4177
        %5481 = vmatpush.bf16.msra.mxu0 %v4176
        %5482 = vmatpush.bf16.msra.mxu0 %v4175
        %5483 = vmatpush.bf16.msra.mxu0 %v4174
        %5484 = vmatpush.bf16.msra.mxu0 %v4173
        %5485 = vmatmul.bf16.gmra.mxu0 %v1605
        %v5486 = vpop.f32.mrf.mxu0
        %v5487 = vadd.f32 %v5474, %v5486
        %v5488 = vpop.f32.mrf.mxu0
        %5489 = vdwg.mxu0
        %5490 = vmatpush.bf16.msra.mxu0 %v4188
        %5491 = vmatpush.bf16.msra.mxu0 %v4187
        %5492 = vmatpush.bf16.msra.mxu0 %v4186
        %5493 = vmatpush.bf16.msra.mxu0 %v4185
        %5494 = vmatpush.bf16.msra.mxu0 %v4184
        %5495 = vmatpush.bf16.msra.mxu0 %v4183
        %5496 = vmatpush.bf16.msra.mxu0 %v4182
        %5497 = vmatpush.bf16.msra.mxu0 %v4181
        %5498 = vmatmul.bf16.gmra.mxu0 %v1606
        %v5499 = vpop.f32.mrf.mxu0
        %v5500 = vadd.f32 %v5487, %v5499
        %v5501 = vpop.f32.mrf.mxu0
        %5502 = vdwg.mxu0
        %5503 = vmatpush.bf16.msra.mxu0 %v4196
        %5504 = vmatpush.bf16.msra.mxu0 %v4195
        %5505 = vmatpush.bf16.msra.mxu0 %v4194
        %5506 = vmatpush.bf16.msra.mxu0 %v4193
        %5507 = vmatpush.bf16.msra.mxu0 %v4192
        %5508 = vmatpush.bf16.msra.mxu0 %v4191
        %5509 = vmatpush.bf16.msra.mxu0 %v4190
        %5510 = vmatpush.bf16.msra.mxu0 %v4189
        %5511 = vmatmul.bf16.gmra.mxu0 %v1607
        %v5512 = vpop.f32.mrf.mxu0
        %v5513 = vadd.f32 %v5500, %v5512
        %v5514 = vpop.f32.mrf.mxu0
        %5515 = vdwg.mxu0
        %5516 = vmatpush.bf16.msra.mxu0 %v4204
        %5517 = vmatpush.bf16.msra.mxu0 %v4203
        %5518 = vmatpush.bf16.msra.mxu0 %v4202
        %5519 = vmatpush.bf16.msra.mxu0 %v4201
        %5520 = vmatpush.bf16.msra.mxu0 %v4200
        %5521 = vmatpush.bf16.msra.mxu0 %v4199
        %5522 = vmatpush.bf16.msra.mxu0 %v4198
        %5523 = vmatpush.bf16.msra.mxu0 %v4197
        %5524 = vmatmul.bf16.gmra.mxu0 %v1608
        %v5525 = vpop.f32.mrf.mxu0
        %v5526 = vadd.f32 %v5513, %v5525
        %v5527 = vpop.f32.mrf.mxu0
        %5528 = vdwg.mxu0
        %5529 = vmatpush.bf16.msra.mxu0 %v4212
        %5530 = vmatpush.bf16.msra.mxu0 %v4211
        %5531 = vmatpush.bf16.msra.mxu0 %v4210
        %5532 = vmatpush.bf16.msra.mxu0 %v4209
        %5533 = vmatpush.bf16.msra.mxu0 %v4208
        %5534 = vmatpush.bf16.msra.mxu0 %v4207
        %5535 = vmatpush.bf16.msra.mxu0 %v4206
        %5536 = vmatpush.bf16.msra.mxu0 %v4205
        %5537 = vmatmul.bf16.gmra.mxu0 %v1609
        %v5538 = vpop.f32.mrf.mxu0
        %v5539 = vadd.f32 %v5526, %v5538
        %v5540 = vpop.f32.mrf.mxu0
        %5541 = vdwg.mxu0
        %5542 = vmatpush.bf16.msra.mxu0 %v4220
        %5543 = vmatpush.bf16.msra.mxu0 %v4219
        %5544 = vmatpush.bf16.msra.mxu0 %v4218
        %5545 = vmatpush.bf16.msra.mxu0 %v4217
        %5546 = vmatpush.bf16.msra.mxu0 %v4216
        %5547 = vmatpush.bf16.msra.mxu0 %v4215
        %5548 = vmatpush.bf16.msra.mxu0 %v4214
        %5549 = vmatpush.bf16.msra.mxu0 %v4213
        %5550 = vmatmul.bf16.gmra.mxu0 %v1610
        %v5551 = vpop.f32.mrf.mxu0
        %v5552 = vadd.f32 %v5539, %v5551
        %v5553 = vpop.f32.mrf.mxu0
        %5554 = vdwg.mxu0
        %5555 = vmatpush.bf16.msra.mxu0 %v4228
        %5556 = vmatpush.bf16.msra.mxu0 %v4227
        %5557 = vmatpush.bf16.msra.mxu0 %v4226
        %5558 = vmatpush.bf16.msra.mxu0 %v4225
        %5559 = vmatpush.bf16.msra.mxu0 %v4224
        %5560 = vmatpush.bf16.msra.mxu0 %v4223
        %5561 = vmatpush.bf16.msra.mxu0 %v4222
        %5562 = vmatpush.bf16.msra.mxu0 %v4221
        %5563 = vmatmul.bf16.gmra.mxu0 %v1611
        %v5564 = vpop.f32.mrf.mxu0
        %v5565 = vadd.f32 %v5552, %v5564
        %v5566 = vpop.f32.mrf.mxu0
        %5567 = vdwg.mxu0
        %5568 = vmatpush.bf16.msra.mxu0 %v4236
        %5569 = vmatpush.bf16.msra.mxu0 %v4235
        %5570 = vmatpush.bf16.msra.mxu0 %v4234
        %5571 = vmatpush.bf16.msra.mxu0 %v4233
        %5572 = vmatpush.bf16.msra.mxu0 %v4232
        %5573 = vmatpush.bf16.msra.mxu0 %v4231
        %5574 = vmatpush.bf16.msra.mxu0 %v4230
        %5575 = vmatpush.bf16.msra.mxu0 %v4229
        %5576 = vmatmul.bf16.gmra.mxu0 %v1612
        %v5577 = vpop.f32.mrf.mxu0
        %v5578 = vadd.f32 %v5565, %v5577
        %v5579 = vpop.f32.mrf.mxu0
        %5580 = vdwg.mxu0
        %v5581 = vadd.f32 %v396, %v5578
        %5582 = vst [vmem:[#allocation2] sm:$0xff] %v5581
        %p5583 = scmp.eq.s32.totalorder %s27, 1
        // Predicated region
        $region77: #{tpu_custom_call.1} parent=47 // pred_check
          %p5584 = pneg %p5583
        $region78: #{tpu_custom_call.1} parent=47 // pred_check_branch
          %5586 = sbr.rel (%p5584) target = $region80
        $region79: #{tpu_custom_call.1} parent=47 // pred_region
          %v5587 = vld [vmem:[#allocation2] sm:$0xff]
          %v5588 = vld [vmem:[#allocation8] sm:$0x1]
          %v5590 = vperm.slane %v5588, 0
          %v5592 = vadd.f32 %v5587, %v5590
          %5593 = vadd.xlane.f32.xlu0 %v5592
          %v5594 = vpop.xlane.xlu0 %5593
          %v5595 = vrcp.pop 128.0
          %v5596 = vmul.f32 128.0, %v5595
          %v5597 = vsub.f32 1.0, %v5596
          %v5598 = vmul.f32 %v5595, %v5597
          %v5599 = vadd.f32 %v5595, %v5598
          %vm5600 = vweird.f32 %v5595
          %v5601 = vsel %vm5600, %v5595, %v5599
          %v5602 = vmul.f32 %v5594, %v5601
          %v5603 = vsub.f32 %v5592, %v5602
          %v5604 = vmul.f32 %v5603, %v5603
          %5605 = vadd.xlane.f32.xlu0 %v5604
          %v5606 = vpop.xlane.xlu0 %5605
          %v5607 = vmul.f32 %v5606, %v5601
          %v5608 = vadd.f32 %v5607, 1e-05
          %v5609 = vrsqrt.pop %v5608
          %v5610 = vmul.f32 %v5609, %v5608
          %v5611 = vmul.f32 %v5610, %v5609
          %v5612 = vmul.f32 0.5, %v5611
          %v5613 = vsub.f32 1.5, %v5612
          %v5614 = vmul.f32 %v5609, %v5613
          %vm5615 = vweird.f32 %v5608
          %vm5616 = vweird.f32 %v5609
          %vm5617 = vmor %vm5615, %vm5616
          %v5618 = vsel %vm5617, %v5609, %v5614
          %v5619 = vmul.f32 %v5603, %v5618
          %v5620 = vmax.f32 %v5619, 0.0
          %v5621 = vld [vmem:[#allocation9] sm:$0xf]
          %v5622 = vld [vmem:[#allocation9 + $0x4] sm:$0xf]
          %v5623 = vld [vmem:[#allocation9 + $0x8] sm:$0xf]
          %v5624 = vld [vmem:[#allocation9 + $0xc] sm:$0xf]
          %v5625 = vld [vmem:[#allocation9 + $0x10] sm:$0xf]
          %v5626 = vld [vmem:[#allocation9 + $0x14] sm:$0xf]
          %v5627 = vld [vmem:[#allocation9 + $0x18] sm:$0xf]
          %v5628 = vld [vmem:[#allocation9 + $0x1c] sm:$0xf]
          %v5629 = vld [vmem:[#allocation9 + $0x20] sm:$0xf]
          %v5630 = vld [vmem:[#allocation9 + $0x24] sm:$0xf]
          %v5631 = vld [vmem:[#allocation9 + $0x28] sm:$0xf]
          %v5632 = vld [vmem:[#allocation9 + $0x2c] sm:$0xf]
          %v5633 = vld [vmem:[#allocation9 + $0x30] sm:$0xf]
          %v5634 = vld [vmem:[#allocation9 + $0x34] sm:$0xf]
          %v5635 = vld [vmem:[#allocation9 + $0x38] sm:$0xf]
          %v5636 = vld [vmem:[#allocation9 + $0x3c] sm:$0xf]
          %v5637 = vunpack.c.l.bf16 %v5621
          %v5638 = vunpack.c.l.bf16 %v5622
          %v5639 = vunpack.c.l.bf16 %v5623
          %v5640 = vunpack.c.l.bf16 %v5624
          %v5641 = vunpack.c.l.bf16 %v5625
          %v5642 = vunpack.c.l.bf16 %v5626
          %v5643 = vunpack.c.l.bf16 %v5627
          %v5644 = vunpack.c.l.bf16 %v5628
          %v5645 = vunpack.c.l.bf16 %v5629
          %v5646 = vunpack.c.l.bf16 %v5630
          %v5647 = vunpack.c.l.bf16 %v5631
          %v5648 = vunpack.c.l.bf16 %v5632
          %v5649 = vunpack.c.l.bf16 %v5633
          %v5650 = vunpack.c.l.bf16 %v5634
          %v5651 = vunpack.c.l.bf16 %v5635
          %v5652 = vunpack.c.l.bf16 %v5636
          %v5653 = vld [vmem:[#allocation11] sm:$0x1]
          %v5655 = vperm.slane %v5653, 0
          %5657 = vmatpush.msra.mxu0 %v5652
          %5658 = vmatpush.msra.mxu0 %v5651
          %5659 = vmatpush.msra.mxu0 %v5650
          %5660 = vmatpush.msra.mxu0 %v5649
          %5661 = vmatpush.msra.mxu0 %v5648
          %5662 = vmatpush.msra.mxu0 %v5647
          %5663 = vmatpush.msra.mxu0 %v5646
          %5664 = vmatpush.msra.mxu0 %v5645
          %5665 = vmatpush.msra.mxu0 %v5644
          %5666 = vmatpush.msra.mxu0 %v5643
          %5667 = vmatpush.msra.mxu0 %v5642
          %5668 = vmatpush.msra.mxu0 %v5641
          %5669 = vmatpush.msra.mxu0 %v5640
          %5670 = vmatpush.msra.mxu0 %v5639
          %5671 = vmatpush.msra.mxu0 %v5638
          %5672 = vmatpush.msra.mxu0 %v5637
          %5673 = vmatmul.f32.gmra.mxu0 %v5620
          %v5674 = vpop.f32.mrf.mxu0
          %v5675 = vadd.f32 %v5655, %v5674
          %5676 = vdwg.mxu0
          %5677 = vadd.xlane.f32.xlu0 %v5675
          %v5678 = vpop.xlane.xlu0 %5677
          %v5679 = vmul.f32 %v5678, %v5601
          %v5680 = vsub.f32 %v5675, %v5679
          %v5681 = vmul.f32 %v5680, %v5680
          %5682 = vadd.xlane.f32.xlu0 %v5681
          %v5683 = vpop.xlane.xlu0 %5682
          %v5684 = vmul.f32 %v5683, %v5601
          %v5685 = vadd.f32 %v5684, 1e-05
          %v5686 = vrsqrt.pop %v5685
          %v5687 = vmul.f32 %v5686, %v5685
          %v5688 = vmul.f32 %v5687, %v5686
          %v5689 = vmul.f32 0.5, %v5688
          %v5690 = vsub.f32 1.5, %v5689
          %v5691 = vmul.f32 %v5686, %v5690
          %vm5692 = vweird.f32 %v5685
          %vm5693 = vweird.f32 %v5686
          %vm5694 = vmor %vm5692, %vm5693
          %v5695 = vsel %vm5694, %v5686, %v5691
          %v5696 = vmul.f32 %v5680, %v5695
          %v5697 = vmax.f32 %v5696, 0.0
          %s5698 = scalar_lea.vmem [#allocation9], 64
          %v5699 = vld [vmem:[%s5698] sm:$0xf]
          %v5700 = vld [vmem:[%s5698 + $0x4] sm:$0xf]
          %v5701 = vld [vmem:[%s5698 + $0x8] sm:$0xf]
          %v5702 = vld [vmem:[%s5698 + $0xc] sm:$0xf]
          %v5703 = vld [vmem:[%s5698 + $0x10] sm:$0xf]
          %v5704 = vld [vmem:[%s5698 + $0x14] sm:$0xf]
          %v5705 = vld [vmem:[%s5698 + $0x18] sm:$0xf]
          %v5706 = vld [vmem:[%s5698 + $0x1c] sm:$0xf]
          %v5707 = vld [vmem:[%s5698 + $0x20] sm:$0xf]
          %v5708 = vld [vmem:[%s5698 + $0x24] sm:$0xf]
          %v5709 = vld [vmem:[%s5698 + $0x28] sm:$0xf]
          %v5710 = vld [vmem:[%s5698 + $0x2c] sm:$0xf]
          %v5711 = vld [vmem:[%s5698 + $0x30] sm:$0xf]
          %v5712 = vld [vmem:[%s5698 + $0x34] sm:$0xf]
          %v5713 = vld [vmem:[%s5698 + $0x38] sm:$0xf]
          %v5714 = vld [vmem:[%s5698 + $0x3c] sm:$0xf]
          %v5715 = vunpack.c.l.bf16 %v5699
          %v5716 = vunpack.c.l.bf16 %v5700
          %v5717 = vunpack.c.l.bf16 %v5701
          %v5718 = vunpack.c.l.bf16 %v5702
          %v5719 = vunpack.c.l.bf16 %v5703
          %v5720 = vunpack.c.l.bf16 %v5704
          %v5721 = vunpack.c.l.bf16 %v5705
          %v5722 = vunpack.c.l.bf16 %v5706
          %v5723 = vunpack.c.l.bf16 %v5707
          %v5724 = vunpack.c.l.bf16 %v5708
          %v5725 = vunpack.c.l.bf16 %v5709
          %v5726 = vunpack.c.l.bf16 %v5710
          %v5727 = vunpack.c.l.bf16 %v5711
          %v5728 = vunpack.c.l.bf16 %v5712
          %v5729 = vunpack.c.l.bf16 %v5713
          %v5730 = vunpack.c.l.bf16 %v5714
          %s5731 = scalar_lea.vmem [#allocation11], 1
          %v5732 = vld [vmem:[%s5731] sm:$0x1]
          %v5734 = vperm.slane %v5732, 0
          %5736 = vmatpush.msra.mxu0 %v5730
          %5737 = vmatpush.msra.mxu0 %v5729
          %5738 = vmatpush.msra.mxu0 %v5728
          %5739 = vmatpush.msra.mxu0 %v5727
          %5740 = vmatpush.msra.mxu0 %v5726
          %5741 = vmatpush.msra.mxu0 %v5725
          %5742 = vmatpush.msra.mxu0 %v5724
          %5743 = vmatpush.msra.mxu0 %v5723
          %5744 = vmatpush.msra.mxu0 %v5722
          %5745 = vmatpush.msra.mxu0 %v5721
          %5746 = vmatpush.msra.mxu0 %v5720
          %5747 = vmatpush.msra.mxu0 %v5719
          %5748 = vmatpush.msra.mxu0 %v5718
          %5749 = vmatpush.msra.mxu0 %v5717
          %5750 = vmatpush.msra.mxu0 %v5716
          %5751 = vmatpush.msra.mxu0 %v5715
          %5752 = vmatmul.f32.gmra.mxu0 %v5697
          %v5753 = vpop.f32.mrf.mxu0
          %v5754 = vadd.f32 %v5734, %v5753
          %5755 = vdwg.mxu0
          %5756 = vadd.xlane.f32.xlu0 %v5754
          %v5757 = vpop.xlane.xlu0 %5756
          %v5758 = vmul.f32 %v5757, %v5601
          %v5759 = vsub.f32 %v5754, %v5758
          %v5760 = vmul.f32 %v5759, %v5759
          %5761 = vadd.xlane.f32.xlu0 %v5760
          %v5762 = vpop.xlane.xlu0 %5761
          %v5763 = vmul.f32 %v5762, %v5601
          %v5764 = vadd.f32 %v5763, 1e-05
          %v5765 = vrsqrt.pop %v5764
          %v5766 = vmul.f32 %v5765, %v5764
          %v5767 = vmul.f32 %v5766, %v5765
          %v5768 = vmul.f32 0.5, %v5767
          %v5769 = vsub.f32 1.5, %v5768
          %v5770 = vmul.f32 %v5765, %v5769
          %vm5771 = vweird.f32 %v5764
          %vm5772 = vweird.f32 %v5765
          %vm5773 = vmor %vm5771, %vm5772
          %v5774 = vsel %vm5773, %v5765, %v5770
          %v5775 = vmul.f32 %v5759, %v5774
          %v5776 = vmax.f32 %v5775, 0.0
          %v5777 = vld [vmem:[%s5] sm:$0xf]
          %v5778 = vld [vmem:[%s5 + $0x4] sm:$0xf]
          %v5779 = vld [vmem:[%s5 + $0x8] sm:$0xf]
          %v5780 = vld [vmem:[%s5 + $0xc] sm:$0xf]
          %v5781 = vld [vmem:[%s5 + $0x10] sm:$0xf]
          %v5782 = vld [vmem:[%s5 + $0x14] sm:$0xf]
          %v5783 = vld [vmem:[%s5 + $0x18] sm:$0xf]
          %v5784 = vld [vmem:[%s5 + $0x1c] sm:$0xf]
          %v5785 = vld [vmem:[%s5 + $0x20] sm:$0xf]
          %v5786 = vld [vmem:[%s5 + $0x24] sm:$0xf]
          %v5787 = vld [vmem:[%s5 + $0x28] sm:$0xf]
          %v5788 = vld [vmem:[%s5 + $0x2c] sm:$0xf]
          %v5789 = vld [vmem:[%s5 + $0x30] sm:$0xf]
          %v5790 = vld [vmem:[%s5 + $0x34] sm:$0xf]
          %v5791 = vld [vmem:[%s5 + $0x38] sm:$0xf]
          %v5792 = vld [vmem:[%s5 + $0x3c] sm:$0xf]
          %v5793 = vunpack.c.l.bf16 %v5777
          %v5794 = vunpack.c.l.bf16 %v5778
          %v5795 = vunpack.c.l.bf16 %v5779
          %v5796 = vunpack.c.l.bf16 %v5780
          %v5797 = vunpack.c.l.bf16 %v5781
          %v5798 = vunpack.c.l.bf16 %v5782
          %v5799 = vunpack.c.l.bf16 %v5783
          %v5800 = vunpack.c.l.bf16 %v5784
          %v5801 = vunpack.c.l.bf16 %v5785
          %v5802 = vunpack.c.l.bf16 %v5786
          %v5803 = vunpack.c.l.bf16 %v5787
          %v5804 = vunpack.c.l.bf16 %v5788
          %v5805 = vunpack.c.l.bf16 %v5789
          %v5806 = vunpack.c.l.bf16 %v5790
          %v5807 = vunpack.c.l.bf16 %v5791
          %v5808 = vunpack.c.l.bf16 %v5792
          %v5809 = vld [vmem:[#allocation12] sm:$0x1]
          %v5811 = vperm.slane %v5809, 0
          %5813 = vmatpush.msra.mxu0 %v5808
          %5814 = vmatpush.msra.mxu0 %v5807
          %5815 = vmatpush.msra.mxu0 %v5806
          %5816 = vmatpush.msra.mxu0 %v5805
          %5817 = vmatpush.msra.mxu0 %v5804
          %5818 = vmatpush.msra.mxu0 %v5803
          %5819 = vmatpush.msra.mxu0 %v5802
          %5820 = vmatpush.msra.mxu0 %v5801
          %5821 = vmatpush.msra.mxu0 %v5800
          %5822 = vmatpush.msra.mxu0 %v5799
          %5823 = vmatpush.msra.mxu0 %v5798
          %5824 = vmatpush.msra.mxu0 %v5797
          %5825 = vmatpush.msra.mxu0 %v5796
          %5826 = vmatpush.msra.mxu0 %v5795
          %5827 = vmatpush.msra.mxu0 %v5794
          %5828 = vmatpush.msra.mxu0 %v5793
          %5829 = vmatmul.f32.gmra.mxu0 %v5776
          %v5830 = vpop.f32.mrf.mxu0
          %v5831 = vadd.f32 %v5811, %v5830
          %5832 = vdwg.mxu0
          %vm5833 = vcmask 523264
          %5834 = vst.msk [vmem:[#allocation14] sm:$0xff] %vm5833, %v5831
        $region80: #{tpu_custom_call.1} parent=47 // pred_fallthru
          _
        // Predicated region
        $region81: #{tpu_custom_call.1} parent=47 // pred_check
          %p5835 = pneg %p197
        $region82: #{tpu_custom_call.1} parent=47 // pred_check_branch
          %5837 = sbr.rel (%p5835) target = $region84
        $region83: #{tpu_custom_call.1} parent=47 // pred_region
          %5839 = vsyncadd [#allocation5], 0
          %s5841 = sshll.u32 [#allocation14], 4
          %s5842 = int_to_ptr.vmem [resolvable:$true] %s5841
          %s5843 = sshll.u32 %s7, 4
          %s5844 = int_to_ptr.hbm [resolvable:$true] %s5843
          %5846 = dma.vmem_to_hbm [thread:$0]  %s5842, 128, %s5844, [#allocation5]
        $region84: #{tpu_custom_call.1} parent=47 // pred_fallthru
          _
        // Predicated region
        $region85: #{tpu_custom_call.1} parent=47 // pred_check
          %p5847 = pneg %p197
        $region86: #{tpu_custom_call.1} parent=47 // pred_check_branch
          %5849 = sbr.rel (%p5847) target = $region88
        $region87: #{tpu_custom_call.1} parent=47 // pred_region
          %5851 = dma.done [#allocation5], 128
        $region88: #{tpu_custom_call.1} parent=47 // pred_fallthru
          _
      $region48: #{tpu_custom_call.1} parent=5 // pred_fallthru
        _
      %p5852 = scmp.le.s32.totalorder 2, %s22
      // Predicated region
      $region89: #{tpu_custom_call.1} parent=5 // pred_check
        %p5853 = pneg %p5852
      $region90: #{tpu_custom_call.1} parent=5 // pred_check_branch
        %5855 = sbr.rel (%p5853) target = $region92
      $region91: #{tpu_custom_call.1} parent=5 // pred_region
        %s5856 = ssub.s32 %s22, 2
      $region92: #{tpu_custom_call.1} parent=5 // pred_fallthru
        _
    $region6: #{tpu_custom_call.1} parent=1 // loop_footer
      %s26 = sadd.s32 1, %s22
    $region7: #{tpu_custom_call.1} parent=1 // loop_footer_branch
      %21 = sbr.rel target = $region3
    $region8: #{tpu_custom_call.1} parent=1 // loop_exit
      _
    %5857 = vsyncpa [#allocation4], 1
    %s5858 = scalar_lea.sflag [#allocation4], 1
    %5859 = vsyncpa %s5858, 1
    %5860 = vsyncpa [#allocation7], 1
    %s5861 = scalar_lea.sflag [#allocation7], 1
    %5862 = vsyncpa %s5861, 1
    %5863 = vsyncpa [#allocation10], 1
    %5864 = vsyncpa [#allocation13], 1
    %5865 = vsyncpa [#allocation5], 1
    %s5866 = scalar_lea.sflag [#allocation5], 1
    %5867 = vsyncpa %s5866, 1

</llo_original>
